<compile_context>
chip_gen: v6e
topology: v6e:2x2x1
jax: 0.10.0
libtpu: 0.0.40
codegen_flags: <defaults>
</compile_context>

<pallas_src>
import functools

import jax
import jax.numpy as jnp
from jax.experimental import pallas as pl
from jax.experimental.pallas import tpu as pltpu

OUT_LANES = 128  # lane-dense padded width for the final (512 -> 1) layer


def discriminator_kernel(z_ref, w1_ref, b1_ref, w2_ref, b2_ref, w3_ref, b3_ref, o_ref):
    # Layer 1: Linear(z_dim -> 512) on the MXU (bf16 in, f32 acc); bias + ReLU in f32.
    h1 = jnp.dot(z_ref[...], w1_ref[...], preferred_element_type=jnp.float32)
    h1 = jnp.maximum(h1 + b1_ref[...], 0.0).astype(jnp.bfloat16)
    # Layer 2: Linear(512 -> 512) + ReLU.
    h2 = jnp.dot(h1, w2_ref[...], preferred_element_type=jnp.float32)
    h2 = jnp.maximum(h2 + b2_ref[...], 0.0).astype(jnp.bfloat16)
    # Layer 3: Linear(512 -> 1), zero-padded to 128 output lanes so the matmul is lane-dense.
    s3 = jnp.dot(h2, w3_ref[...], preferred_element_type=jnp.float32)  # (bb, 128), col 0 live
    # Transpose-pack (XLU, otherwise idle here): for every 128-row group, the live logit
    # column becomes one lane-dense 128-wide row -> out tile (bb//128, 128).
    bb = s3.shape[0]
    g = bb // OUT_LANES
    s3 = s3.reshape(g, OUT_LANES, OUT_LANES)
    packed = jnp.transpose(s3, (0, 2, 1))[:, 0, :]  # packed[gi, r] = logit of row gi*128 + r
    # b3 is broadcast to all lanes in the wrapper, so a plain add finishes the layer.
    o_ref[...] = packed + b3_ref[...]


def _round_up(x, m):
    return ((x + m - 1) // m) * m


@functools.partial(jax.jit, static_argnames=("block_b",))
def discriminator_forward(z, w1, b1, w2, b2, w3, b3, *, block_b=1024):
    """3-layer MLP discriminator; batch-tiled, weights VMEM-resident, packed logit output."""
    B, z_dim = z.shape
    H = w1.shape[1]

    # --- batch tile selection -------------------------------------------------------
    # Small batches: one block covering the whole (128-padded) batch -> grid=(1,).
    # Large batches: `block_b`-row tiles, rounded up to a multiple of 1024 so the packed
    # (blk/128, 128) output tile stays (8,128)-aligned across a multi-step grid.
    b_pad128 = _round_up(max(B, 1), 128)
    if b_pad128 <= block_b:
        blk = b_pad128
    else:
        blk = _round_up(block_b, 1024)
    Bp = _round_up(B, blk)
    if Bp != B:
        z = jnp.pad(z, ((0, Bp - B), (0, 0)))

    # --- operand prep ---------------------------------------------------------------
    z_bf = z.astype(jnp.bfloat16)
    w1_bf = w1.astype(jnp.bfloat16)
    w2_bf = w2.astype(jnp.bfloat16)
    b1_f32 = jnp.asarray(b1, jnp.float32).reshape(1, H)
    b2_f32 = jnp.asarray(b2, jnp.float32).reshape(1, H)
    # 512->1 weight padded to 128 lanes (only column 0 live); bias broadcast to all lanes
    # because after transpose-packing every output lane holds a real logit.
    w3_col = jnp.asarray(w3, jnp.float32).reshape(H, 1).astype(jnp.bfloat16)
    w3_pad = jnp.zeros((H, OUT_LANES), jnp.bfloat16).at[:, :1].set(w3_col)
    b3_pad = jnp.full((1, OUT_LANES), jnp.asarray(b3, jnp.float32).reshape(()), jnp.float32)

    grid = (Bp // blk,)
    tiled_in = pl.BlockSpec((blk, z_dim), lambda i: (i, 0))
    tiled_out = pl.BlockSpec((blk // OUT_LANES, OUT_LANES), lambda i: (i, 0))
    resident = lambda shape: pl.BlockSpec(shape, lambda i: (0, 0))

    flops = 2 * Bp * (z_dim * H + H * H + H * OUT_LANES)
    bytes_accessed = (
        (z_dim * H + H * H + H * OUT_LANES) * 2   # bf16 weights (read once)
        + (2 * H + OUT_LANES) * 4                 # f32 biases
        + Bp * z_dim * 2                          # bf16 activations in
        + Bp * 4                                  # packed f32 logits out (4 B per row)
    )

    out = pl.pallas_call(
        discriminator_kernel,
        out_shape=jax.ShapeDtypeStruct((Bp // OUT_LANES, OUT_LANES), jnp.float32),
        grid=grid,
        in_specs=[
            tiled_in,                     # z
            resident((z_dim, H)),         # w1
            resident((1, H)),             # b1
            resident((H, H)),             # w2
            resident((1, H)),             # b2
            resident((H, OUT_LANES)),     # w3 (lane-padded)
            resident((1, OUT_LANES)),     # b3 (lane-broadcast)
        ],
        out_specs=tiled_out,
        compiler_params=pltpu.CompilerParams(
            dimension_semantics=("parallel",),
            vmem_limit_bytes=32 * 1024 * 1024,
        ),
        cost_estimate=pl.CostEstimate(
            flops=flops, transcendentals=0, bytes_accessed=bytes_accessed
        ),
    )(z_bf, w1_bf, b1_f32, w2_bf, b2_f32, w3_pad, b3_pad)

    # Un-pack: out[g, j] is the logit of batch row g*128 + j; drop padding rows.
    return out.reshape(-1)[:B].reshape(B, 1)


def init_params(key, z_dim=10, hidden=512):
    """Deterministic kaiming_normal (fan_in, relu gain) init, biases = 0, mirroring
    kaiming_init() on the nn.Linear layers.  Weights stored as (in, out) so y = z @ W + b."""
    k1, k2, k3 = jax.random.split(key, 3)
    w1 = jax.random.normal(k1, (z_dim, hidden), jnp.float32) * jnp.sqrt(2.0 / z_dim)
    b1 = jnp.zeros((1, hidden), jnp.float32)
    w2 = jax.random.normal(k2, (hidden, hidden), jnp.float32) * jnp.sqrt(2.0 / hidden)
    b2 = jnp.zeros((1, hidden), jnp.float32)
    w3 = jax.random.normal(k3, (hidden, 1), jnp.float32) * jnp.sqrt(2.0 / hidden)
    b3 = jnp.zeros((1, 1), jnp.float32)
    return w1, b1, w2, b2, w3, b3


def reference_forward(z, w1, b1, w2, b2, w3, b3):
    """Pure-JAX reference using the same bf16-weight / f32-accumulate recipe."""
    h1 = jnp.maximum(
        jnp.dot(z.astype(jnp.bfloat16), w1.astype(jnp.bfloat16),
                preferred_element_type=jnp.float32) + b1, 0.0)
    h2 = jnp.maximum(
        jnp.dot(h1.astype(jnp.bfloat16), w2.astype(jnp.bfloat16),
                preferred_element_type=jnp.float32) + b2, 0.0)
    return jnp.dot(h2.astype(jnp.bfloat16), w3.astype(jnp.bfloat16),
                   preferred_element_type=jnp.float32) + b3


if __name__ == "__main__":
    key = jax.random.PRNGKey(0)
    k_z, k_p = jax.random.split(key)

    z_dim = 10
    params = init_params(k_p, z_dim=z_dim, hidden=512)

    # Case 1: small batch -> single-block path (grid=(1,), no pipeline overhead).
    z_small = jax.random.normal(k_z, (512, z_dim), jnp.float32)
    out_small = jax.block_until_ready(discriminator_forward(z_small, *params))
    ref_small = reference_forward(z_small, *params)
    assert out_small.shape == (512, 1), out_small.shape
    assert jnp.allclose(out_small, ref_small, atol=5e-3, rtol=5e-3), (
        float(jnp.max(jnp.abs(out_small - ref_small))))

    # Case 2: larger batch -> multi-tile path (1024-row tiles, grid=(2,), batch padding
    # sliced off, packed output un-packed across tiles).
    z_big = jax.random.normal(k_z, (1536, z_dim), jnp.float32)
    out_big = jax.block_until_ready(discriminator_forward(z_big, *params))
    ref_big = reference_forward(z_big, *params)
    assert out_big.shape == (1536, 1), out_big.shape
    assert jnp.allclose(out_big, ref_big, atol=5e-3, rtol=5e-3), (
        float(jnp.max(jnp.abs(out_big - ref_big))))

    print("KERNEL_OK")
</pallas_src>

<mosaic_0001>
module attributes {stable_mosaic.version = 11 : i64} {
  func.func @discriminator_kernel(%arg0: i32, %arg1: memref<512x10xbf16, #tpu.memory_space<vmem>>, %arg2: memref<10x512xbf16, #tpu.memory_space<vmem>>, %arg3: memref<1x512xf32, #tpu.memory_space<vmem>>, %arg4: memref<512x512xbf16, #tpu.memory_space<vmem>>, %arg5: memref<1x512xf32, #tpu.memory_space<vmem>>, %arg6: memref<512x128xbf16, #tpu.memory_space<vmem>>, %arg7: memref<1x128xf32, #tpu.memory_space<vmem>>, %arg8: memref<4x128xf32, #tpu.memory_space<vmem>>) attributes {dimension_semantics = [#tpu.dimension_semantics<parallel>], iteration_bounds = array<i64: 1>, scalar_prefetch = 0 : i64, scratch_operands = 0 : i64, tpu.core_type = #tpu.core_type<tc>, window_params = [{transform_indices = @transform_0, window_bounds = array<i64: 512, 10>}, {pipeline_mode = #tpu.pipeline_mode<synchronous>, transform_indices = @transform_1, window_bounds = array<i64: 10, 512>}, {pipeline_mode = #tpu.pipeline_mode<synchronous>, transform_indices = @transform_2, window_bounds = array<i64: 1, 512>}, {pipeline_mode = #tpu.pipeline_mode<synchronous>, transform_indices = @transform_3, window_bounds = array<i64: 512, 512>}, {pipeline_mode = #tpu.pipeline_mode<synchronous>, transform_indices = @transform_4, window_bounds = array<i64: 1, 512>}, {pipeline_mode = #tpu.pipeline_mode<synchronous>, transform_indices = @transform_5, window_bounds = array<i64: 512, 128>}, {pipeline_mode = #tpu.pipeline_mode<synchronous>, transform_indices = @transform_6, window_bounds = array<i64: 1, 128>}, {transform_indices = @transform_7, window_bounds = array<i64: 4, 128>}]} {
    %c0 = arith.constant 0 : index
    %c0_0 = arith.constant 0 : index
    %0 = vector.load %arg1[%c0, %c0_0] : memref<512x10xbf16, #tpu.memory_space<vmem>>, vector<512x10xbf16>
    %c0_1 = arith.constant 0 : index
    %c0_2 = arith.constant 0 : index
    %1 = vector.load %arg2[%c0_1, %c0_2] : memref<10x512xbf16, #tpu.memory_space<vmem>>, vector<10x512xbf16>
    %cst = arith.constant dense<0.000000e+00> : vector<512x512xf32>
    %2 = tpu.matmul %0, %1, %cst {dimension_numbers = #tpu.dot_dimension_numbers<[1], [0], [0], [1], [0, 0, 1, 1], [], []>} : vector<512x10xbf16>, vector<10x512xbf16>, vector<512x512xf32> -> vector<512x512xf32>
    %c0_3 = arith.constant 0 : index
    %c0_4 = arith.constant 0 : index
    %3 = vector.load %arg3[%c0_3, %c0_4] : memref<1x512xf32, #tpu.memory_space<vmem>>, vector<1x512xf32>
    %4 = vector.broadcast %3 : vector<1x512xf32> to vector<512x512xf32>
    %5 = arith.addf %2, %4 : vector<512x512xf32>
    %cst_5 = arith.constant 0.000000e+00 : f32
    %6 = vector.broadcast %cst_5 : f32 to vector<512x512xf32>
    %7 = arith.maximumf %5, %6 : vector<512x512xf32>
    %8 = arith.truncf %7 : vector<512x512xf32> to vector<512x512xbf16>
    %c0_6 = arith.constant 0 : index
    %c0_7 = arith.constant 0 : index
    %9 = vector.load %arg4[%c0_6, %c0_7] : memref<512x512xbf16, #tpu.memory_space<vmem>>, vector<512x512xbf16>
    %cst_8 = arith.constant dense<0.000000e+00> : vector<512x512xf32>
    %10 = tpu.matmul %8, %9, %cst_8 {dimension_numbers = #tpu.dot_dimension_numbers<[1], [0], [0], [1], [0, 0, 1, 1], [], []>} : vector<512x512xbf16>, vector<512x512xbf16>, vector<512x512xf32> -> vector<512x512xf32>
    %c0_9 = arith.constant 0 : index
    %c0_10 = arith.constant 0 : index
    %11 = vector.load %arg5[%c0_9, %c0_10] : memref<1x512xf32, #tpu.memory_space<vmem>>, vector<1x512xf32>
    %12 = vector.broadcast %11 : vector<1x512xf32> to vector<512x512xf32>
    %13 = arith.addf %10, %12 : vector<512x512xf32>
    %cst_11 = arith.constant 0.000000e+00 : f32
    %14 = vector.broadcast %cst_11 : f32 to vector<512x512xf32>
    %15 = arith.maximumf %13, %14 : vector<512x512xf32>
    %16 = arith.truncf %15 : vector<512x512xf32> to vector<512x512xbf16>
    %c0_12 = arith.constant 0 : index
    %c0_13 = arith.constant 0 : index
    %17 = vector.load %arg6[%c0_12, %c0_13] : memref<512x128xbf16, #tpu.memory_space<vmem>>, vector<512x128xbf16>
    %cst_14 = arith.constant dense<0.000000e+00> : vector<512x128xf32>
    %18 = tpu.matmul %16, %17, %cst_14 {dimension_numbers = #tpu.dot_dimension_numbers<[1], [0], [0], [1], [0, 0, 1, 1], [], []>} : vector<512x512xbf16>, vector<512x128xbf16>, vector<512x128xf32> -> vector<512x128xf32>
    %19 = vector.shape_cast %18 : vector<512x128xf32> to vector<4x128x128xf32>
    %20 = tpu.transpose %19, [0, 2, 1] : vector<4x128x128xf32> -> vector<4x128x128xf32>
    %21 = vector.extract_strided_slice %20 {offsets = [0, 0, 0], sizes = [4, 1, 128], strides = [1, 1, 1]} : vector<4x128x128xf32> to vector<4x1x128xf32>
    %22 = vector.shape_cast %21 : vector<4x1x128xf32> to vector<4x128xf32>
    %c0_15 = arith.constant 0 : index
    %c0_16 = arith.constant 0 : index
    %23 = vector.load %arg7[%c0_15, %c0_16] : memref<1x128xf32, #tpu.memory_space<vmem>>, vector<1x128xf32>
    %24 = vector.broadcast %23 : vector<1x128xf32> to vector<4x128xf32>
    %25 = arith.addf %22, %24 : vector<4x128xf32>
    %c0_17 = arith.constant 0 : index
    %c0_18 = arith.constant 0 : index
    %26 = vector.load %arg8[%c0_17, %c0_18] : memref<4x128xf32, #tpu.memory_space<vmem>>, vector<4x128xf32>
    tpu.vector_store %arg8[%c0_17, %c0_18], %25 {strides = array<i32>} : memref<4x128xf32, #tpu.memory_space<vmem>>, vector<4x128xf32>,
    return
  }
  func.func @transform_0(%arg0: i32) -> (i32, i32) {
    %c0_i32 = arith.constant 0 : i32
    %c0_i32_0 = arith.constant 0 : i32
    return %arg0, %c0_i32 : i32, i32
  }
  func.func @transform_1(%arg0: i32) -> (i32, i32) {
    %c0_i32 = arith.constant 0 : i32
    %c0_i32_0 = arith.constant 0 : i32
    %c0_i32_1 = arith.constant 0 : i32
    return %c0_i32, %c0_i32_0 : i32, i32
  }
  func.func @transform_2(%arg0: i32) -> (i32, i32) {
    %c0_i32 = arith.constant 0 : i32
    %c0_i32_0 = arith.constant 0 : i32
    %c0_i32_1 = arith.constant 0 : i32
    return %c0_i32, %c0_i32_0 : i32, i32
  }
  func.func @transform_3(%arg0: i32) -> (i32, i32) {
    %c0_i32 = arith.constant 0 : i32
    %c0_i32_0 = arith.constant 0 : i32
    %c0_i32_1 = arith.constant 0 : i32
    return %c0_i32, %c0_i32_0 : i32, i32
  }
  func.func @transform_4(%arg0: i32) -> (i32, i32) {
    %c0_i32 = arith.constant 0 : i32
    %c0_i32_0 = arith.constant 0 : i32
    %c0_i32_1 = arith.constant 0 : i32
    return %c0_i32, %c0_i32_0 : i32, i32
  }
  func.func @transform_5(%arg0: i32) -> (i32, i32) {
    %c0_i32 = arith.constant 0 : i32
    %c0_i32_0 = arith.constant 0 : i32
    %c0_i32_1 = arith.constant 0 : i32
    return %c0_i32, %c0_i32_0 : i32, i32
  }
  func.func @transform_6(%arg0: i32) -> (i32, i32) {
    %c0_i32 = arith.constant 0 : i32
    %c0_i32_0 = arith.constant 0 : i32
    %c0_i32_1 = arith.constant 0 : i32
    return %c0_i32, %c0_i32_0 : i32, i32
  }
  func.func @transform_7(%arg0: i32) -> (i32, i32) {
    %c0_i32 = arith.constant 0 : i32
    %c0_i32_0 = arith.constant 0 : i32
    return %arg0, %c0_i32 : i32, i32
  }
}

</mosaic_0001>

<llo_original>
// kernel: discriminator_forward.1
$region0: #{discriminator_forward.1}
  #allocation0 [shape = 'u32[]', space=smem, size = 0x4, offset = 0x4, fixed_abs, tag = 'smem constant byte address 0x4 - core index']
  #allocation1 [shape = 'u32[144,128]{1,0:T(1,128)}', space=vmem, size = 0x12000, scoped, tag = 'internal scratch']
  %s0 = inlined_call_operand.vmem [shape: bf16[512,10], index: 0, kind: input, shape index: {}]
  %s1 = inlined_call_operand.vmem [shape: bf16[10,512], index: 1, kind: input, shape index: {}]
  %s2 = inlined_call_operand.vmem [shape: f32[1,512], index: 2, kind: input, shape index: {}]
  %s3 = inlined_call_operand.vmem [shape: bf16[512,512], index: 3, kind: input, shape index: {}]
  %s4 = inlined_call_operand.vmem [shape: f32[1,512], index: 4, kind: input, shape index: {}]
  %s5 = inlined_call_operand.vmem [shape: bf16[512,128], index: 5, kind: input, shape index: {}]
  %s6 = inlined_call_operand.vmem [shape: f32[1,128], index: 6, kind: input, shape index: {}]
  %s7 = inlined_call_operand.hbm [shape: f32[4,128], index: 7, kind: output, shape index: {}]
  %s8 = sld [smem:[#allocation0]]
  $region38: #{discriminator_forward.1} parent=0
    _
  %s10 = ssub.s32 1, %s8
  %s11 = scalar_select 0, %s10, %s8
  $region1: #{discriminator_forward.1} parent=0
    #allocation2 [shape = 'u8[2048]{0}', space=vmem, size = 0x800, scoped, tag = 'output window, operand 0, single buffered']
    #allocation3 [shape = 's32[1]{0}', space=sflag, size = 0x4, scoped, tag = 'scoped memory for discriminator_forward.1']
    %12 = vsyncpa [#allocation3], 0
    // Predicated region
    $region2: #{discriminator_forward.1} parent=1 // pred_check
      _
    $region3: #{discriminator_forward.1} parent=1 // pred_check_branch
      %14 = sbr.rel (0) target = $region5
    $region4: #{discriminator_forward.1} parent=1 // pred_region
      _
    $region5: #{discriminator_forward.1} parent=1 // pred_fallthru
      _
    // Predicated region
    $region6: #{discriminator_forward.1} parent=1 // pred_check
      _
    $region7: #{discriminator_forward.1} parent=1 // pred_check_branch
      %16 = sbr.rel (0) target = $region9
    $region8: #{discriminator_forward.1} parent=1 // pred_region
      _
    $region9: #{discriminator_forward.1} parent=1 // pred_fallthru
      _
    // Predicated region
    $region10: #{discriminator_forward.1} parent=1 // pred_check
      _
    $region11: #{discriminator_forward.1} parent=1 // pred_check_branch
      %18 = sbr.rel (0) target = $region13
    $region12: #{discriminator_forward.1} parent=1 // pred_region
      _
    $region13: #{discriminator_forward.1} parent=1 // pred_fallthru
      _
    // Predicated region
    $region14: #{discriminator_forward.1} parent=1 // pred_check
      _
    $region15: #{discriminator_forward.1} parent=1 // pred_check_branch
      %20 = sbr.rel (0) target = $region17
    $region16: #{discriminator_forward.1} parent=1 // pred_region
      _
    $region17: #{discriminator_forward.1} parent=1 // pred_fallthru
      _
    // Predicated region
    $region18: #{discriminator_forward.1} parent=1 // pred_check
      _
    $region19: #{discriminator_forward.1} parent=1 // pred_check_branch
      %22 = sbr.rel (0) target = $region21
    $region20: #{discriminator_forward.1} parent=1 // pred_region
      _
    $region21: #{discriminator_forward.1} parent=1 // pred_fallthru
      _
    // Predicated region
    $region22: #{discriminator_forward.1} parent=1 // pred_check
      _
    $region23: #{discriminator_forward.1} parent=1 // pred_check_branch
      %24 = sbr.rel (0) target = $region25
    $region24: #{discriminator_forward.1} parent=1 // pred_region
      _
    $region25: #{discriminator_forward.1} parent=1 // pred_fallthru
      _
    // Predicated region
    $region26: #{discriminator_forward.1} parent=1 // pred_check
      _
    $region27: #{discriminator_forward.1} parent=1 // pred_check_branch
      %26 = sbr.rel (0) target = $region29
    $region28: #{discriminator_forward.1} parent=1 // pred_region
      _
    $region29: #{discriminator_forward.1} parent=1 // pred_fallthru
      _
    %v28 = vld [vmem:[%s0] sm:$0xf]
    %v29 = vld [vmem:[%s0 + $0x4] sm:$0xf]
    %v30 = vld [vmem:[%s0 + $0x8] sm:$0xf]
    %v31 = vld [vmem:[%s0 + $0xc] sm:$0xf]
    %v32 = vld [vmem:[%s0 + $0x10] sm:$0xf]
    %v33 = vld [vmem:[%s0 + $0x14] sm:$0xf]
    %v34 = vld [vmem:[%s0 + $0x18] sm:$0xf]
    %v35 = vld [vmem:[%s0 + $0x1c] sm:$0xf]
    %v36 = vld [vmem:[%s0 + $0x20] sm:$0xf]
    %v37 = vld [vmem:[%s0 + $0x24] sm:$0xf]
    %v38 = vld [vmem:[%s0 + $0x28] sm:$0xf]
    %v39 = vld [vmem:[%s0 + $0x2c] sm:$0xf]
    %v40 = vld [vmem:[%s0 + $0x30] sm:$0xf]
    %v41 = vld [vmem:[%s0 + $0x34] sm:$0xf]
    %v42 = vld [vmem:[%s0 + $0x38] sm:$0xf]
    %v43 = vld [vmem:[%s0 + $0x3c] sm:$0xf]
    %v44 = vld [vmem:[%s0 + $0x40] sm:$0xf]
    %v45 = vld [vmem:[%s0 + $0x44] sm:$0xf]
    %v46 = vld [vmem:[%s0 + $0x48] sm:$0xf]
    %v47 = vld [vmem:[%s0 + $0x4c] sm:$0xf]
    %v48 = vld [vmem:[%s0 + $0x50] sm:$0xf]
    %v49 = vld [vmem:[%s0 + $0x54] sm:$0xf]
    %v50 = vld [vmem:[%s0 + $0x58] sm:$0xf]
    %v51 = vld [vmem:[%s0 + $0x5c] sm:$0xf]
    %v52 = vld [vmem:[%s0 + $0x60] sm:$0xf]
    %v53 = vld [vmem:[%s0 + $0x64] sm:$0xf]
    %v54 = vld [vmem:[%s0 + $0x68] sm:$0xf]
    %v55 = vld [vmem:[%s0 + $0x6c] sm:$0xf]
    %v56 = vld [vmem:[%s0 + $0x70] sm:$0xf]
    %v57 = vld [vmem:[%s0 + $0x74] sm:$0xf]
    %v58 = vld [vmem:[%s0 + $0x78] sm:$0xf]
    %v59 = vld [vmem:[%s0 + $0x7c] sm:$0xf]
    %v60 = vld [vmem:[%s0 + $0x80] sm:$0xf]
    %v61 = vld [vmem:[%s0 + $0x84] sm:$0xf]
    %v62 = vld [vmem:[%s0 + $0x88] sm:$0xf]
    %v63 = vld [vmem:[%s0 + $0x8c] sm:$0xf]
    %v64 = vld [vmem:[%s0 + $0x90] sm:$0xf]
    %v65 = vld [vmem:[%s0 + $0x94] sm:$0xf]
    %v66 = vld [vmem:[%s0 + $0x98] sm:$0xf]
    %v67 = vld [vmem:[%s0 + $0x9c] sm:$0xf]
    %v68 = vld [vmem:[%s0 + $0xa0] sm:$0xf]
    %v69 = vld [vmem:[%s0 + $0xa4] sm:$0xf]
    %v70 = vld [vmem:[%s0 + $0xa8] sm:$0xf]
    %v71 = vld [vmem:[%s0 + $0xac] sm:$0xf]
    %v72 = vld [vmem:[%s0 + $0xb0] sm:$0xf]
    %v73 = vld [vmem:[%s0 + $0xb4] sm:$0xf]
    %v74 = vld [vmem:[%s0 + $0xb8] sm:$0xf]
    %v75 = vld [vmem:[%s0 + $0xbc] sm:$0xf]
    %v76 = vld [vmem:[%s0 + $0xc0] sm:$0xf]
    %v77 = vld [vmem:[%s0 + $0xc4] sm:$0xf]
    %v78 = vld [vmem:[%s0 + $0xc8] sm:$0xf]
    %v79 = vld [vmem:[%s0 + $0xcc] sm:$0xf]
    %v80 = vld [vmem:[%s0 + $0xd0] sm:$0xf]
    %v81 = vld [vmem:[%s0 + $0xd4] sm:$0xf]
    %v82 = vld [vmem:[%s0 + $0xd8] sm:$0xf]
    %v83 = vld [vmem:[%s0 + $0xdc] sm:$0xf]
    %v84 = vld [vmem:[%s0 + $0xe0] sm:$0xf]
    %v85 = vld [vmem:[%s0 + $0xe4] sm:$0xf]
    %v86 = vld [vmem:[%s0 + $0xe8] sm:$0xf]
    %v87 = vld [vmem:[%s0 + $0xec] sm:$0xf]
    %v88 = vld [vmem:[%s0 + $0xf0] sm:$0xf]
    %v89 = vld [vmem:[%s0 + $0xf4] sm:$0xf]
    %v90 = vld [vmem:[%s0 + $0xf8] sm:$0xf]
    %v91 = vld [vmem:[%s0 + $0xfc] sm:$0xf]
    %v92 = vld [vmem:[%s1] sm:$0xff]
    %v93 = vld [vmem:[%s1 + $0x8] sm:$0xff]
    %v94 = vld [vmem:[%s1 + $0x10] sm:$0x11]
    %v95 = vld [vmem:[%s1 + $0x18] sm:$0x11]
    %v96 = vld [vmem:[%s2] sm:$0xf]
    %v98 = vlaneseq
    %v99 = vshrl.u32 %v98, 7
    %v100 = vsub.s32 0, %v99
    %v101 = vrot.slane %v96, %v100
    %v102 = vlaneseq
    %v103 = vshrl.u32 %v102, 7
    %v104 = vsub.s32 1, %v103
    %v105 = vrot.slane %v96, %v104
    %v106 = vlaneseq
    %v107 = vshrl.u32 %v106, 7
    %v108 = vsub.s32 2, %v107
    %v109 = vrot.slane %v96, %v108
    %v110 = vlaneseq
    %v111 = vshrl.u32 %v110, 7
    %v112 = vsub.s32 3, %v111
    %v113 = vrot.slane %v96, %v112
    %v182 = vunpack.c.l.b16 %v28
    %v183 = vunpack.c.l.b16 %v29
    %v184 = vunpack.c.l.b16 %v30
    %v185 = vunpack.c.l.b16 %v31
    %v186 = vunpack.c.l.b16 %v32
    %v187 = vunpack.c.l.b16 %v33
    %v188 = vunpack.c.l.b16 %v34
    %v189 = vunpack.c.l.b16 %v35
    %v190 = vunpack.c.l.b16 %v36
    %v191 = vunpack.c.l.b16 %v37
    %v192 = vunpack.c.l.b16 %v38
    %v193 = vunpack.c.l.b16 %v39
    %v194 = vunpack.c.l.b16 %v40
    %v195 = vunpack.c.l.b16 %v41
    %v196 = vunpack.c.l.b16 %v42
    %v197 = vunpack.c.l.b16 %v43
    %v198 = vunpack.c.l.b16 %v44
    %v199 = vunpack.c.l.b16 %v45
    %v200 = vunpack.c.l.b16 %v46
    %v201 = vunpack.c.l.b16 %v47
    %v202 = vunpack.c.l.b16 %v48
    %v203 = vunpack.c.l.b16 %v49
    %v204 = vunpack.c.l.b16 %v50
    %v205 = vunpack.c.l.b16 %v51
    %v206 = vunpack.c.l.b16 %v52
    %v207 = vunpack.c.l.b16 %v53
    %v208 = vunpack.c.l.b16 %v54
    %v209 = vunpack.c.l.b16 %v55
    %v210 = vunpack.c.l.b16 %v56
    %v211 = vunpack.c.l.b16 %v57
    %v212 = vunpack.c.l.b16 %v58
    %v213 = vunpack.c.l.b16 %v59
    %v214 = vunpack.c.l.b16 %v60
    %v215 = vunpack.c.l.b16 %v61
    %v216 = vunpack.c.l.b16 %v62
    %v217 = vunpack.c.l.b16 %v63
    %v218 = vunpack.c.l.b16 %v64
    %v219 = vunpack.c.l.b16 %v65
    %v220 = vunpack.c.l.b16 %v66
    %v221 = vunpack.c.l.b16 %v67
    %v222 = vunpack.c.l.b16 %v68
    %v223 = vunpack.c.l.b16 %v69
    %v224 = vunpack.c.l.b16 %v70
    %v225 = vunpack.c.l.b16 %v71
    %v226 = vunpack.c.l.b16 %v72
    %v227 = vunpack.c.l.b16 %v73
    %v228 = vunpack.c.l.b16 %v74
    %v229 = vunpack.c.l.b16 %v75
    %v230 = vunpack.c.l.b16 %v76
    %v231 = vunpack.c.l.b16 %v77
    %v232 = vunpack.c.l.b16 %v78
    %v233 = vunpack.c.l.b16 %v79
    %v234 = vunpack.c.l.b16 %v80
    %v235 = vunpack.c.l.b16 %v81
    %v236 = vunpack.c.l.b16 %v82
    %v237 = vunpack.c.l.b16 %v83
    %v238 = vunpack.c.l.b16 %v84
    %v239 = vunpack.c.l.b16 %v85
    %v240 = vunpack.c.l.b16 %v86
    %v241 = vunpack.c.l.b16 %v87
    %v242 = vunpack.c.l.b16 %v88
    %v243 = vunpack.c.l.b16 %v89
    %v244 = vunpack.c.l.b16 %v90
    %v245 = vunpack.c.l.b16 %v91
    %v246 = vpack.c.b16 %v183, %v182
    %v247 = vpack.c.b16 %v185, %v184
    %v248 = vpack.c.b16 %v187, %v186
    %v249 = vpack.c.b16 %v189, %v188
    %v250 = vpack.c.b16 %v191, %v190
    %v251 = vpack.c.b16 %v193, %v192
    %v252 = vpack.c.b16 %v195, %v194
    %v253 = vpack.c.b16 %v197, %v196
    %v254 = vpack.c.b16 %v199, %v198
    %v255 = vpack.c.b16 %v201, %v200
    %v256 = vpack.c.b16 %v203, %v202
    %v257 = vpack.c.b16 %v205, %v204
    %v258 = vpack.c.b16 %v207, %v206
    %v259 = vpack.c.b16 %v209, %v208
    %v260 = vpack.c.b16 %v211, %v210
    %v261 = vpack.c.b16 %v213, %v212
    %v262 = vpack.c.b16 %v215, %v214
    %v263 = vpack.c.b16 %v217, %v216
    %v264 = vpack.c.b16 %v219, %v218
    %v265 = vpack.c.b16 %v221, %v220
    %v266 = vpack.c.b16 %v223, %v222
    %v267 = vpack.c.b16 %v225, %v224
    %v268 = vpack.c.b16 %v227, %v226
    %v269 = vpack.c.b16 %v229, %v228
    %v270 = vpack.c.b16 %v231, %v230
    %v271 = vpack.c.b16 %v233, %v232
    %v272 = vpack.c.b16 %v235, %v234
    %v273 = vpack.c.b16 %v237, %v236
    %v274 = vpack.c.b16 %v239, %v238
    %v275 = vpack.c.b16 %v241, %v240
    %v276 = vpack.c.b16 %v243, %v242
    %v277 = vpack.c.b16 %v245, %v244
    %v282 = vunpack.c.l.b16 %v92
    %v283 = vunpack.c.h.b16 %v92
    %v284 = vunpack.c.l.b16 %v93
    %v285 = vunpack.c.h.b16 %v93
    %v286 = vunpack.c.l.b16 %v94
    %v287 = vunpack.c.h.b16 %v94
    %v288 = vunpack.c.l.b16 %v95
    %v289 = vunpack.c.h.b16 %v95
    %v290 = vpack.c.b16 %v286, %v282
    %v291 = vpack.c.b16 %v287, %v283
    %v292 = vpack.c.b16 %v288, %v284
    %v293 = vpack.c.b16 %v289, %v285
    %vm294 = vcmask 80896
    %v296 = vsel %vm294, %v246, 0
    %v299 = vsel %vm294, %v247, 0
    %v302 = vsel %vm294, %v248, 0
    %v305 = vsel %vm294, %v249, 0
    %v308 = vsel %vm294, %v250, 0
    %v311 = vsel %vm294, %v251, 0
    %v314 = vsel %vm294, %v252, 0
    %v317 = vsel %vm294, %v253, 0
    %v320 = vsel %vm294, %v254, 0
    %v323 = vsel %vm294, %v255, 0
    %v326 = vsel %vm294, %v256, 0
    %v329 = vsel %vm294, %v257, 0
    %v332 = vsel %vm294, %v258, 0
    %v335 = vsel %vm294, %v259, 0
    %v338 = vsel %vm294, %v260, 0
    %v341 = vsel %vm294, %v261, 0
    %v344 = vsel %vm294, %v262, 0
    %v347 = vsel %vm294, %v263, 0
    %v350 = vsel %vm294, %v264, 0
    %v353 = vsel %vm294, %v265, 0
    %v356 = vsel %vm294, %v266, 0
    %v359 = vsel %vm294, %v267, 0
    %v362 = vsel %vm294, %v268, 0
    %v365 = vsel %vm294, %v269, 0
    %v368 = vsel %vm294, %v270, 0
    %v371 = vsel %vm294, %v271, 0
    %v374 = vsel %vm294, %v272, 0
    %v377 = vsel %vm294, %v273, 0
    %v380 = vsel %vm294, %v274, 0
    %v383 = vsel %vm294, %v275, 0
    %v386 = vsel %vm294, %v276, 0
    %v389 = vsel %vm294, %v277, 0
    %vm391 = vcmask 1044480
    %v393 = vsel %vm391, %v290, 0
    %v396 = vsel %vm391, %v291, 0
    %v399 = vsel %vm391, %v292, 0
    %v402 = vsel %vm391, %v293, 0
    %404 = vmatprep.subr.bf16.mxu0 0
    %405 = vmatpush1.bf16.msra.mxu0 0
    %406 = vmatprep.subr.bf16.mxu0 0
    %407 = vmatpush1.bf16.msra.mxu0 0
    %408 = vmatprep.subr.bf16.mxu0 0
    %409 = vmatpush1.bf16.msra.mxu0 0
    %410 = vmatprep.subr.bf16.mxu0 0
    %411 = vmatpush1.bf16.msra.mxu0 0
    %412 = vmatprep.subr.bf16.mxu0 0
    %413 = vmatpush1.bf16.msra.mxu0 0
    %414 = vmatprep.subr.bf16.mxu0 0
    %415 = vmatpush1.bf16.msra.mxu0 0
    %416 = vmatprep.subr.bf16.mxu0 0
    %417 = vmatpush1.bf16.msra.mxu0 0
    %418 = vmatprep.subr.bf16.mxu0 %v396
    %419 = vmatpush1.bf16.msra.mxu0 %v393
    %420 = vmatprep.subr.bf16.mxu0 0
    %421 = vmatpush2.bf16.msra.mxu0 0
    %422 = vmatprep.subr.bf16.mxu0 0
    %423 = vmatpush2.bf16.msra.mxu0 0
    %424 = vmatprep.subr.bf16.mxu0 0
    %425 = vmatpush2.bf16.msra.mxu0 0
    %426 = vmatprep.subr.bf16.mxu0 0
    %427 = vmatpush2.bf16.msra.mxu0 0
    %428 = vmatprep.subr.bf16.mxu0 0
    %429 = vmatpush2.bf16.msra.mxu0 0
    %430 = vmatprep.subr.bf16.mxu0 0
    %431 = vmatpush2.bf16.msra.mxu0 0
    %432 = vmatprep.subr.bf16.mxu0 0
    %433 = vmatpush2.bf16.msra.mxu0 0
    %434 = vmatprep.subr.bf16.mxu0 0
    %435 = vmatpush2.bf16.msra.mxu0 0
    %436 = vmatprep.mubr.bf16.mxu0 0
    %437 = vmatmul.mubr.bf16.gmra.mxu0 %v296
    %v438 = vpop.f32.mrf.mxu0
    %v439 = vadd.f32 %v101, %v438
    %v440 = vpop.f32.mrf.mxu0
    %v441 = vadd.f32 %v105, %v440
    %v442 = vpop.f32.mrf.mxu0
    %v443 = vadd.f32 %v101, %v442
    %v444 = vpop.f32.mrf.mxu0
    %v445 = vadd.f32 %v105, %v444
    %446 = vmatprep.mubr.bf16.mxu0 0
    %447 = vmatmul.mubr.bf16.gmra.mxu0 %v299
    %v448 = vpop.f32.mrf.mxu0
    %v449 = vadd.f32 %v101, %v448
    %v450 = vpop.f32.mrf.mxu0
    %v451 = vadd.f32 %v105, %v450
    %v452 = vpop.f32.mrf.mxu0
    %v453 = vadd.f32 %v101, %v452
    %v454 = vpop.f32.mrf.mxu0
    %v455 = vadd.f32 %v105, %v454
    %456 = vmatprep.mubr.bf16.mxu0 0
    %457 = vmatmul.mubr.bf16.gmra.mxu0 %v302
    %v458 = vpop.f32.mrf.mxu0
    %v459 = vadd.f32 %v101, %v458
    %v460 = vpop.f32.mrf.mxu0
    %v461 = vadd.f32 %v105, %v460
    %v462 = vpop.f32.mrf.mxu0
    %v463 = vadd.f32 %v101, %v462
    %v464 = vpop.f32.mrf.mxu0
    %v465 = vadd.f32 %v105, %v464
    %466 = vmatprep.mubr.bf16.mxu0 0
    %467 = vmatmul.mubr.bf16.gmra.mxu0 %v305
    %v468 = vpop.f32.mrf.mxu0
    %v469 = vadd.f32 %v101, %v468
    %v470 = vpop.f32.mrf.mxu0
    %v471 = vadd.f32 %v105, %v470
    %v472 = vpop.f32.mrf.mxu0
    %v473 = vadd.f32 %v101, %v472
    %v474 = vpop.f32.mrf.mxu0
    %v475 = vadd.f32 %v105, %v474
    %476 = vmatprep.mubr.bf16.mxu0 0
    %477 = vmatmul.mubr.bf16.gmra.mxu0 %v308
    %v478 = vpop.f32.mrf.mxu0
    %v479 = vadd.f32 %v101, %v478
    %v480 = vpop.f32.mrf.mxu0
    %v481 = vadd.f32 %v105, %v480
    %v482 = vpop.f32.mrf.mxu0
    %v483 = vadd.f32 %v101, %v482
    %v484 = vpop.f32.mrf.mxu0
    %v485 = vadd.f32 %v105, %v484
    %486 = vmatprep.mubr.bf16.mxu0 0
    %487 = vmatmul.mubr.bf16.gmra.mxu0 %v311
    %v488 = vpop.f32.mrf.mxu0
    %v489 = vadd.f32 %v101, %v488
    %v490 = vpop.f32.mrf.mxu0
    %v491 = vadd.f32 %v105, %v490
    %v492 = vpop.f32.mrf.mxu0
    %v493 = vadd.f32 %v101, %v492
    %v494 = vpop.f32.mrf.mxu0
    %v495 = vadd.f32 %v105, %v494
    %496 = vmatprep.mubr.bf16.mxu0 0
    %497 = vmatmul.mubr.bf16.gmra.mxu0 %v314
    %v498 = vpop.f32.mrf.mxu0
    %v499 = vadd.f32 %v101, %v498
    %v500 = vpop.f32.mrf.mxu0
    %v501 = vadd.f32 %v105, %v500
    %v502 = vpop.f32.mrf.mxu0
    %v503 = vadd.f32 %v101, %v502
    %v504 = vpop.f32.mrf.mxu0
    %v505 = vadd.f32 %v105, %v504
    %506 = vmatprep.mubr.bf16.mxu0 0
    %507 = vmatmul.mubr.bf16.gmra.mxu0 %v317
    %v508 = vpop.f32.mrf.mxu0
    %v509 = vadd.f32 %v101, %v508
    %v510 = vpop.f32.mrf.mxu0
    %v511 = vadd.f32 %v105, %v510
    %v512 = vpop.f32.mrf.mxu0
    %v513 = vadd.f32 %v101, %v512
    %v514 = vpop.f32.mrf.mxu0
    %v515 = vadd.f32 %v105, %v514
    %516 = vmatprep.mubr.bf16.mxu0 0
    %517 = vmatmul.mubr.bf16.gmra.mxu0 %v320
    %v518 = vpop.f32.mrf.mxu0
    %v519 = vadd.f32 %v101, %v518
    %v520 = vpop.f32.mrf.mxu0
    %v521 = vadd.f32 %v105, %v520
    %v522 = vpop.f32.mrf.mxu0
    %v523 = vadd.f32 %v101, %v522
    %v524 = vpop.f32.mrf.mxu0
    %v525 = vadd.f32 %v105, %v524
    %526 = vmatprep.mubr.bf16.mxu0 0
    %527 = vmatmul.mubr.bf16.gmra.mxu0 %v323
    %v528 = vpop.f32.mrf.mxu0
    %v529 = vadd.f32 %v101, %v528
    %v530 = vpop.f32.mrf.mxu0
    %v531 = vadd.f32 %v105, %v530
    %v532 = vpop.f32.mrf.mxu0
    %v533 = vadd.f32 %v101, %v532
    %v534 = vpop.f32.mrf.mxu0
    %v535 = vadd.f32 %v105, %v534
    %536 = vmatprep.mubr.bf16.mxu0 0
    %537 = vmatmul.mubr.bf16.gmra.mxu0 %v326
    %v538 = vpop.f32.mrf.mxu0
    %v539 = vadd.f32 %v101, %v538
    %v540 = vpop.f32.mrf.mxu0
    %v541 = vadd.f32 %v105, %v540
    %v542 = vpop.f32.mrf.mxu0
    %v543 = vadd.f32 %v101, %v542
    %v544 = vpop.f32.mrf.mxu0
    %v545 = vadd.f32 %v105, %v544
    %546 = vmatprep.mubr.bf16.mxu0 0
    %547 = vmatmul.mubr.bf16.gmra.mxu0 %v329
    %v548 = vpop.f32.mrf.mxu0
    %v549 = vadd.f32 %v101, %v548
    %v550 = vpop.f32.mrf.mxu0
    %v551 = vadd.f32 %v105, %v550
    %v552 = vpop.f32.mrf.mxu0
    %v553 = vadd.f32 %v101, %v552
    %v554 = vpop.f32.mrf.mxu0
    %v555 = vadd.f32 %v105, %v554
    %556 = vmatprep.mubr.bf16.mxu0 0
    %557 = vmatmul.mubr.bf16.gmra.mxu0 %v332
    %v558 = vpop.f32.mrf.mxu0
    %v559 = vadd.f32 %v101, %v558
    %v560 = vpop.f32.mrf.mxu0
    %v561 = vadd.f32 %v105, %v560
    %v562 = vpop.f32.mrf.mxu0
    %v563 = vadd.f32 %v101, %v562
    %v564 = vpop.f32.mrf.mxu0
    %v565 = vadd.f32 %v105, %v564
    %566 = vmatprep.mubr.bf16.mxu0 0
    %567 = vmatmul.mubr.bf16.gmra.mxu0 %v335
    %v568 = vpop.f32.mrf.mxu0
    %v569 = vadd.f32 %v101, %v568
    %v570 = vpop.f32.mrf.mxu0
    %v571 = vadd.f32 %v105, %v570
    %v572 = vpop.f32.mrf.mxu0
    %v573 = vadd.f32 %v101, %v572
    %v574 = vpop.f32.mrf.mxu0
    %v575 = vadd.f32 %v105, %v574
    %576 = vmatprep.mubr.bf16.mxu0 0
    %577 = vmatmul.mubr.bf16.gmra.mxu0 %v338
    %v578 = vpop.f32.mrf.mxu0
    %v579 = vadd.f32 %v101, %v578
    %v580 = vpop.f32.mrf.mxu0
    %v581 = vadd.f32 %v105, %v580
    %v582 = vpop.f32.mrf.mxu0
    %v583 = vadd.f32 %v101, %v582
    %v584 = vpop.f32.mrf.mxu0
    %v585 = vadd.f32 %v105, %v584
    %586 = vmatprep.mubr.bf16.mxu0 0
    %587 = vmatmul.mubr.bf16.gmra.mxu0 %v341
    %v588 = vpop.f32.mrf.mxu0
    %v589 = vadd.f32 %v101, %v588
    %v590 = vpop.f32.mrf.mxu0
    %v591 = vadd.f32 %v105, %v590
    %v592 = vpop.f32.mrf.mxu0
    %v593 = vadd.f32 %v101, %v592
    %v594 = vpop.f32.mrf.mxu0
    %v595 = vadd.f32 %v105, %v594
    %596 = vmatprep.mubr.bf16.mxu0 0
    %597 = vmatmul.mubr.bf16.gmra.mxu0 %v344
    %v598 = vpop.f32.mrf.mxu0
    %v599 = vadd.f32 %v101, %v598
    %v600 = vpop.f32.mrf.mxu0
    %v601 = vadd.f32 %v105, %v600
    %v602 = vpop.f32.mrf.mxu0
    %v603 = vadd.f32 %v101, %v602
    %v604 = vpop.f32.mrf.mxu0
    %v605 = vadd.f32 %v105, %v604
    %606 = vmatprep.mubr.bf16.mxu0 0
    %607 = vmatmul.mubr.bf16.gmra.mxu0 %v347
    %v608 = vpop.f32.mrf.mxu0
    %v609 = vadd.f32 %v101, %v608
    %v610 = vpop.f32.mrf.mxu0
    %v611 = vadd.f32 %v105, %v610
    %v612 = vpop.f32.mrf.mxu0
    %v613 = vadd.f32 %v101, %v612
    %v614 = vpop.f32.mrf.mxu0
    %v615 = vadd.f32 %v105, %v614
    %616 = vmatprep.mubr.bf16.mxu0 0
    %617 = vmatmul.mubr.bf16.gmra.mxu0 %v350
    %v618 = vpop.f32.mrf.mxu0
    %v619 = vadd.f32 %v101, %v618
    %v620 = vpop.f32.mrf.mxu0
    %v621 = vadd.f32 %v105, %v620
    %v622 = vpop.f32.mrf.mxu0
    %v623 = vadd.f32 %v101, %v622
    %v624 = vpop.f32.mrf.mxu0
    %v625 = vadd.f32 %v105, %v624
    %626 = vmatprep.mubr.bf16.mxu0 0
    %627 = vmatmul.mubr.bf16.gmra.mxu0 %v353
    %v628 = vpop.f32.mrf.mxu0
    %v629 = vadd.f32 %v101, %v628
    %v630 = vpop.f32.mrf.mxu0
    %v631 = vadd.f32 %v105, %v630
    %v632 = vpop.f32.mrf.mxu0
    %v633 = vadd.f32 %v101, %v632
    %v634 = vpop.f32.mrf.mxu0
    %v635 = vadd.f32 %v105, %v634
    %636 = vmatprep.mubr.bf16.mxu0 0
    %637 = vmatmul.mubr.bf16.gmra.mxu0 %v356
    %v638 = vpop.f32.mrf.mxu0
    %v639 = vadd.f32 %v101, %v638
    %v640 = vpop.f32.mrf.mxu0
    %v641 = vadd.f32 %v105, %v640
    %v642 = vpop.f32.mrf.mxu0
    %v643 = vadd.f32 %v101, %v642
    %v644 = vpop.f32.mrf.mxu0
    %v645 = vadd.f32 %v105, %v644
    %646 = vmatprep.mubr.bf16.mxu0 0
    %647 = vmatmul.mubr.bf16.gmra.mxu0 %v359
    %v648 = vpop.f32.mrf.mxu0
    %v649 = vadd.f32 %v101, %v648
    %v650 = vpop.f32.mrf.mxu0
    %v651 = vadd.f32 %v105, %v650
    %v652 = vpop.f32.mrf.mxu0
    %v653 = vadd.f32 %v101, %v652
    %v654 = vpop.f32.mrf.mxu0
    %v655 = vadd.f32 %v105, %v654
    %656 = vmatprep.mubr.bf16.mxu0 0
    %657 = vmatmul.mubr.bf16.gmra.mxu0 %v362
    %v658 = vpop.f32.mrf.mxu0
    %v659 = vadd.f32 %v101, %v658
    %v660 = vpop.f32.mrf.mxu0
    %v661 = vadd.f32 %v105, %v660
    %v662 = vpop.f32.mrf.mxu0
    %v663 = vadd.f32 %v101, %v662
    %v664 = vpop.f32.mrf.mxu0
    %v665 = vadd.f32 %v105, %v664
    %666 = vmatprep.mubr.bf16.mxu0 0
    %667 = vmatmul.mubr.bf16.gmra.mxu0 %v365
    %v668 = vpop.f32.mrf.mxu0
    %v669 = vadd.f32 %v101, %v668
    %v670 = vpop.f32.mrf.mxu0
    %v671 = vadd.f32 %v105, %v670
    %v672 = vpop.f32.mrf.mxu0
    %v673 = vadd.f32 %v101, %v672
    %v674 = vpop.f32.mrf.mxu0
    %v675 = vadd.f32 %v105, %v674
    %676 = vmatprep.mubr.bf16.mxu0 0
    %677 = vmatmul.mubr.bf16.gmra.mxu0 %v368
    %v678 = vpop.f32.mrf.mxu0
    %v679 = vadd.f32 %v101, %v678
    %v680 = vpop.f32.mrf.mxu0
    %v681 = vadd.f32 %v105, %v680
    %v682 = vpop.f32.mrf.mxu0
    %v683 = vadd.f32 %v101, %v682
    %v684 = vpop.f32.mrf.mxu0
    %v685 = vadd.f32 %v105, %v684
    %686 = vmatprep.mubr.bf16.mxu0 0
    %687 = vmatmul.mubr.bf16.gmra.mxu0 %v371
    %v688 = vpop.f32.mrf.mxu0
    %v689 = vadd.f32 %v101, %v688
    %v690 = vpop.f32.mrf.mxu0
    %v691 = vadd.f32 %v105, %v690
    %v692 = vpop.f32.mrf.mxu0
    %v693 = vadd.f32 %v101, %v692
    %v694 = vpop.f32.mrf.mxu0
    %v695 = vadd.f32 %v105, %v694
    %696 = vmatprep.mubr.bf16.mxu0 0
    %697 = vmatmul.mubr.bf16.gmra.mxu0 %v374
    %v698 = vpop.f32.mrf.mxu0
    %v699 = vadd.f32 %v101, %v698
    %v700 = vpop.f32.mrf.mxu0
    %v701 = vadd.f32 %v105, %v700
    %v702 = vpop.f32.mrf.mxu0
    %v703 = vadd.f32 %v101, %v702
    %v704 = vpop.f32.mrf.mxu0
    %v705 = vadd.f32 %v105, %v704
    %706 = vmatprep.mubr.bf16.mxu0 0
    %707 = vmatmul.mubr.bf16.gmra.mxu0 %v377
    %v708 = vpop.f32.mrf.mxu0
    %v709 = vadd.f32 %v101, %v708
    %v710 = vpop.f32.mrf.mxu0
    %v711 = vadd.f32 %v105, %v710
    %v712 = vpop.f32.mrf.mxu0
    %v713 = vadd.f32 %v101, %v712
    %v714 = vpop.f32.mrf.mxu0
    %v715 = vadd.f32 %v105, %v714
    %716 = vmatprep.mubr.bf16.mxu0 0
    %717 = vmatmul.mubr.bf16.gmra.mxu0 %v380
    %v718 = vpop.f32.mrf.mxu0
    %v719 = vadd.f32 %v101, %v718
    %v720 = vpop.f32.mrf.mxu0
    %v721 = vadd.f32 %v105, %v720
    %v722 = vpop.f32.mrf.mxu0
    %v723 = vadd.f32 %v101, %v722
    %v724 = vpop.f32.mrf.mxu0
    %v725 = vadd.f32 %v105, %v724
    %726 = vmatprep.mubr.bf16.mxu0 0
    %727 = vmatmul.mubr.bf16.gmra.mxu0 %v383
    %v728 = vpop.f32.mrf.mxu0
    %v729 = vadd.f32 %v101, %v728
    %v730 = vpop.f32.mrf.mxu0
    %v731 = vadd.f32 %v105, %v730
    %v732 = vpop.f32.mrf.mxu0
    %v733 = vadd.f32 %v101, %v732
    %v734 = vpop.f32.mrf.mxu0
    %v735 = vadd.f32 %v105, %v734
    %736 = vmatprep.mubr.bf16.mxu0 0
    %737 = vmatmul.mubr.bf16.gmra.mxu0 %v386
    %v738 = vpop.f32.mrf.mxu0
    %v739 = vadd.f32 %v101, %v738
    %v740 = vpop.f32.mrf.mxu0
    %v741 = vadd.f32 %v105, %v740
    %v742 = vpop.f32.mrf.mxu0
    %v743 = vadd.f32 %v101, %v742
    %v744 = vpop.f32.mrf.mxu0
    %v745 = vadd.f32 %v105, %v744
    %746 = vmatprep.mubr.bf16.mxu0 0
    %747 = vmatmul.mubr.bf16.gmra.mxu0 %v389
    %v748 = vpop.f32.mrf.mxu0
    %v749 = vadd.f32 %v101, %v748
    %v750 = vpop.f32.mrf.mxu0
    %v751 = vadd.f32 %v105, %v750
    %v752 = vpop.f32.mrf.mxu0
    %v753 = vadd.f32 %v101, %v752
    %v754 = vpop.f32.mrf.mxu0
    %v755 = vadd.f32 %v105, %v754
    %756 = vdwg.mxu0
    %757 = vmatprep.subr.bf16.mxu0 0
    %758 = vmatpush1.bf16.msra.mxu0 0
    %759 = vmatprep.subr.bf16.mxu0 0
    %760 = vmatpush1.bf16.msra.mxu0 0
    %761 = vmatprep.subr.bf16.mxu0 0
    %762 = vmatpush1.bf16.msra.mxu0 0
    %763 = vmatprep.subr.bf16.mxu0 0
    %764 = vmatpush1.bf16.msra.mxu0 0
    %765 = vmatprep.subr.bf16.mxu0 0
    %766 = vmatpush1.bf16.msra.mxu0 0
    %767 = vmatprep.subr.bf16.mxu0 0
    %768 = vmatpush1.bf16.msra.mxu0 0
    %769 = vmatprep.subr.bf16.mxu0 0
    %770 = vmatpush1.bf16.msra.mxu0 0
    %771 = vmatprep.subr.bf16.mxu0 %v402
    %772 = vmatpush1.bf16.msra.mxu0 %v399
    %773 = vmatprep.subr.bf16.mxu0 0
    %774 = vmatpush2.bf16.msra.mxu0 0
    %775 = vmatprep.subr.bf16.mxu0 0
    %776 = vmatpush2.bf16.msra.mxu0 0
    %777 = vmatprep.subr.bf16.mxu0 0
    %778 = vmatpush2.bf16.msra.mxu0 0
    %779 = vmatprep.subr.bf16.mxu0 0
    %780 = vmatpush2.bf16.msra.mxu0 0
    %781 = vmatprep.subr.bf16.mxu0 0
    %782 = vmatpush2.bf16.msra.mxu0 0
    %783 = vmatprep.subr.bf16.mxu0 0
    %784 = vmatpush2.bf16.msra.mxu0 0
    %785 = vmatprep.subr.bf16.mxu0 0
    %786 = vmatpush2.bf16.msra.mxu0 0
    %787 = vmatprep.subr.bf16.mxu0 0
    %788 = vmatpush2.bf16.msra.mxu0 0
    %789 = vmatprep.mubr.bf16.mxu0 0
    %790 = vmatmul.mubr.bf16.gmra.mxu0 %v296
    %v791 = vpop.f32.mrf.mxu0
    %v792 = vadd.f32 %v109, %v791
    %v793 = vpop.f32.mrf.mxu0
    %v794 = vadd.f32 %v113, %v793
    %v795 = vpop.f32.mrf.mxu0
    %v796 = vadd.f32 %v109, %v795
    %v797 = vpop.f32.mrf.mxu0
    %v798 = vadd.f32 %v113, %v797
    %799 = vmatprep.mubr.bf16.mxu0 0
    %800 = vmatmul.mubr.bf16.gmra.mxu0 %v299
    %v801 = vpop.f32.mrf.mxu0
    %v802 = vadd.f32 %v109, %v801
    %v803 = vpop.f32.mrf.mxu0
    %v804 = vadd.f32 %v113, %v803
    %v805 = vpop.f32.mrf.mxu0
    %v806 = vadd.f32 %v109, %v805
    %v807 = vpop.f32.mrf.mxu0
    %v808 = vadd.f32 %v113, %v807
    %809 = vmatprep.mubr.bf16.mxu0 0
    %810 = vmatmul.mubr.bf16.gmra.mxu0 %v302
    %v811 = vpop.f32.mrf.mxu0
    %v812 = vadd.f32 %v109, %v811
    %v813 = vpop.f32.mrf.mxu0
    %v814 = vadd.f32 %v113, %v813
    %v815 = vpop.f32.mrf.mxu0
    %v816 = vadd.f32 %v109, %v815
    %v817 = vpop.f32.mrf.mxu0
    %v818 = vadd.f32 %v113, %v817
    %819 = vmatprep.mubr.bf16.mxu0 0
    %820 = vmatmul.mubr.bf16.gmra.mxu0 %v305
    %v821 = vpop.f32.mrf.mxu0
    %v822 = vadd.f32 %v109, %v821
    %v823 = vpop.f32.mrf.mxu0
    %v824 = vadd.f32 %v113, %v823
    %v825 = vpop.f32.mrf.mxu0
    %v826 = vadd.f32 %v109, %v825
    %v827 = vpop.f32.mrf.mxu0
    %v828 = vadd.f32 %v113, %v827
    %829 = vmatprep.mubr.bf16.mxu0 0
    %830 = vmatmul.mubr.bf16.gmra.mxu0 %v308
    %v831 = vpop.f32.mrf.mxu0
    %v832 = vadd.f32 %v109, %v831
    %v833 = vpop.f32.mrf.mxu0
    %v834 = vadd.f32 %v113, %v833
    %v835 = vpop.f32.mrf.mxu0
    %v836 = vadd.f32 %v109, %v835
    %v837 = vpop.f32.mrf.mxu0
    %v838 = vadd.f32 %v113, %v837
    %839 = vmatprep.mubr.bf16.mxu0 0
    %840 = vmatmul.mubr.bf16.gmra.mxu0 %v311
    %v841 = vpop.f32.mrf.mxu0
    %v842 = vadd.f32 %v109, %v841
    %v843 = vpop.f32.mrf.mxu0
    %v844 = vadd.f32 %v113, %v843
    %v845 = vpop.f32.mrf.mxu0
    %v846 = vadd.f32 %v109, %v845
    %v847 = vpop.f32.mrf.mxu0
    %v848 = vadd.f32 %v113, %v847
    %849 = vmatprep.mubr.bf16.mxu0 0
    %850 = vmatmul.mubr.bf16.gmra.mxu0 %v314
    %v851 = vpop.f32.mrf.mxu0
    %v852 = vadd.f32 %v109, %v851
    %v853 = vpop.f32.mrf.mxu0
    %v854 = vadd.f32 %v113, %v853
    %v855 = vpop.f32.mrf.mxu0
    %v856 = vadd.f32 %v109, %v855
    %v857 = vpop.f32.mrf.mxu0
    %v858 = vadd.f32 %v113, %v857
    %859 = vmatprep.mubr.bf16.mxu0 0
    %860 = vmatmul.mubr.bf16.gmra.mxu0 %v317
    %v861 = vpop.f32.mrf.mxu0
    %v862 = vadd.f32 %v109, %v861
    %v863 = vpop.f32.mrf.mxu0
    %v864 = vadd.f32 %v113, %v863
    %v865 = vpop.f32.mrf.mxu0
    %v866 = vadd.f32 %v109, %v865
    %v867 = vpop.f32.mrf.mxu0
    %v868 = vadd.f32 %v113, %v867
    %869 = vmatprep.mubr.bf16.mxu0 0
    %870 = vmatmul.mubr.bf16.gmra.mxu0 %v320
    %v871 = vpop.f32.mrf.mxu0
    %v872 = vadd.f32 %v109, %v871
    %v873 = vpop.f32.mrf.mxu0
    %v874 = vadd.f32 %v113, %v873
    %v875 = vpop.f32.mrf.mxu0
    %v876 = vadd.f32 %v109, %v875
    %v877 = vpop.f32.mrf.mxu0
    %v878 = vadd.f32 %v113, %v877
    %879 = vmatprep.mubr.bf16.mxu0 0
    %880 = vmatmul.mubr.bf16.gmra.mxu0 %v323
    %v881 = vpop.f32.mrf.mxu0
    %v882 = vadd.f32 %v109, %v881
    %v883 = vpop.f32.mrf.mxu0
    %v884 = vadd.f32 %v113, %v883
    %v885 = vpop.f32.mrf.mxu0
    %v886 = vadd.f32 %v109, %v885
    %v887 = vpop.f32.mrf.mxu0
    %v888 = vadd.f32 %v113, %v887
    %889 = vmatprep.mubr.bf16.mxu0 0
    %890 = vmatmul.mubr.bf16.gmra.mxu0 %v326
    %v891 = vpop.f32.mrf.mxu0
    %v892 = vadd.f32 %v109, %v891
    %v893 = vpop.f32.mrf.mxu0
    %v894 = vadd.f32 %v113, %v893
    %v895 = vpop.f32.mrf.mxu0
    %v896 = vadd.f32 %v109, %v895
    %v897 = vpop.f32.mrf.mxu0
    %v898 = vadd.f32 %v113, %v897
    %899 = vmatprep.mubr.bf16.mxu0 0
    %900 = vmatmul.mubr.bf16.gmra.mxu0 %v329
    %v901 = vpop.f32.mrf.mxu0
    %v902 = vadd.f32 %v109, %v901
    %v903 = vpop.f32.mrf.mxu0
    %v904 = vadd.f32 %v113, %v903
    %v905 = vpop.f32.mrf.mxu0
    %v906 = vadd.f32 %v109, %v905
    %v907 = vpop.f32.mrf.mxu0
    %v908 = vadd.f32 %v113, %v907
    %909 = vmatprep.mubr.bf16.mxu0 0
    %910 = vmatmul.mubr.bf16.gmra.mxu0 %v332
    %v911 = vpop.f32.mrf.mxu0
    %v912 = vadd.f32 %v109, %v911
    %v913 = vpop.f32.mrf.mxu0
    %v914 = vadd.f32 %v113, %v913
    %v915 = vpop.f32.mrf.mxu0
    %v916 = vadd.f32 %v109, %v915
    %v917 = vpop.f32.mrf.mxu0
    %v918 = vadd.f32 %v113, %v917
    %919 = vmatprep.mubr.bf16.mxu0 0
    %920 = vmatmul.mubr.bf16.gmra.mxu0 %v335
    %v921 = vpop.f32.mrf.mxu0
    %v922 = vadd.f32 %v109, %v921
    %v923 = vpop.f32.mrf.mxu0
    %v924 = vadd.f32 %v113, %v923
    %v925 = vpop.f32.mrf.mxu0
    %v926 = vadd.f32 %v109, %v925
    %v927 = vpop.f32.mrf.mxu0
    %v928 = vadd.f32 %v113, %v927
    %929 = vmatprep.mubr.bf16.mxu0 0
    %930 = vmatmul.mubr.bf16.gmra.mxu0 %v338
    %v931 = vpop.f32.mrf.mxu0
    %v932 = vadd.f32 %v109, %v931
    %v933 = vpop.f32.mrf.mxu0
    %v934 = vadd.f32 %v113, %v933
    %v935 = vpop.f32.mrf.mxu0
    %v936 = vadd.f32 %v109, %v935
    %v937 = vpop.f32.mrf.mxu0
    %v938 = vadd.f32 %v113, %v937
    %939 = vmatprep.mubr.bf16.mxu0 0
    %940 = vmatmul.mubr.bf16.gmra.mxu0 %v341
    %v941 = vpop.f32.mrf.mxu0
    %v942 = vadd.f32 %v109, %v941
    %v943 = vpop.f32.mrf.mxu0
    %v944 = vadd.f32 %v113, %v943
    %v945 = vpop.f32.mrf.mxu0
    %v946 = vadd.f32 %v109, %v945
    %v947 = vpop.f32.mrf.mxu0
    %v948 = vadd.f32 %v113, %v947
    %949 = vmatprep.mubr.bf16.mxu0 0
    %950 = vmatmul.mubr.bf16.gmra.mxu0 %v344
    %v951 = vpop.f32.mrf.mxu0
    %v952 = vadd.f32 %v109, %v951
    %v953 = vpop.f32.mrf.mxu0
    %v954 = vadd.f32 %v113, %v953
    %v955 = vpop.f32.mrf.mxu0
    %v956 = vadd.f32 %v109, %v955
    %v957 = vpop.f32.mrf.mxu0
    %v958 = vadd.f32 %v113, %v957
    %959 = vmatprep.mubr.bf16.mxu0 0
    %960 = vmatmul.mubr.bf16.gmra.mxu0 %v347
    %v961 = vpop.f32.mrf.mxu0
    %v962 = vadd.f32 %v109, %v961
    %v963 = vpop.f32.mrf.mxu0
    %v964 = vadd.f32 %v113, %v963
    %v965 = vpop.f32.mrf.mxu0
    %v966 = vadd.f32 %v109, %v965
    %v967 = vpop.f32.mrf.mxu0
    %v968 = vadd.f32 %v113, %v967
    %969 = vmatprep.mubr.bf16.mxu0 0
    %970 = vmatmul.mubr.bf16.gmra.mxu0 %v350
    %v971 = vpop.f32.mrf.mxu0
    %v972 = vadd.f32 %v109, %v971
    %v973 = vpop.f32.mrf.mxu0
    %v974 = vadd.f32 %v113, %v973
    %v975 = vpop.f32.mrf.mxu0
    %v976 = vadd.f32 %v109, %v975
    %v977 = vpop.f32.mrf.mxu0
    %v978 = vadd.f32 %v113, %v977
    %979 = vmatprep.mubr.bf16.mxu0 0
    %980 = vmatmul.mubr.bf16.gmra.mxu0 %v353
    %v981 = vpop.f32.mrf.mxu0
    %v982 = vadd.f32 %v109, %v981
    %v983 = vpop.f32.mrf.mxu0
    %v984 = vadd.f32 %v113, %v983
    %v985 = vpop.f32.mrf.mxu0
    %v986 = vadd.f32 %v109, %v985
    %v987 = vpop.f32.mrf.mxu0
    %v988 = vadd.f32 %v113, %v987
    %989 = vmatprep.mubr.bf16.mxu0 0
    %990 = vmatmul.mubr.bf16.gmra.mxu0 %v356
    %v991 = vpop.f32.mrf.mxu0
    %v992 = vadd.f32 %v109, %v991
    %v993 = vpop.f32.mrf.mxu0
    %v994 = vadd.f32 %v113, %v993
    %v995 = vpop.f32.mrf.mxu0
    %v996 = vadd.f32 %v109, %v995
    %v997 = vpop.f32.mrf.mxu0
    %v998 = vadd.f32 %v113, %v997
    %999 = vmatprep.mubr.bf16.mxu0 0
    %1000 = vmatmul.mubr.bf16.gmra.mxu0 %v359
    %v1001 = vpop.f32.mrf.mxu0
    %v1002 = vadd.f32 %v109, %v1001
    %v1003 = vpop.f32.mrf.mxu0
    %v1004 = vadd.f32 %v113, %v1003
    %v1005 = vpop.f32.mrf.mxu0
    %v1006 = vadd.f32 %v109, %v1005
    %v1007 = vpop.f32.mrf.mxu0
    %v1008 = vadd.f32 %v113, %v1007
    %1009 = vmatprep.mubr.bf16.mxu0 0
    %1010 = vmatmul.mubr.bf16.gmra.mxu0 %v362
    %v1011 = vpop.f32.mrf.mxu0
    %v1012 = vadd.f32 %v109, %v1011
    %v1013 = vpop.f32.mrf.mxu0
    %v1014 = vadd.f32 %v113, %v1013
    %v1015 = vpop.f32.mrf.mxu0
    %v1016 = vadd.f32 %v109, %v1015
    %v1017 = vpop.f32.mrf.mxu0
    %v1018 = vadd.f32 %v113, %v1017
    %1019 = vmatprep.mubr.bf16.mxu0 0
    %1020 = vmatmul.mubr.bf16.gmra.mxu0 %v365
    %v1021 = vpop.f32.mrf.mxu0
    %v1022 = vadd.f32 %v109, %v1021
    %v1023 = vpop.f32.mrf.mxu0
    %v1024 = vadd.f32 %v113, %v1023
    %v1025 = vpop.f32.mrf.mxu0
    %v1026 = vadd.f32 %v109, %v1025
    %v1027 = vpop.f32.mrf.mxu0
    %v1028 = vadd.f32 %v113, %v1027
    %1029 = vmatprep.mubr.bf16.mxu0 0
    %1030 = vmatmul.mubr.bf16.gmra.mxu0 %v368
    %v1031 = vpop.f32.mrf.mxu0
    %v1032 = vadd.f32 %v109, %v1031
    %v1033 = vpop.f32.mrf.mxu0
    %v1034 = vadd.f32 %v113, %v1033
    %v1035 = vpop.f32.mrf.mxu0
    %v1036 = vadd.f32 %v109, %v1035
    %v1037 = vpop.f32.mrf.mxu0
    %v1038 = vadd.f32 %v113, %v1037
    %1039 = vmatprep.mubr.bf16.mxu0 0
    %1040 = vmatmul.mubr.bf16.gmra.mxu0 %v371
    %v1041 = vpop.f32.mrf.mxu0
    %v1042 = vadd.f32 %v109, %v1041
    %v1043 = vpop.f32.mrf.mxu0
    %v1044 = vadd.f32 %v113, %v1043
    %v1045 = vpop.f32.mrf.mxu0
    %v1046 = vadd.f32 %v109, %v1045
    %v1047 = vpop.f32.mrf.mxu0
    %v1048 = vadd.f32 %v113, %v1047
    %1049 = vmatprep.mubr.bf16.mxu0 0
    %1050 = vmatmul.mubr.bf16.gmra.mxu0 %v374
    %v1051 = vpop.f32.mrf.mxu0
    %v1052 = vadd.f32 %v109, %v1051
    %v1053 = vpop.f32.mrf.mxu0
    %v1054 = vadd.f32 %v113, %v1053
    %v1055 = vpop.f32.mrf.mxu0
    %v1056 = vadd.f32 %v109, %v1055
    %v1057 = vpop.f32.mrf.mxu0
    %v1058 = vadd.f32 %v113, %v1057
    %1059 = vmatprep.mubr.bf16.mxu0 0
    %1060 = vmatmul.mubr.bf16.gmra.mxu0 %v377
    %v1061 = vpop.f32.mrf.mxu0
    %v1062 = vadd.f32 %v109, %v1061
    %v1063 = vpop.f32.mrf.mxu0
    %v1064 = vadd.f32 %v113, %v1063
    %v1065 = vpop.f32.mrf.mxu0
    %v1066 = vadd.f32 %v109, %v1065
    %v1067 = vpop.f32.mrf.mxu0
    %v1068 = vadd.f32 %v113, %v1067
    %1069 = vmatprep.mubr.bf16.mxu0 0
    %1070 = vmatmul.mubr.bf16.gmra.mxu0 %v380
    %v1071 = vpop.f32.mrf.mxu0
    %v1072 = vadd.f32 %v109, %v1071
    %v1073 = vpop.f32.mrf.mxu0
    %v1074 = vadd.f32 %v113, %v1073
    %v1075 = vpop.f32.mrf.mxu0
    %v1076 = vadd.f32 %v109, %v1075
    %v1077 = vpop.f32.mrf.mxu0
    %v1078 = vadd.f32 %v113, %v1077
    %1079 = vmatprep.mubr.bf16.mxu0 0
    %1080 = vmatmul.mubr.bf16.gmra.mxu0 %v383
    %v1081 = vpop.f32.mrf.mxu0
    %v1082 = vadd.f32 %v109, %v1081
    %v1083 = vpop.f32.mrf.mxu0
    %v1084 = vadd.f32 %v113, %v1083
    %v1085 = vpop.f32.mrf.mxu0
    %v1086 = vadd.f32 %v109, %v1085
    %v1087 = vpop.f32.mrf.mxu0
    %v1088 = vadd.f32 %v113, %v1087
    %1089 = vmatprep.mubr.bf16.mxu0 0
    %1090 = vmatmul.mubr.bf16.gmra.mxu0 %v386
    %v1091 = vpop.f32.mrf.mxu0
    %v1092 = vadd.f32 %v109, %v1091
    %v1093 = vpop.f32.mrf.mxu0
    %v1094 = vadd.f32 %v113, %v1093
    %v1095 = vpop.f32.mrf.mxu0
    %v1096 = vadd.f32 %v109, %v1095
    %v1097 = vpop.f32.mrf.mxu0
    %v1098 = vadd.f32 %v113, %v1097
    %1099 = vmatprep.mubr.bf16.mxu0 0
    %1100 = vmatmul.mubr.bf16.gmra.mxu0 %v389
    %v1101 = vpop.f32.mrf.mxu0
    %v1102 = vadd.f32 %v109, %v1101
    %v1103 = vpop.f32.mrf.mxu0
    %v1104 = vadd.f32 %v113, %v1103
    %v1105 = vpop.f32.mrf.mxu0
    %v1106 = vadd.f32 %v109, %v1105
    %v1107 = vpop.f32.mrf.mxu0
    %v1108 = vadd.f32 %v113, %v1107
    %1109 = vdwg.mxu0
    %v1110 = vmax.f32 %v439, 0.0
    %v1111 = vmax.f32 %v441, 0.0
    %v1112 = vmax.f32 %v792, 0.0
    %v1113 = vmax.f32 %v794, 0.0
    %v1114 = vmax.f32 %v443, 0.0
    %v1115 = vmax.f32 %v445, 0.0
    %v1116 = vmax.f32 %v796, 0.0
    %v1117 = vmax.f32 %v798, 0.0
    %v1118 = vmax.f32 %v449, 0.0
    %v1119 = vmax.f32 %v451, 0.0
    %v1120 = vmax.f32 %v802, 0.0
    %v1121 = vmax.f32 %v804, 0.0
    %v1122 = vmax.f32 %v453, 0.0
    %v1123 = vmax.f32 %v455, 0.0
    %v1124 = vmax.f32 %v806, 0.0
    %v1125 = vmax.f32 %v808, 0.0
    %v1126 = vmax.f32 %v459, 0.0
    %v1127 = vmax.f32 %v461, 0.0
    %v1128 = vmax.f32 %v812, 0.0
    %v1129 = vmax.f32 %v814, 0.0
    %v1130 = vmax.f32 %v463, 0.0
    %v1131 = vmax.f32 %v465, 0.0
    %v1132 = vmax.f32 %v816, 0.0
    %v1133 = vmax.f32 %v818, 0.0
    %v1134 = vmax.f32 %v469, 0.0
    %v1135 = vmax.f32 %v471, 0.0
    %v1136 = vmax.f32 %v822, 0.0
    %v1137 = vmax.f32 %v824, 0.0
    %v1138 = vmax.f32 %v473, 0.0
    %v1139 = vmax.f32 %v475, 0.0
    %v1140 = vmax.f32 %v826, 0.0
    %v1141 = vmax.f32 %v828, 0.0
    %v1142 = vmax.f32 %v479, 0.0
    %v1143 = vmax.f32 %v481, 0.0
    %v1144 = vmax.f32 %v832, 0.0
    %v1145 = vmax.f32 %v834, 0.0
    %v1146 = vmax.f32 %v483, 0.0
    %v1147 = vmax.f32 %v485, 0.0
    %v1148 = vmax.f32 %v836, 0.0
    %v1149 = vmax.f32 %v838, 0.0
    %v1150 = vmax.f32 %v489, 0.0
    %v1151 = vmax.f32 %v491, 0.0
    %v1152 = vmax.f32 %v842, 0.0
    %v1153 = vmax.f32 %v844, 0.0
    %v1154 = vmax.f32 %v493, 0.0
    %v1155 = vmax.f32 %v495, 0.0
    %v1156 = vmax.f32 %v846, 0.0
    %v1157 = vmax.f32 %v848, 0.0
    %v1158 = vmax.f32 %v499, 0.0
    %v1159 = vmax.f32 %v501, 0.0
    %v1160 = vmax.f32 %v852, 0.0
    %v1161 = vmax.f32 %v854, 0.0
    %v1162 = vmax.f32 %v503, 0.0
    %v1163 = vmax.f32 %v505, 0.0
    %v1164 = vmax.f32 %v856, 0.0
    %v1165 = vmax.f32 %v858, 0.0
    %v1166 = vmax.f32 %v509, 0.0
    %v1167 = vmax.f32 %v511, 0.0
    %v1168 = vmax.f32 %v862, 0.0
    %v1169 = vmax.f32 %v864, 0.0
    %v1170 = vmax.f32 %v513, 0.0
    %v1171 = vmax.f32 %v515, 0.0
    %v1172 = vmax.f32 %v866, 0.0
    %v1173 = vmax.f32 %v868, 0.0
    %v1174 = vmax.f32 %v519, 0.0
    %v1175 = vmax.f32 %v521, 0.0
    %v1176 = vmax.f32 %v872, 0.0
    %v1177 = vmax.f32 %v874, 0.0
    %v1178 = vmax.f32 %v523, 0.0
    %v1179 = vmax.f32 %v525, 0.0
    %v1180 = vmax.f32 %v876, 0.0
    %v1181 = vmax.f32 %v878, 0.0
    %v1182 = vmax.f32 %v529, 0.0
    %v1183 = vmax.f32 %v531, 0.0
    %v1184 = vmax.f32 %v882, 0.0
    %v1185 = vmax.f32 %v884, 0.0
    %v1186 = vmax.f32 %v533, 0.0
    %v1187 = vmax.f32 %v535, 0.0
    %v1188 = vmax.f32 %v886, 0.0
    %v1189 = vmax.f32 %v888, 0.0
    %v1190 = vmax.f32 %v539, 0.0
    %v1191 = vmax.f32 %v541, 0.0
    %v1192 = vmax.f32 %v892, 0.0
    %v1193 = vmax.f32 %v894, 0.0
    %v1194 = vmax.f32 %v543, 0.0
    %v1195 = vmax.f32 %v545, 0.0
    %v1196 = vmax.f32 %v896, 0.0
    %v1197 = vmax.f32 %v898, 0.0
    %v1198 = vmax.f32 %v549, 0.0
    %v1199 = vmax.f32 %v551, 0.0
    %v1200 = vmax.f32 %v902, 0.0
    %v1201 = vmax.f32 %v904, 0.0
    %v1202 = vmax.f32 %v553, 0.0
    %v1203 = vmax.f32 %v555, 0.0
    %v1204 = vmax.f32 %v906, 0.0
    %v1205 = vmax.f32 %v908, 0.0
    %v1206 = vmax.f32 %v559, 0.0
    %v1207 = vmax.f32 %v561, 0.0
    %v1208 = vmax.f32 %v912, 0.0
    %v1209 = vmax.f32 %v914, 0.0
    %v1210 = vmax.f32 %v563, 0.0
    %v1211 = vmax.f32 %v565, 0.0
    %v1212 = vmax.f32 %v916, 0.0
    %v1213 = vmax.f32 %v918, 0.0
    %v1214 = vmax.f32 %v569, 0.0
    %v1215 = vmax.f32 %v571, 0.0
    %v1216 = vmax.f32 %v922, 0.0
    %v1217 = vmax.f32 %v924, 0.0
    %v1218 = vmax.f32 %v573, 0.0
    %v1219 = vmax.f32 %v575, 0.0
    %v1220 = vmax.f32 %v926, 0.0
    %v1221 = vmax.f32 %v928, 0.0
    %v1222 = vmax.f32 %v579, 0.0
    %v1223 = vmax.f32 %v581, 0.0
    %v1224 = vmax.f32 %v932, 0.0
    %v1225 = vmax.f32 %v934, 0.0
    %v1226 = vmax.f32 %v583, 0.0
    %v1227 = vmax.f32 %v585, 0.0
    %v1228 = vmax.f32 %v936, 0.0
    %v1229 = vmax.f32 %v938, 0.0
    %v1230 = vmax.f32 %v589, 0.0
    %v1231 = vmax.f32 %v591, 0.0
    %v1232 = vmax.f32 %v942, 0.0
    %v1233 = vmax.f32 %v944, 0.0
    %v1234 = vmax.f32 %v593, 0.0
    %v1235 = vmax.f32 %v595, 0.0
    %v1236 = vmax.f32 %v946, 0.0
    %v1237 = vmax.f32 %v948, 0.0
    %v1238 = vmax.f32 %v599, 0.0
    %v1239 = vmax.f32 %v601, 0.0
    %v1240 = vmax.f32 %v952, 0.0
    %v1241 = vmax.f32 %v954, 0.0
    %v1242 = vmax.f32 %v603, 0.0
    %v1243 = vmax.f32 %v605, 0.0
    %v1244 = vmax.f32 %v956, 0.0
    %v1245 = vmax.f32 %v958, 0.0
    %v1246 = vmax.f32 %v609, 0.0
    %v1247 = vmax.f32 %v611, 0.0
    %v1248 = vmax.f32 %v962, 0.0
    %v1249 = vmax.f32 %v964, 0.0
    %v1250 = vmax.f32 %v613, 0.0
    %v1251 = vmax.f32 %v615, 0.0
    %v1252 = vmax.f32 %v966, 0.0
    %v1253 = vmax.f32 %v968, 0.0
    %v1254 = vmax.f32 %v619, 0.0
    %v1255 = vmax.f32 %v621, 0.0
    %v1256 = vmax.f32 %v972, 0.0
    %v1257 = vmax.f32 %v974, 0.0
    %v1258 = vmax.f32 %v623, 0.0
    %v1259 = vmax.f32 %v625, 0.0
    %v1260 = vmax.f32 %v976, 0.0
    %v1261 = vmax.f32 %v978, 0.0
    %v1262 = vmax.f32 %v629, 0.0
    %v1263 = vmax.f32 %v631, 0.0
    %v1264 = vmax.f32 %v982, 0.0
    %v1265 = vmax.f32 %v984, 0.0
    %v1266 = vmax.f32 %v633, 0.0
    %v1267 = vmax.f32 %v635, 0.0
    %v1268 = vmax.f32 %v986, 0.0
    %v1269 = vmax.f32 %v988, 0.0
    %v1270 = vmax.f32 %v639, 0.0
    %v1271 = vmax.f32 %v641, 0.0
    %v1272 = vmax.f32 %v992, 0.0
    %v1273 = vmax.f32 %v994, 0.0
    %v1274 = vmax.f32 %v643, 0.0
    %v1275 = vmax.f32 %v645, 0.0
    %v1276 = vmax.f32 %v996, 0.0
    %v1277 = vmax.f32 %v998, 0.0
    %v1278 = vmax.f32 %v649, 0.0
    %v1279 = vmax.f32 %v651, 0.0
    %v1280 = vmax.f32 %v1002, 0.0
    %v1281 = vmax.f32 %v1004, 0.0
    %v1282 = vmax.f32 %v653, 0.0
    %v1283 = vmax.f32 %v655, 0.0
    %v1284 = vmax.f32 %v1006, 0.0
    %v1285 = vmax.f32 %v1008, 0.0
    %v1286 = vmax.f32 %v659, 0.0
    %v1287 = vmax.f32 %v661, 0.0
    %v1288 = vmax.f32 %v1012, 0.0
    %v1289 = vmax.f32 %v1014, 0.0
    %v1290 = vmax.f32 %v663, 0.0
    %v1291 = vmax.f32 %v665, 0.0
    %v1292 = vmax.f32 %v1016, 0.0
    %v1293 = vmax.f32 %v1018, 0.0
    %v1294 = vmax.f32 %v669, 0.0
    %v1295 = vmax.f32 %v671, 0.0
    %v1296 = vmax.f32 %v1022, 0.0
    %v1297 = vmax.f32 %v1024, 0.0
    %v1298 = vmax.f32 %v673, 0.0
    %v1299 = vmax.f32 %v675, 0.0
    %v1300 = vmax.f32 %v1026, 0.0
    %v1301 = vmax.f32 %v1028, 0.0
    %v1302 = vmax.f32 %v679, 0.0
    %v1303 = vmax.f32 %v681, 0.0
    %v1304 = vmax.f32 %v1032, 0.0
    %v1305 = vmax.f32 %v1034, 0.0
    %v1306 = vmax.f32 %v683, 0.0
    %v1307 = vmax.f32 %v685, 0.0
    %v1308 = vmax.f32 %v1036, 0.0
    %v1309 = vmax.f32 %v1038, 0.0
    %v1310 = vmax.f32 %v689, 0.0
    %v1311 = vmax.f32 %v691, 0.0
    %v1312 = vmax.f32 %v1042, 0.0
    %v1313 = vmax.f32 %v1044, 0.0
    %v1314 = vmax.f32 %v693, 0.0
    %v1315 = vmax.f32 %v695, 0.0
    %v1316 = vmax.f32 %v1046, 0.0
    %v1317 = vmax.f32 %v1048, 0.0
    %v1318 = vmax.f32 %v699, 0.0
    %v1319 = vmax.f32 %v701, 0.0
    %v1320 = vmax.f32 %v1052, 0.0
    %v1321 = vmax.f32 %v1054, 0.0
    %v1322 = vmax.f32 %v703, 0.0
    %v1323 = vmax.f32 %v705, 0.0
    %v1324 = vmax.f32 %v1056, 0.0
    %v1325 = vmax.f32 %v1058, 0.0
    %v1326 = vmax.f32 %v709, 0.0
    %v1327 = vmax.f32 %v711, 0.0
    %v1328 = vmax.f32 %v1062, 0.0
    %v1329 = vmax.f32 %v1064, 0.0
    %v1330 = vmax.f32 %v713, 0.0
    %v1331 = vmax.f32 %v715, 0.0
    %v1332 = vmax.f32 %v1066, 0.0
    %v1333 = vmax.f32 %v1068, 0.0
    %v1334 = vmax.f32 %v719, 0.0
    %v1335 = vmax.f32 %v721, 0.0
    %v1336 = vmax.f32 %v1072, 0.0
    %v1337 = vmax.f32 %v1074, 0.0
    %v1338 = vmax.f32 %v723, 0.0
    %v1339 = vmax.f32 %v725, 0.0
    %v1340 = vmax.f32 %v1076, 0.0
    %v1341 = vmax.f32 %v1078, 0.0
    %v1342 = vmax.f32 %v729, 0.0
    %v1343 = vmax.f32 %v731, 0.0
    %v1344 = vmax.f32 %v1082, 0.0
    %v1345 = vmax.f32 %v1084, 0.0
    %v1346 = vmax.f32 %v733, 0.0
    %v1347 = vmax.f32 %v735, 0.0
    %v1348 = vmax.f32 %v1086, 0.0
    %v1349 = vmax.f32 %v1088, 0.0
    %v1350 = vmax.f32 %v739, 0.0
    %v1351 = vmax.f32 %v741, 0.0
    %v1352 = vmax.f32 %v1092, 0.0
    %v1353 = vmax.f32 %v1094, 0.0
    %v1354 = vmax.f32 %v743, 0.0
    %v1355 = vmax.f32 %v745, 0.0
    %v1356 = vmax.f32 %v1096, 0.0
    %v1357 = vmax.f32 %v1098, 0.0
    %v1358 = vmax.f32 %v749, 0.0
    %v1359 = vmax.f32 %v751, 0.0
    %v1360 = vmax.f32 %v1102, 0.0
    %v1361 = vmax.f32 %v1104, 0.0
    %v1362 = vmax.f32 %v753, 0.0
    %v1363 = vmax.f32 %v755, 0.0
    %v1364 = vmax.f32 %v1106, 0.0
    %v1365 = vmax.f32 %v1108, 0.0
    %v1366 = vpack.c.bf16 %v1114, %v1110
    %v1367 = vpack.c.bf16 %v1115, %v1111
    %v1368 = vpack.c.bf16 %v1116, %v1112
    %v1369 = vpack.c.bf16 %v1117, %v1113
    %v1370 = vpack.c.bf16 %v1122, %v1118
    %v1371 = vpack.c.bf16 %v1123, %v1119
    %v1372 = vpack.c.bf16 %v1124, %v1120
    %v1373 = vpack.c.bf16 %v1125, %v1121
    %v1374 = vpack.c.bf16 %v1130, %v1126
    %v1375 = vpack.c.bf16 %v1131, %v1127
    %v1376 = vpack.c.bf16 %v1132, %v1128
    %v1377 = vpack.c.bf16 %v1133, %v1129
    %v1378 = vpack.c.bf16 %v1138, %v1134
    %v1379 = vpack.c.bf16 %v1139, %v1135
    %v1380 = vpack.c.bf16 %v1140, %v1136
    %v1381 = vpack.c.bf16 %v1141, %v1137
    %v1382 = vpack.c.bf16 %v1146, %v1142
    %v1383 = vpack.c.bf16 %v1147, %v1143
    %v1384 = vpack.c.bf16 %v1148, %v1144
    %v1385 = vpack.c.bf16 %v1149, %v1145
    %v1386 = vpack.c.bf16 %v1154, %v1150
    %v1387 = vpack.c.bf16 %v1155, %v1151
    %v1388 = vpack.c.bf16 %v1156, %v1152
    %v1389 = vpack.c.bf16 %v1157, %v1153
    %v1390 = vpack.c.bf16 %v1162, %v1158
    %v1391 = vpack.c.bf16 %v1163, %v1159
    %v1392 = vpack.c.bf16 %v1164, %v1160
    %v1393 = vpack.c.bf16 %v1165, %v1161
    %v1394 = vpack.c.bf16 %v1170, %v1166
    %v1395 = vpack.c.bf16 %v1171, %v1167
    %v1396 = vpack.c.bf16 %v1172, %v1168
    %v1397 = vpack.c.bf16 %v1173, %v1169
    %v1398 = vpack.c.bf16 %v1178, %v1174
    %v1399 = vpack.c.bf16 %v1179, %v1175
    %v1400 = vpack.c.bf16 %v1180, %v1176
    %v1401 = vpack.c.bf16 %v1181, %v1177
    %v1402 = vpack.c.bf16 %v1186, %v1182
    %v1403 = vpack.c.bf16 %v1187, %v1183
    %v1404 = vpack.c.bf16 %v1188, %v1184
    %v1405 = vpack.c.bf16 %v1189, %v1185
    %v1406 = vpack.c.bf16 %v1194, %v1190
    %v1407 = vpack.c.bf16 %v1195, %v1191
    %v1408 = vpack.c.bf16 %v1196, %v1192
    %v1409 = vpack.c.bf16 %v1197, %v1193
    %v1410 = vpack.c.bf16 %v1202, %v1198
    %v1411 = vpack.c.bf16 %v1203, %v1199
    %v1412 = vpack.c.bf16 %v1204, %v1200
    %v1413 = vpack.c.bf16 %v1205, %v1201
    %v1414 = vpack.c.bf16 %v1210, %v1206
    %v1415 = vpack.c.bf16 %v1211, %v1207
    %v1416 = vpack.c.bf16 %v1212, %v1208
    %v1417 = vpack.c.bf16 %v1213, %v1209
    %v1418 = vpack.c.bf16 %v1218, %v1214
    %v1419 = vpack.c.bf16 %v1219, %v1215
    %v1420 = vpack.c.bf16 %v1220, %v1216
    %v1421 = vpack.c.bf16 %v1221, %v1217
    %v1422 = vpack.c.bf16 %v1226, %v1222
    %v1423 = vpack.c.bf16 %v1227, %v1223
    %v1424 = vpack.c.bf16 %v1228, %v1224
    %v1425 = vpack.c.bf16 %v1229, %v1225
    %v1426 = vpack.c.bf16 %v1234, %v1230
    %v1427 = vpack.c.bf16 %v1235, %v1231
    %v1428 = vpack.c.bf16 %v1236, %v1232
    %v1429 = vpack.c.bf16 %v1237, %v1233
    %v1430 = vpack.c.bf16 %v1242, %v1238
    %v1431 = vpack.c.bf16 %v1243, %v1239
    %v1432 = vpack.c.bf16 %v1244, %v1240
    %v1433 = vpack.c.bf16 %v1245, %v1241
    %v1434 = vpack.c.bf16 %v1250, %v1246
    %v1435 = vpack.c.bf16 %v1251, %v1247
    %v1436 = vpack.c.bf16 %v1252, %v1248
    %v1437 = vpack.c.bf16 %v1253, %v1249
    %v1438 = vpack.c.bf16 %v1258, %v1254
    %v1439 = vpack.c.bf16 %v1259, %v1255
    %v1440 = vpack.c.bf16 %v1260, %v1256
    %v1441 = vpack.c.bf16 %v1261, %v1257
    %v1442 = vpack.c.bf16 %v1266, %v1262
    %v1443 = vpack.c.bf16 %v1267, %v1263
    %v1444 = vpack.c.bf16 %v1268, %v1264
    %v1445 = vpack.c.bf16 %v1269, %v1265
    %v1446 = vpack.c.bf16 %v1274, %v1270
    %v1447 = vpack.c.bf16 %v1275, %v1271
    %v1448 = vpack.c.bf16 %v1276, %v1272
    %v1449 = vpack.c.bf16 %v1277, %v1273
    %v1450 = vpack.c.bf16 %v1282, %v1278
    %v1451 = vpack.c.bf16 %v1283, %v1279
    %v1452 = vpack.c.bf16 %v1284, %v1280
    %v1453 = vpack.c.bf16 %v1285, %v1281
    %v1454 = vpack.c.bf16 %v1290, %v1286
    %v1455 = vpack.c.bf16 %v1291, %v1287
    %v1456 = vpack.c.bf16 %v1292, %v1288
    %v1457 = vpack.c.bf16 %v1293, %v1289
    %v1458 = vpack.c.bf16 %v1298, %v1294
    %v1459 = vpack.c.bf16 %v1299, %v1295
    %v1460 = vpack.c.bf16 %v1300, %v1296
    %v1461 = vpack.c.bf16 %v1301, %v1297
    %v1462 = vpack.c.bf16 %v1306, %v1302
    %v1463 = vpack.c.bf16 %v1307, %v1303
    %v1464 = vpack.c.bf16 %v1308, %v1304
    %v1465 = vpack.c.bf16 %v1309, %v1305
    %v1466 = vpack.c.bf16 %v1314, %v1310
    %v1467 = vpack.c.bf16 %v1315, %v1311
    %v1468 = vpack.c.bf16 %v1316, %v1312
    %v1469 = vpack.c.bf16 %v1317, %v1313
    %v1470 = vpack.c.bf16 %v1322, %v1318
    %v1471 = vpack.c.bf16 %v1323, %v1319
    %v1472 = vpack.c.bf16 %v1324, %v1320
    %v1473 = vpack.c.bf16 %v1325, %v1321
    %v1474 = vpack.c.bf16 %v1330, %v1326
    %v1475 = vpack.c.bf16 %v1331, %v1327
    %v1476 = vpack.c.bf16 %v1332, %v1328
    %v1477 = vpack.c.bf16 %v1333, %v1329
    %v1478 = vpack.c.bf16 %v1338, %v1334
    %v1479 = vpack.c.bf16 %v1339, %v1335
    %v1480 = vpack.c.bf16 %v1340, %v1336
    %v1481 = vpack.c.bf16 %v1341, %v1337
    %v1482 = vpack.c.bf16 %v1346, %v1342
    %v1483 = vpack.c.bf16 %v1347, %v1343
    %v1484 = vpack.c.bf16 %v1348, %v1344
    %v1485 = vpack.c.bf16 %v1349, %v1345
    %v1486 = vpack.c.bf16 %v1354, %v1350
    %v1487 = vpack.c.bf16 %v1355, %v1351
    %v1488 = vpack.c.bf16 %v1356, %v1352
    %v1489 = vpack.c.bf16 %v1357, %v1353
    %v1490 = vpack.c.bf16 %v1362, %v1358
    %v1491 = vpack.c.bf16 %v1363, %v1359
    %v1492 = vpack.c.bf16 %v1364, %v1360
    %v1493 = vpack.c.bf16 %v1365, %v1361
    %v1494 = vld [vmem:[%s3] sm:$0xff]
    %v1495 = vld [vmem:[%s3 + $0x8] sm:$0xff]
    %v1496 = vld [vmem:[%s3 + $0x10] sm:$0xff]
    %v1497 = vld [vmem:[%s3 + $0x18] sm:$0xff]
    %v1498 = vld [vmem:[%s3 + $0x20] sm:$0xff]
    %v1499 = vld [vmem:[%s3 + $0x28] sm:$0xff]
    %v1500 = vld [vmem:[%s3 + $0x30] sm:$0xff]
    %v1501 = vld [vmem:[%s3 + $0x38] sm:$0xff]
    %v1502 = vld [vmem:[%s3 + $0x40] sm:$0xff]
    %v1503 = vld [vmem:[%s3 + $0x48] sm:$0xff]
    %v1504 = vld [vmem:[%s3 + $0x50] sm:$0xff]
    %v1505 = vld [vmem:[%s3 + $0x58] sm:$0xff]
    %v1506 = vld [vmem:[%s3 + $0x60] sm:$0xff]
    %v1507 = vld [vmem:[%s3 + $0x68] sm:$0xff]
    %v1508 = vld [vmem:[%s3 + $0x70] sm:$0xff]
    %v1509 = vld [vmem:[%s3 + $0x78] sm:$0xff]
    %v1510 = vld [vmem:[%s3 + $0x80] sm:$0xff]
    %v1511 = vld [vmem:[%s3 + $0x88] sm:$0xff]
    %v1512 = vld [vmem:[%s3 + $0x90] sm:$0xff]
    %v1513 = vld [vmem:[%s3 + $0x98] sm:$0xff]
    %v1514 = vld [vmem:[%s3 + $0xa0] sm:$0xff]
    %v1515 = vld [vmem:[%s3 + $0xa8] sm:$0xff]
    %v1516 = vld [vmem:[%s3 + $0xb0] sm:$0xff]
    %v1517 = vld [vmem:[%s3 + $0xb8] sm:$0xff]
    %v1518 = vld [vmem:[%s3 + $0xc0] sm:$0xff]
    %v1519 = vld [vmem:[%s3 + $0xc8] sm:$0xff]
    %v1520 = vld [vmem:[%s3 + $0xd0] sm:$0xff]
    %v1521 = vld [vmem:[%s3 + $0xd8] sm:$0xff]
    %v1522 = vld [vmem:[%s3 + $0xe0] sm:$0xff]
    %v1523 = vld [vmem:[%s3 + $0xe8] sm:$0xff]
    %v1524 = vld [vmem:[%s3 + $0xf0] sm:$0xff]
    %v1525 = vld [vmem:[%s3 + $0xf8] sm:$0xff]
    %v1526 = vld [vmem:[%s3 + $0x100] sm:$0xff]
    %v1527 = vld [vmem:[%s3 + $0x108] sm:$0xff]
    %v1528 = vld [vmem:[%s3 + $0x110] sm:$0xff]
    %v1529 = vld [vmem:[%s3 + $0x118] sm:$0xff]
    %v1530 = vld [vmem:[%s3 + $0x120] sm:$0xff]
    %v1531 = vld [vmem:[%s3 + $0x128] sm:$0xff]
    %v1532 = vld [vmem:[%s3 + $0x130] sm:$0xff]
    %v1533 = vld [vmem:[%s3 + $0x138] sm:$0xff]
    %v1534 = vld [vmem:[%s3 + $0x140] sm:$0xff]
    %v1535 = vld [vmem:[%s3 + $0x148] sm:$0xff]
    %v1536 = vld [vmem:[%s3 + $0x150] sm:$0xff]
    %v1537 = vld [vmem:[%s3 + $0x158] sm:$0xff]
    %v1538 = vld [vmem:[%s3 + $0x160] sm:$0xff]
    %v1539 = vld [vmem:[%s3 + $0x168] sm:$0xff]
    %v1540 = vld [vmem:[%s3 + $0x170] sm:$0xff]
    %v1541 = vld [vmem:[%s3 + $0x178] sm:$0xff]
    %v1542 = vld [vmem:[%s3 + $0x180] sm:$0xff]
    %v1543 = vld [vmem:[%s3 + $0x188] sm:$0xff]
    %v1544 = vld [vmem:[%s3 + $0x190] sm:$0xff]
    %v1545 = vld [vmem:[%s3 + $0x198] sm:$0xff]
    %v1546 = vld [vmem:[%s3 + $0x1a0] sm:$0xff]
    %v1547 = vld [vmem:[%s3 + $0x1a8] sm:$0xff]
    %v1548 = vld [vmem:[%s3 + $0x1b0] sm:$0xff]
    %v1549 = vld [vmem:[%s3 + $0x1b8] sm:$0xff]
    %v1550 = vld [vmem:[%s3 + $0x1c0] sm:$0xff]
    %v1551 = vld [vmem:[%s3 + $0x1c8] sm:$0xff]
    %v1552 = vld [vmem:[%s3 + $0x1d0] sm:$0xff]
    %v1553 = vld [vmem:[%s3 + $0x1d8] sm:$0xff]
    %v1554 = vld [vmem:[%s3 + $0x1e0] sm:$0xff]
    %v1555 = vld [vmem:[%s3 + $0x1e8] sm:$0xff]
    %v1556 = vld [vmem:[%s3 + $0x1f0] sm:$0xff]
    %v1557 = vld [vmem:[%s3 + $0x1f8] sm:$0xff]
    %v1558 = vld [vmem:[%s3 + $0x200] sm:$0xff]
    %v1559 = vld [vmem:[%s3 + $0x208] sm:$0xff]
    %v1560 = vld [vmem:[%s3 + $0x210] sm:$0xff]
    %v1561 = vld [vmem:[%s3 + $0x218] sm:$0xff]
    %v1562 = vld [vmem:[%s3 + $0x220] sm:$0xff]
    %v1563 = vld [vmem:[%s3 + $0x228] sm:$0xff]
    %v1564 = vld [vmem:[%s3 + $0x230] sm:$0xff]
    %v1565 = vld [vmem:[%s3 + $0x238] sm:$0xff]
    %v1566 = vld [vmem:[%s3 + $0x240] sm:$0xff]
    %v1567 = vld [vmem:[%s3 + $0x248] sm:$0xff]
    %v1568 = vld [vmem:[%s3 + $0x250] sm:$0xff]
    %v1569 = vld [vmem:[%s3 + $0x258] sm:$0xff]
    %v1570 = vld [vmem:[%s3 + $0x260] sm:$0xff]
    %v1571 = vld [vmem:[%s3 + $0x268] sm:$0xff]
    %v1572 = vld [vmem:[%s3 + $0x270] sm:$0xff]
    %v1573 = vld [vmem:[%s3 + $0x278] sm:$0xff]
    %v1574 = vld [vmem:[%s3 + $0x280] sm:$0xff]
    %v1575 = vld [vmem:[%s3 + $0x288] sm:$0xff]
    %v1576 = vld [vmem:[%s3 + $0x290] sm:$0xff]
    %v1577 = vld [vmem:[%s3 + $0x298] sm:$0xff]
    %v1578 = vld [vmem:[%s3 + $0x2a0] sm:$0xff]
    %v1579 = vld [vmem:[%s3 + $0x2a8] sm:$0xff]
    %v1580 = vld [vmem:[%s3 + $0x2b0] sm:$0xff]
    %v1581 = vld [vmem:[%s3 + $0x2b8] sm:$0xff]
    %v1582 = vld [vmem:[%s3 + $0x2c0] sm:$0xff]
    %v1583 = vld [vmem:[%s3 + $0x2c8] sm:$0xff]
    %v1584 = vld [vmem:[%s3 + $0x2d0] sm:$0xff]
    %v1585 = vld [vmem:[%s3 + $0x2d8] sm:$0xff]
    %v1586 = vld [vmem:[%s3 + $0x2e0] sm:$0xff]
    %v1587 = vld [vmem:[%s3 + $0x2e8] sm:$0xff]
    %v1588 = vld [vmem:[%s3 + $0x2f0] sm:$0xff]
    %v1589 = vld [vmem:[%s3 + $0x2f8] sm:$0xff]
    %v1590 = vld [vmem:[%s3 + $0x300] sm:$0xff]
    %v1591 = vld [vmem:[%s3 + $0x308] sm:$0xff]
    %v1592 = vld [vmem:[%s3 + $0x310] sm:$0xff]
    %v1593 = vld [vmem:[%s3 + $0x318] sm:$0xff]
    %v1594 = vld [vmem:[%s3 + $0x320] sm:$0xff]
    %v1595 = vld [vmem:[%s3 + $0x328] sm:$0xff]
    %v1596 = vld [vmem:[%s3 + $0x330] sm:$0xff]
    %v1597 = vld [vmem:[%s3 + $0x338] sm:$0xff]
    %v1598 = vld [vmem:[%s3 + $0x340] sm:$0xff]
    %v1599 = vld [vmem:[%s3 + $0x348] sm:$0xff]
    %v1600 = vld [vmem:[%s3 + $0x350] sm:$0xff]
    %v1601 = vld [vmem:[%s3 + $0x358] sm:$0xff]
    %v1602 = vld [vmem:[%s3 + $0x360] sm:$0xff]
    %v1603 = vld [vmem:[%s3 + $0x368] sm:$0xff]
    %v1604 = vld [vmem:[%s3 + $0x370] sm:$0xff]
    %v1605 = vld [vmem:[%s3 + $0x378] sm:$0xff]
    %v1606 = vld [vmem:[%s3 + $0x380] sm:$0xff]
    %v1607 = vld [vmem:[%s3 + $0x388] sm:$0xff]
    %v1608 = vld [vmem:[%s3 + $0x390] sm:$0xff]
    %v1609 = vld [vmem:[%s3 + $0x398] sm:$0xff]
    %v1610 = vld [vmem:[%s3 + $0x3a0] sm:$0xff]
    %v1611 = vld [vmem:[%s3 + $0x3a8] sm:$0xff]
    %v1612 = vld [vmem:[%s3 + $0x3b0] sm:$0xff]
    %v1613 = vld [vmem:[%s3 + $0x3b8] sm:$0xff]
    %v1614 = vld [vmem:[%s3 + $0x3c0] sm:$0xff]
    %v1615 = vld [vmem:[%s3 + $0x3c8] sm:$0xff]
    %v1616 = vld [vmem:[%s3 + $0x3d0] sm:$0xff]
    %v1617 = vld [vmem:[%s3 + $0x3d8] sm:$0xff]
    %v1618 = vld [vmem:[%s3 + $0x3e0] sm:$0xff]
    %v1619 = vld [vmem:[%s3 + $0x3e8] sm:$0xff]
    %v1620 = vld [vmem:[%s3 + $0x3f0] sm:$0xff]
    %v1621 = vld [vmem:[%s3 + $0x3f8] sm:$0xff]
    %v1622 = vld [vmem:[%s4] sm:$0xf]
    %v1624 = vlaneseq
    %v1625 = vshrl.u32 %v1624, 7
    %v1626 = vsub.s32 0, %v1625
    %v1627 = vrot.slane %v1622, %v1626
    %v1628 = vlaneseq
    %v1629 = vshrl.u32 %v1628, 7
    %v1630 = vsub.s32 1, %v1629
    %v1631 = vrot.slane %v1622, %v1630
    %v1632 = vlaneseq
    %v1633 = vshrl.u32 %v1632, 7
    %v1634 = vsub.s32 2, %v1633
    %v1635 = vrot.slane %v1622, %v1634
    %v1636 = vlaneseq
    %v1637 = vshrl.u32 %v1636, 7
    %v1638 = vsub.s32 3, %v1637
    %v1639 = vrot.slane %v1622, %v1638
    %v1772 = vunpack.c.l.b16 %v1494
    %v1773 = vunpack.c.h.b16 %v1494
    %v1774 = vunpack.c.l.b16 %v1495
    %v1775 = vunpack.c.h.b16 %v1495
    %v1776 = vunpack.c.l.b16 %v1496
    %v1777 = vunpack.c.h.b16 %v1496
    %v1778 = vunpack.c.l.b16 %v1497
    %v1779 = vunpack.c.h.b16 %v1497
    %v1780 = vunpack.c.l.b16 %v1498
    %v1781 = vunpack.c.h.b16 %v1498
    %v1782 = vunpack.c.l.b16 %v1499
    %v1783 = vunpack.c.h.b16 %v1499
    %v1784 = vunpack.c.l.b16 %v1500
    %v1785 = vunpack.c.h.b16 %v1500
    %v1786 = vunpack.c.l.b16 %v1501
    %v1787 = vunpack.c.h.b16 %v1501
    %v1788 = vunpack.c.l.b16 %v1502
    %v1789 = vunpack.c.h.b16 %v1502
    %v1790 = vunpack.c.l.b16 %v1503
    %v1791 = vunpack.c.h.b16 %v1503
    %v1792 = vunpack.c.l.b16 %v1504
    %v1793 = vunpack.c.h.b16 %v1504
    %v1794 = vunpack.c.l.b16 %v1505
    %v1795 = vunpack.c.h.b16 %v1505
    %v1796 = vunpack.c.l.b16 %v1506
    %v1797 = vunpack.c.h.b16 %v1506
    %v1798 = vunpack.c.l.b16 %v1507
    %v1799 = vunpack.c.h.b16 %v1507
    %v1800 = vunpack.c.l.b16 %v1508
    %v1801 = vunpack.c.h.b16 %v1508
    %v1802 = vunpack.c.l.b16 %v1509
    %v1803 = vunpack.c.h.b16 %v1509
    %v1804 = vunpack.c.l.b16 %v1510
    %v1805 = vunpack.c.h.b16 %v1510
    %v1806 = vunpack.c.l.b16 %v1511
    %v1807 = vunpack.c.h.b16 %v1511
    %v1808 = vunpack.c.l.b16 %v1512
    %v1809 = vunpack.c.h.b16 %v1512
    %v1810 = vunpack.c.l.b16 %v1513
    %v1811 = vunpack.c.h.b16 %v1513
    %v1812 = vunpack.c.l.b16 %v1514
    %v1813 = vunpack.c.h.b16 %v1514
    %v1814 = vunpack.c.l.b16 %v1515
    %v1815 = vunpack.c.h.b16 %v1515
    %v1816 = vunpack.c.l.b16 %v1516
    %v1817 = vunpack.c.h.b16 %v1516
    %v1818 = vunpack.c.l.b16 %v1517
    %v1819 = vunpack.c.h.b16 %v1517
    %v1820 = vunpack.c.l.b16 %v1518
    %v1821 = vunpack.c.h.b16 %v1518
    %v1822 = vunpack.c.l.b16 %v1519
    %v1823 = vunpack.c.h.b16 %v1519
    %v1824 = vunpack.c.l.b16 %v1520
    %v1825 = vunpack.c.h.b16 %v1520
    %v1826 = vunpack.c.l.b16 %v1521
    %v1827 = vunpack.c.h.b16 %v1521
    %v1828 = vunpack.c.l.b16 %v1522
    %v1829 = vunpack.c.h.b16 %v1522
    %v1830 = vunpack.c.l.b16 %v1523
    %v1831 = vunpack.c.h.b16 %v1523
    %v1832 = vunpack.c.l.b16 %v1524
    %v1833 = vunpack.c.h.b16 %v1524
    %v1834 = vunpack.c.l.b16 %v1525
    %v1835 = vunpack.c.h.b16 %v1525
    %v1836 = vunpack.c.l.b16 %v1526
    %v1837 = vunpack.c.h.b16 %v1526
    %v1838 = vunpack.c.l.b16 %v1527
    %v1839 = vunpack.c.h.b16 %v1527
    %v1840 = vunpack.c.l.b16 %v1528
    %v1841 = vunpack.c.h.b16 %v1528
    %v1842 = vunpack.c.l.b16 %v1529
    %v1843 = vunpack.c.h.b16 %v1529
    %v1844 = vunpack.c.l.b16 %v1530
    %v1845 = vunpack.c.h.b16 %v1530
    %v1846 = vunpack.c.l.b16 %v1531
    %v1847 = vunpack.c.h.b16 %v1531
    %v1848 = vunpack.c.l.b16 %v1532
    %v1849 = vunpack.c.h.b16 %v1532
    %v1850 = vunpack.c.l.b16 %v1533
    %v1851 = vunpack.c.h.b16 %v1533
    %v1852 = vunpack.c.l.b16 %v1534
    %v1853 = vunpack.c.h.b16 %v1534
    %v1854 = vunpack.c.l.b16 %v1535
    %v1855 = vunpack.c.h.b16 %v1535
    %v1856 = vunpack.c.l.b16 %v1536
    %v1857 = vunpack.c.h.b16 %v1536
    %v1858 = vunpack.c.l.b16 %v1537
    %v1859 = vunpack.c.h.b16 %v1537
    %v1860 = vunpack.c.l.b16 %v1538
    %v1861 = vunpack.c.h.b16 %v1538
    %v1862 = vunpack.c.l.b16 %v1539
    %v1863 = vunpack.c.h.b16 %v1539
    %v1864 = vunpack.c.l.b16 %v1540
    %v1865 = vunpack.c.h.b16 %v1540
    %v1866 = vunpack.c.l.b16 %v1541
    %v1867 = vunpack.c.h.b16 %v1541
    %v1868 = vunpack.c.l.b16 %v1542
    %v1869 = vunpack.c.h.b16 %v1542
    %v1870 = vunpack.c.l.b16 %v1543
    %v1871 = vunpack.c.h.b16 %v1543
    %v1872 = vunpack.c.l.b16 %v1544
    %v1873 = vunpack.c.h.b16 %v1544
    %v1874 = vunpack.c.l.b16 %v1545
    %v1875 = vunpack.c.h.b16 %v1545
    %v1876 = vunpack.c.l.b16 %v1546
    %v1877 = vunpack.c.h.b16 %v1546
    %v1878 = vunpack.c.l.b16 %v1547
    %v1879 = vunpack.c.h.b16 %v1547
    %v1880 = vunpack.c.l.b16 %v1548
    %v1881 = vunpack.c.h.b16 %v1548
    %v1882 = vunpack.c.l.b16 %v1549
    %v1883 = vunpack.c.h.b16 %v1549
    %v1884 = vunpack.c.l.b16 %v1550
    %v1885 = vunpack.c.h.b16 %v1550
    %v1886 = vunpack.c.l.b16 %v1551
    %v1887 = vunpack.c.h.b16 %v1551
    %v1888 = vunpack.c.l.b16 %v1552
    %v1889 = vunpack.c.h.b16 %v1552
    %v1890 = vunpack.c.l.b16 %v1553
    %v1891 = vunpack.c.h.b16 %v1553
    %v1892 = vunpack.c.l.b16 %v1554
    %v1893 = vunpack.c.h.b16 %v1554
    %v1894 = vunpack.c.l.b16 %v1555
    %v1895 = vunpack.c.h.b16 %v1555
    %v1896 = vunpack.c.l.b16 %v1556
    %v1897 = vunpack.c.h.b16 %v1556
    %v1898 = vunpack.c.l.b16 %v1557
    %v1899 = vunpack.c.h.b16 %v1557
    %v1900 = vunpack.c.l.b16 %v1558
    %v1901 = vunpack.c.h.b16 %v1558
    %v1902 = vunpack.c.l.b16 %v1559
    %v1903 = vunpack.c.h.b16 %v1559
    %v1904 = vunpack.c.l.b16 %v1560
    %v1905 = vunpack.c.h.b16 %v1560
    %v1906 = vunpack.c.l.b16 %v1561
    %v1907 = vunpack.c.h.b16 %v1561
    %v1908 = vunpack.c.l.b16 %v1562
    %v1909 = vunpack.c.h.b16 %v1562
    %v1910 = vunpack.c.l.b16 %v1563
    %v1911 = vunpack.c.h.b16 %v1563
    %v1912 = vunpack.c.l.b16 %v1564
    %v1913 = vunpack.c.h.b16 %v1564
    %v1914 = vunpack.c.l.b16 %v1565
    %v1915 = vunpack.c.h.b16 %v1565
    %v1916 = vunpack.c.l.b16 %v1566
    %v1917 = vunpack.c.h.b16 %v1566
    %v1918 = vunpack.c.l.b16 %v1567
    %v1919 = vunpack.c.h.b16 %v1567
    %v1920 = vunpack.c.l.b16 %v1568
    %v1921 = vunpack.c.h.b16 %v1568
    %v1922 = vunpack.c.l.b16 %v1569
    %v1923 = vunpack.c.h.b16 %v1569
    %v1924 = vunpack.c.l.b16 %v1570
    %v1925 = vunpack.c.h.b16 %v1570
    %v1926 = vunpack.c.l.b16 %v1571
    %v1927 = vunpack.c.h.b16 %v1571
    %v1928 = vunpack.c.l.b16 %v1572
    %v1929 = vunpack.c.h.b16 %v1572
    %v1930 = vunpack.c.l.b16 %v1573
    %v1931 = vunpack.c.h.b16 %v1573
    %v1932 = vunpack.c.l.b16 %v1574
    %v1933 = vunpack.c.h.b16 %v1574
    %v1934 = vunpack.c.l.b16 %v1575
    %v1935 = vunpack.c.h.b16 %v1575
    %v1936 = vunpack.c.l.b16 %v1576
    %v1937 = vunpack.c.h.b16 %v1576
    %v1938 = vunpack.c.l.b16 %v1577
    %v1939 = vunpack.c.h.b16 %v1577
    %v1940 = vunpack.c.l.b16 %v1578
    %v1941 = vunpack.c.h.b16 %v1578
    %v1942 = vunpack.c.l.b16 %v1579
    %v1943 = vunpack.c.h.b16 %v1579
    %v1944 = vunpack.c.l.b16 %v1580
    %v1945 = vunpack.c.h.b16 %v1580
    %v1946 = vunpack.c.l.b16 %v1581
    %v1947 = vunpack.c.h.b16 %v1581
    %v1948 = vunpack.c.l.b16 %v1582
    %v1949 = vunpack.c.h.b16 %v1582
    %v1950 = vunpack.c.l.b16 %v1583
    %v1951 = vunpack.c.h.b16 %v1583
    %v1952 = vunpack.c.l.b16 %v1584
    %v1953 = vunpack.c.h.b16 %v1584
    %v1954 = vunpack.c.l.b16 %v1585
    %v1955 = vunpack.c.h.b16 %v1585
    %v1956 = vunpack.c.l.b16 %v1586
    %v1957 = vunpack.c.h.b16 %v1586
    %v1958 = vunpack.c.l.b16 %v1587
    %v1959 = vunpack.c.h.b16 %v1587
    %v1960 = vunpack.c.l.b16 %v1588
    %v1961 = vunpack.c.h.b16 %v1588
    %v1962 = vunpack.c.l.b16 %v1589
    %v1963 = vunpack.c.h.b16 %v1589
    %v1964 = vunpack.c.l.b16 %v1590
    %v1965 = vunpack.c.h.b16 %v1590
    %v1966 = vunpack.c.l.b16 %v1591
    %v1967 = vunpack.c.h.b16 %v1591
    %v1968 = vunpack.c.l.b16 %v1592
    %v1969 = vunpack.c.h.b16 %v1592
    %v1970 = vunpack.c.l.b16 %v1593
    %v1971 = vunpack.c.h.b16 %v1593
    %v1972 = vunpack.c.l.b16 %v1594
    %v1973 = vunpack.c.h.b16 %v1594
    %v1974 = vunpack.c.l.b16 %v1595
    %v1975 = vunpack.c.h.b16 %v1595
    %v1976 = vunpack.c.l.b16 %v1596
    %v1977 = vunpack.c.h.b16 %v1596
    %v1978 = vunpack.c.l.b16 %v1597
    %v1979 = vunpack.c.h.b16 %v1597
    %v1980 = vunpack.c.l.b16 %v1598
    %v1981 = vunpack.c.h.b16 %v1598
    %v1982 = vunpack.c.l.b16 %v1599
    %v1983 = vunpack.c.h.b16 %v1599
    %v1984 = vunpack.c.l.b16 %v1600
    %v1985 = vunpack.c.h.b16 %v1600
    %v1986 = vunpack.c.l.b16 %v1601
    %v1987 = vunpack.c.h.b16 %v1601
    %v1988 = vunpack.c.l.b16 %v1602
    %v1989 = vunpack.c.h.b16 %v1602
    %v1990 = vunpack.c.l.b16 %v1603
    %v1991 = vunpack.c.h.b16 %v1603
    %v1992 = vunpack.c.l.b16 %v1604
    %v1993 = vunpack.c.h.b16 %v1604
    %v1994 = vunpack.c.l.b16 %v1605
    %v1995 = vunpack.c.h.b16 %v1605
    %v1996 = vunpack.c.l.b16 %v1606
    %v1997 = vunpack.c.h.b16 %v1606
    %v1998 = vunpack.c.l.b16 %v1607
    %v1999 = vunpack.c.h.b16 %v1607
    %v2000 = vunpack.c.l.b16 %v1608
    %v2001 = vunpack.c.h.b16 %v1608
    %v2002 = vunpack.c.l.b16 %v1609
    %v2003 = vunpack.c.h.b16 %v1609
    %v2004 = vunpack.c.l.b16 %v1610
    %v2005 = vunpack.c.h.b16 %v1610
    %v2006 = vunpack.c.l.b16 %v1611
    %v2007 = vunpack.c.h.b16 %v1611
    %v2008 = vunpack.c.l.b16 %v1612
    %v2009 = vunpack.c.h.b16 %v1612
    %v2010 = vunpack.c.l.b16 %v1613
    %v2011 = vunpack.c.h.b16 %v1613
    %v2012 = vunpack.c.l.b16 %v1614
    %v2013 = vunpack.c.h.b16 %v1614
    %v2014 = vunpack.c.l.b16 %v1615
    %v2015 = vunpack.c.h.b16 %v1615
    %v2016 = vunpack.c.l.b16 %v1616
    %v2017 = vunpack.c.h.b16 %v1616
    %v2018 = vunpack.c.l.b16 %v1617
    %v2019 = vunpack.c.h.b16 %v1617
    %v2020 = vunpack.c.l.b16 %v1618
    %v2021 = vunpack.c.h.b16 %v1618
    %v2022 = vunpack.c.l.b16 %v1619
    %v2023 = vunpack.c.h.b16 %v1619
    %v2024 = vunpack.c.l.b16 %v1620
    %v2025 = vunpack.c.h.b16 %v1620
    %v2026 = vunpack.c.l.b16 %v1621
    %v2027 = vunpack.c.h.b16 %v1621
    %v2028 = vpack.c.b16 %v1776, %v1772
    %v2029 = vpack.c.b16 %v1777, %v1773
    %v2030 = vpack.c.b16 %v1778, %v1774
    %v2031 = vpack.c.b16 %v1779, %v1775
    %v2032 = vpack.c.b16 %v1784, %v1780
    %v2033 = vpack.c.b16 %v1785, %v1781
    %v2034 = vpack.c.b16 %v1786, %v1782
    %v2035 = vpack.c.b16 %v1787, %v1783
    %v2036 = vpack.c.b16 %v1792, %v1788
    %v2037 = vpack.c.b16 %v1793, %v1789
    %v2038 = vpack.c.b16 %v1794, %v1790
    %v2039 = vpack.c.b16 %v1795, %v1791
    %v2040 = vpack.c.b16 %v1800, %v1796
    %v2041 = vpack.c.b16 %v1801, %v1797
    %v2042 = vpack.c.b16 %v1802, %v1798
    %v2043 = vpack.c.b16 %v1803, %v1799
    %v2044 = vpack.c.b16 %v1808, %v1804
    %v2045 = vpack.c.b16 %v1809, %v1805
    %v2046 = vpack.c.b16 %v1810, %v1806
    %v2047 = vpack.c.b16 %v1811, %v1807
    %v2048 = vpack.c.b16 %v1816, %v1812
    %v2049 = vpack.c.b16 %v1817, %v1813
    %v2050 = vpack.c.b16 %v1818, %v1814
    %v2051 = vpack.c.b16 %v1819, %v1815
    %v2052 = vpack.c.b16 %v1824, %v1820
    %v2053 = vpack.c.b16 %v1825, %v1821
    %v2054 = vpack.c.b16 %v1826, %v1822
    %v2055 = vpack.c.b16 %v1827, %v1823
    %v2056 = vpack.c.b16 %v1832, %v1828
    %v2057 = vpack.c.b16 %v1833, %v1829
    %v2058 = vpack.c.b16 %v1834, %v1830
    %v2059 = vpack.c.b16 %v1835, %v1831
    %v2060 = vpack.c.b16 %v1840, %v1836
    %v2061 = vpack.c.b16 %v1841, %v1837
    %v2062 = vpack.c.b16 %v1842, %v1838
    %v2063 = vpack.c.b16 %v1843, %v1839
    %v2064 = vpack.c.b16 %v1848, %v1844
    %v2065 = vpack.c.b16 %v1849, %v1845
    %v2066 = vpack.c.b16 %v1850, %v1846
    %v2067 = vpack.c.b16 %v1851, %v1847
    %v2068 = vpack.c.b16 %v1856, %v1852
    %v2069 = vpack.c.b16 %v1857, %v1853
    %v2070 = vpack.c.b16 %v1858, %v1854
    %v2071 = vpack.c.b16 %v1859, %v1855
    %v2072 = vpack.c.b16 %v1864, %v1860
    %v2073 = vpack.c.b16 %v1865, %v1861
    %v2074 = vpack.c.b16 %v1866, %v1862
    %v2075 = vpack.c.b16 %v1867, %v1863
    %v2076 = vpack.c.b16 %v1872, %v1868
    %v2077 = vpack.c.b16 %v1873, %v1869
    %v2078 = vpack.c.b16 %v1874, %v1870
    %v2079 = vpack.c.b16 %v1875, %v1871
    %v2080 = vpack.c.b16 %v1880, %v1876
    %v2081 = vpack.c.b16 %v1881, %v1877
    %v2082 = vpack.c.b16 %v1882, %v1878
    %v2083 = vpack.c.b16 %v1883, %v1879
    %v2084 = vpack.c.b16 %v1888, %v1884
    %v2085 = vpack.c.b16 %v1889, %v1885
    %v2086 = vpack.c.b16 %v1890, %v1886
    %v2087 = vpack.c.b16 %v1891, %v1887
    %v2088 = vpack.c.b16 %v1896, %v1892
    %v2089 = vpack.c.b16 %v1897, %v1893
    %v2090 = vpack.c.b16 %v1898, %v1894
    %v2091 = vpack.c.b16 %v1899, %v1895
    %v2092 = vpack.c.b16 %v1904, %v1900
    %v2093 = vpack.c.b16 %v1905, %v1901
    %v2094 = vpack.c.b16 %v1906, %v1902
    %v2095 = vpack.c.b16 %v1907, %v1903
    %v2096 = vpack.c.b16 %v1912, %v1908
    %v2097 = vpack.c.b16 %v1913, %v1909
    %v2098 = vpack.c.b16 %v1914, %v1910
    %v2099 = vpack.c.b16 %v1915, %v1911
    %v2100 = vpack.c.b16 %v1920, %v1916
    %v2101 = vpack.c.b16 %v1921, %v1917
    %v2102 = vpack.c.b16 %v1922, %v1918
    %v2103 = vpack.c.b16 %v1923, %v1919
    %v2104 = vpack.c.b16 %v1928, %v1924
    %v2105 = vpack.c.b16 %v1929, %v1925
    %v2106 = vpack.c.b16 %v1930, %v1926
    %v2107 = vpack.c.b16 %v1931, %v1927
    %v2108 = vpack.c.b16 %v1936, %v1932
    %v2109 = vpack.c.b16 %v1937, %v1933
    %v2110 = vpack.c.b16 %v1938, %v1934
    %v2111 = vpack.c.b16 %v1939, %v1935
    %v2112 = vpack.c.b16 %v1944, %v1940
    %v2113 = vpack.c.b16 %v1945, %v1941
    %v2114 = vpack.c.b16 %v1946, %v1942
    %v2115 = vpack.c.b16 %v1947, %v1943
    %v2116 = vpack.c.b16 %v1952, %v1948
    %v2117 = vpack.c.b16 %v1953, %v1949
    %v2118 = vpack.c.b16 %v1954, %v1950
    %v2119 = vpack.c.b16 %v1955, %v1951
    %v2120 = vpack.c.b16 %v1960, %v1956
    %v2121 = vpack.c.b16 %v1961, %v1957
    %v2122 = vpack.c.b16 %v1962, %v1958
    %v2123 = vpack.c.b16 %v1963, %v1959
    %v2124 = vpack.c.b16 %v1968, %v1964
    %v2125 = vpack.c.b16 %v1969, %v1965
    %v2126 = vpack.c.b16 %v1970, %v1966
    %v2127 = vpack.c.b16 %v1971, %v1967
    %v2128 = vpack.c.b16 %v1976, %v1972
    %v2129 = vpack.c.b16 %v1977, %v1973
    %v2130 = vpack.c.b16 %v1978, %v1974
    %v2131 = vpack.c.b16 %v1979, %v1975
    %v2132 = vpack.c.b16 %v1984, %v1980
    %v2133 = vpack.c.b16 %v1985, %v1981
    %v2134 = vpack.c.b16 %v1986, %v1982
    %v2135 = vpack.c.b16 %v1987, %v1983
    %v2136 = vpack.c.b16 %v1992, %v1988
    %v2137 = vpack.c.b16 %v1993, %v1989
    %v2138 = vpack.c.b16 %v1994, %v1990
    %v2139 = vpack.c.b16 %v1995, %v1991
    %v2140 = vpack.c.b16 %v2000, %v1996
    %v2141 = vpack.c.b16 %v2001, %v1997
    %v2142 = vpack.c.b16 %v2002, %v1998
    %v2143 = vpack.c.b16 %v2003, %v1999
    %v2144 = vpack.c.b16 %v2008, %v2004
    %v2145 = vpack.c.b16 %v2009, %v2005
    %v2146 = vpack.c.b16 %v2010, %v2006
    %v2147 = vpack.c.b16 %v2011, %v2007
    %v2148 = vpack.c.b16 %v2016, %v2012
    %v2149 = vpack.c.b16 %v2017, %v2013
    %v2150 = vpack.c.b16 %v2018, %v2014
    %v2151 = vpack.c.b16 %v2019, %v2015
    %v2152 = vpack.c.b16 %v2024, %v2020
    %v2153 = vpack.c.b16 %v2025, %v2021
    %v2154 = vpack.c.b16 %v2026, %v2022
    %v2155 = vpack.c.b16 %v2027, %v2023
    %2284 = vmatprep.subr.bf16.mxu0 %v2057
    %2285 = vmatpush1.bf16.msra.mxu0 %v2056
    %2286 = vmatprep.subr.bf16.mxu0 %v2053
    %2287 = vmatpush1.bf16.msra.mxu0 %v2052
    %2288 = vmatprep.subr.bf16.mxu0 %v2049
    %2289 = vmatpush1.bf16.msra.mxu0 %v2048
    %2290 = vmatprep.subr.bf16.mxu0 %v2045
    %2291 = vmatpush1.bf16.msra.mxu0 %v2044
    %2292 = vmatprep.subr.bf16.mxu0 %v2041
    %2293 = vmatpush1.bf16.msra.mxu0 %v2040
    %2294 = vmatprep.subr.bf16.mxu0 %v2037
    %2295 = vmatpush1.bf16.msra.mxu0 %v2036
    %2296 = vmatprep.subr.bf16.mxu0 %v2033
    %2297 = vmatpush1.bf16.msra.mxu0 %v2032
    %2298 = vmatprep.subr.bf16.mxu0 %v2029
    %2299 = vmatpush1.bf16.msra.mxu0 %v2028
    %2300 = vmatprep.subr.bf16.mxu0 %v2089
    %2301 = vmatpush2.bf16.msra.mxu0 %v2088
    %2302 = vmatprep.subr.bf16.mxu0 %v2085
    %2303 = vmatpush2.bf16.msra.mxu0 %v2084
    %2304 = vmatprep.subr.bf16.mxu0 %v2081
    %2305 = vmatpush2.bf16.msra.mxu0 %v2080
    %2306 = vmatprep.subr.bf16.mxu0 %v2077
    %2307 = vmatpush2.bf16.msra.mxu0 %v2076
    %2308 = vmatprep.subr.bf16.mxu0 %v2073
    %2309 = vmatpush2.bf16.msra.mxu0 %v2072
    %2310 = vmatprep.subr.bf16.mxu0 %v2069
    %2311 = vmatpush2.bf16.msra.mxu0 %v2068
    %2312 = vmatprep.subr.bf16.mxu0 %v2065
    %2313 = vmatpush2.bf16.msra.mxu0 %v2064
    %2314 = vmatprep.subr.bf16.mxu0 %v2061
    %2315 = vmatpush2.bf16.msra.mxu0 %v2060
    %2316 = vmatprep.mubr.bf16.mxu0 %v1367
    %2317 = vmatmul.mubr.bf16.gmra.mxu0 %v1366
    %v2318 = vpop.f32.mrf.mxu0
    %v2319 = vadd.f32 %v1627, %v2318
    %v2320 = vpop.f32.mrf.mxu0
    %v2321 = vadd.f32 %v1631, %v2320
    %v2322 = vpop.f32.mrf.mxu0
    %v2323 = vadd.f32 %v1627, %v2322
    %v2324 = vpop.f32.mrf.mxu0
    %v2325 = vadd.f32 %v1631, %v2324
    %2326 = vmatprep.mubr.bf16.mxu0 %v1371
    %2327 = vmatmul.mubr.bf16.gmra.mxu0 %v1370
    %v2328 = vpop.f32.mrf.mxu0
    %v2329 = vadd.f32 %v1627, %v2328
    %v2330 = vpop.f32.mrf.mxu0
    %v2331 = vadd.f32 %v1631, %v2330
    %v2332 = vpop.f32.mrf.mxu0
    %v2333 = vadd.f32 %v1627, %v2332
    %v2334 = vpop.f32.mrf.mxu0
    %v2335 = vadd.f32 %v1631, %v2334
    %2336 = vmatprep.mubr.bf16.mxu0 %v1375
    %2337 = vmatmul.mubr.bf16.gmra.mxu0 %v1374
    %v2338 = vpop.f32.mrf.mxu0
    %v2339 = vadd.f32 %v1627, %v2338
    %v2340 = vpop.f32.mrf.mxu0
    %v2341 = vadd.f32 %v1631, %v2340
    %v2342 = vpop.f32.mrf.mxu0
    %v2343 = vadd.f32 %v1627, %v2342
    %v2344 = vpop.f32.mrf.mxu0
    %v2345 = vadd.f32 %v1631, %v2344
    %2346 = vmatprep.mubr.bf16.mxu0 %v1379
    %2347 = vmatmul.mubr.bf16.gmra.mxu0 %v1378
    %v2348 = vpop.f32.mrf.mxu0
    %v2349 = vadd.f32 %v1627, %v2348
    %v2350 = vpop.f32.mrf.mxu0
    %v2351 = vadd.f32 %v1631, %v2350
    %v2352 = vpop.f32.mrf.mxu0
    %v2353 = vadd.f32 %v1627, %v2352
    %v2354 = vpop.f32.mrf.mxu0
    %v2355 = vadd.f32 %v1631, %v2354
    %2356 = vmatprep.mubr.bf16.mxu0 %v1383
    %2357 = vmatmul.mubr.bf16.gmra.mxu0 %v1382
    %v2358 = vpop.f32.mrf.mxu0
    %v2359 = vadd.f32 %v1627, %v2358
    %v2360 = vpop.f32.mrf.mxu0
    %v2361 = vadd.f32 %v1631, %v2360
    %v2362 = vpop.f32.mrf.mxu0
    %v2363 = vadd.f32 %v1627, %v2362
    %v2364 = vpop.f32.mrf.mxu0
    %v2365 = vadd.f32 %v1631, %v2364
    %2366 = vmatprep.mubr.bf16.mxu0 %v1387
    %2367 = vmatmul.mubr.bf16.gmra.mxu0 %v1386
    %v2368 = vpop.f32.mrf.mxu0
    %v2369 = vadd.f32 %v1627, %v2368
    %v2370 = vpop.f32.mrf.mxu0
    %v2371 = vadd.f32 %v1631, %v2370
    %v2372 = vpop.f32.mrf.mxu0
    %v2373 = vadd.f32 %v1627, %v2372
    %v2374 = vpop.f32.mrf.mxu0
    %v2375 = vadd.f32 %v1631, %v2374
    %2376 = vmatprep.mubr.bf16.mxu0 %v1391
    %2377 = vmatmul.mubr.bf16.gmra.mxu0 %v1390
    %v2378 = vpop.f32.mrf.mxu0
    %v2379 = vadd.f32 %v1627, %v2378
    %v2380 = vpop.f32.mrf.mxu0
    %v2381 = vadd.f32 %v1631, %v2380
    %v2382 = vpop.f32.mrf.mxu0
    %v2383 = vadd.f32 %v1627, %v2382
    %v2384 = vpop.f32.mrf.mxu0
    %v2385 = vadd.f32 %v1631, %v2384
    %2386 = vmatprep.mubr.bf16.mxu0 %v1395
    %2387 = vmatmul.mubr.bf16.gmra.mxu0 %v1394
    %v2388 = vpop.f32.mrf.mxu0
    %v2389 = vadd.f32 %v1627, %v2388
    %v2390 = vpop.f32.mrf.mxu0
    %v2391 = vadd.f32 %v1631, %v2390
    %v2392 = vpop.f32.mrf.mxu0
    %v2393 = vadd.f32 %v1627, %v2392
    %v2394 = vpop.f32.mrf.mxu0
    %v2395 = vadd.f32 %v1631, %v2394
    %2396 = vmatprep.mubr.bf16.mxu0 %v1399
    %2397 = vmatmul.mubr.bf16.gmra.mxu0 %v1398
    %v2398 = vpop.f32.mrf.mxu0
    %v2399 = vadd.f32 %v1627, %v2398
    %v2400 = vpop.f32.mrf.mxu0
    %v2401 = vadd.f32 %v1631, %v2400
    %v2402 = vpop.f32.mrf.mxu0
    %v2403 = vadd.f32 %v1627, %v2402
    %v2404 = vpop.f32.mrf.mxu0
    %v2405 = vadd.f32 %v1631, %v2404
    %2406 = vmatprep.mubr.bf16.mxu0 %v1403
    %2407 = vmatmul.mubr.bf16.gmra.mxu0 %v1402
    %v2408 = vpop.f32.mrf.mxu0
    %v2409 = vadd.f32 %v1627, %v2408
    %v2410 = vpop.f32.mrf.mxu0
    %v2411 = vadd.f32 %v1631, %v2410
    %v2412 = vpop.f32.mrf.mxu0
    %v2413 = vadd.f32 %v1627, %v2412
    %v2414 = vpop.f32.mrf.mxu0
    %v2415 = vadd.f32 %v1631, %v2414
    %2416 = vmatprep.mubr.bf16.mxu0 %v1407
    %2417 = vmatmul.mubr.bf16.gmra.mxu0 %v1406
    %v2418 = vpop.f32.mrf.mxu0
    %v2419 = vadd.f32 %v1627, %v2418
    %v2420 = vpop.f32.mrf.mxu0
    %v2421 = vadd.f32 %v1631, %v2420
    %v2422 = vpop.f32.mrf.mxu0
    %v2423 = vadd.f32 %v1627, %v2422
    %v2424 = vpop.f32.mrf.mxu0
    %v2425 = vadd.f32 %v1631, %v2424
    %2426 = vmatprep.mubr.bf16.mxu0 %v1411
    %2427 = vmatmul.mubr.bf16.gmra.mxu0 %v1410
    %v2428 = vpop.f32.mrf.mxu0
    %v2429 = vadd.f32 %v1627, %v2428
    %v2430 = vpop.f32.mrf.mxu0
    %v2431 = vadd.f32 %v1631, %v2430
    %v2432 = vpop.f32.mrf.mxu0
    %v2433 = vadd.f32 %v1627, %v2432
    %v2434 = vpop.f32.mrf.mxu0
    %v2435 = vadd.f32 %v1631, %v2434
    %2436 = vmatprep.mubr.bf16.mxu0 %v1415
    %2437 = vmatmul.mubr.bf16.gmra.mxu0 %v1414
    %v2438 = vpop.f32.mrf.mxu0
    %v2439 = vadd.f32 %v1627, %v2438
    %v2440 = vpop.f32.mrf.mxu0
    %v2441 = vadd.f32 %v1631, %v2440
    %v2442 = vpop.f32.mrf.mxu0
    %v2443 = vadd.f32 %v1627, %v2442
    %v2444 = vpop.f32.mrf.mxu0
    %v2445 = vadd.f32 %v1631, %v2444
    %2446 = vmatprep.mubr.bf16.mxu0 %v1419
    %2447 = vmatmul.mubr.bf16.gmra.mxu0 %v1418
    %v2448 = vpop.f32.mrf.mxu0
    %v2449 = vadd.f32 %v1627, %v2448
    %v2450 = vpop.f32.mrf.mxu0
    %v2451 = vadd.f32 %v1631, %v2450
    %v2452 = vpop.f32.mrf.mxu0
    %v2453 = vadd.f32 %v1627, %v2452
    %v2454 = vpop.f32.mrf.mxu0
    %v2455 = vadd.f32 %v1631, %v2454
    %2456 = vmatprep.mubr.bf16.mxu0 %v1423
    %2457 = vmatmul.mubr.bf16.gmra.mxu0 %v1422
    %v2458 = vpop.f32.mrf.mxu0
    %v2459 = vadd.f32 %v1627, %v2458
    %v2460 = vpop.f32.mrf.mxu0
    %v2461 = vadd.f32 %v1631, %v2460
    %v2462 = vpop.f32.mrf.mxu0
    %v2463 = vadd.f32 %v1627, %v2462
    %v2464 = vpop.f32.mrf.mxu0
    %v2465 = vadd.f32 %v1631, %v2464
    %2466 = vmatprep.mubr.bf16.mxu0 %v1427
    %2467 = vmatmul.mubr.bf16.gmra.mxu0 %v1426
    %v2468 = vpop.f32.mrf.mxu0
    %v2469 = vadd.f32 %v1627, %v2468
    %v2470 = vpop.f32.mrf.mxu0
    %v2471 = vadd.f32 %v1631, %v2470
    %v2472 = vpop.f32.mrf.mxu0
    %v2473 = vadd.f32 %v1627, %v2472
    %v2474 = vpop.f32.mrf.mxu0
    %v2475 = vadd.f32 %v1631, %v2474
    %2476 = vmatprep.mubr.bf16.mxu0 %v1431
    %2477 = vmatmul.mubr.bf16.gmra.mxu0 %v1430
    %v2478 = vpop.f32.mrf.mxu0
    %v2479 = vadd.f32 %v1627, %v2478
    %v2480 = vpop.f32.mrf.mxu0
    %v2481 = vadd.f32 %v1631, %v2480
    %v2482 = vpop.f32.mrf.mxu0
    %v2483 = vadd.f32 %v1627, %v2482
    %v2484 = vpop.f32.mrf.mxu0
    %v2485 = vadd.f32 %v1631, %v2484
    %2486 = vmatprep.mubr.bf16.mxu0 %v1435
    %2487 = vmatmul.mubr.bf16.gmra.mxu0 %v1434
    %v2488 = vpop.f32.mrf.mxu0
    %v2489 = vadd.f32 %v1627, %v2488
    %v2490 = vpop.f32.mrf.mxu0
    %v2491 = vadd.f32 %v1631, %v2490
    %v2492 = vpop.f32.mrf.mxu0
    %v2493 = vadd.f32 %v1627, %v2492
    %v2494 = vpop.f32.mrf.mxu0
    %v2495 = vadd.f32 %v1631, %v2494
    %2496 = vmatprep.mubr.bf16.mxu0 %v1439
    %2497 = vmatmul.mubr.bf16.gmra.mxu0 %v1438
    %v2498 = vpop.f32.mrf.mxu0
    %v2499 = vadd.f32 %v1627, %v2498
    %v2500 = vpop.f32.mrf.mxu0
    %v2501 = vadd.f32 %v1631, %v2500
    %v2502 = vpop.f32.mrf.mxu0
    %v2503 = vadd.f32 %v1627, %v2502
    %v2504 = vpop.f32.mrf.mxu0
    %v2505 = vadd.f32 %v1631, %v2504
    %2506 = vmatprep.mubr.bf16.mxu0 %v1443
    %2507 = vmatmul.mubr.bf16.gmra.mxu0 %v1442
    %v2508 = vpop.f32.mrf.mxu0
    %v2509 = vadd.f32 %v1627, %v2508
    %v2510 = vpop.f32.mrf.mxu0
    %v2511 = vadd.f32 %v1631, %v2510
    %v2512 = vpop.f32.mrf.mxu0
    %v2513 = vadd.f32 %v1627, %v2512
    %v2514 = vpop.f32.mrf.mxu0
    %v2515 = vadd.f32 %v1631, %v2514
    %2516 = vmatprep.mubr.bf16.mxu0 %v1447
    %2517 = vmatmul.mubr.bf16.gmra.mxu0 %v1446
    %v2518 = vpop.f32.mrf.mxu0
    %v2519 = vadd.f32 %v1627, %v2518
    %v2520 = vpop.f32.mrf.mxu0
    %v2521 = vadd.f32 %v1631, %v2520
    %v2522 = vpop.f32.mrf.mxu0
    %v2523 = vadd.f32 %v1627, %v2522
    %v2524 = vpop.f32.mrf.mxu0
    %v2525 = vadd.f32 %v1631, %v2524
    %2526 = vmatprep.mubr.bf16.mxu0 %v1451
    %2527 = vmatmul.mubr.bf16.gmra.mxu0 %v1450
    %v2528 = vpop.f32.mrf.mxu0
    %v2529 = vadd.f32 %v1627, %v2528
    %v2530 = vpop.f32.mrf.mxu0
    %v2531 = vadd.f32 %v1631, %v2530
    %v2532 = vpop.f32.mrf.mxu0
    %v2533 = vadd.f32 %v1627, %v2532
    %v2534 = vpop.f32.mrf.mxu0
    %v2535 = vadd.f32 %v1631, %v2534
    %2536 = vmatprep.mubr.bf16.mxu0 %v1455
    %2537 = vmatmul.mubr.bf16.gmra.mxu0 %v1454
    %v2538 = vpop.f32.mrf.mxu0
    %v2539 = vadd.f32 %v1627, %v2538
    %v2540 = vpop.f32.mrf.mxu0
    %v2541 = vadd.f32 %v1631, %v2540
    %v2542 = vpop.f32.mrf.mxu0
    %v2543 = vadd.f32 %v1627, %v2542
    %v2544 = vpop.f32.mrf.mxu0
    %v2545 = vadd.f32 %v1631, %v2544
    %2546 = vmatprep.mubr.bf16.mxu0 %v1459
    %2547 = vmatmul.mubr.bf16.gmra.mxu0 %v1458
    %v2548 = vpop.f32.mrf.mxu0
    %v2549 = vadd.f32 %v1627, %v2548
    %v2550 = vpop.f32.mrf.mxu0
    %v2551 = vadd.f32 %v1631, %v2550
    %v2552 = vpop.f32.mrf.mxu0
    %v2553 = vadd.f32 %v1627, %v2552
    %v2554 = vpop.f32.mrf.mxu0
    %v2555 = vadd.f32 %v1631, %v2554
    %2556 = vmatprep.mubr.bf16.mxu0 %v1463
    %2557 = vmatmul.mubr.bf16.gmra.mxu0 %v1462
    %v2558 = vpop.f32.mrf.mxu0
    %v2559 = vadd.f32 %v1627, %v2558
    %v2560 = vpop.f32.mrf.mxu0
    %v2561 = vadd.f32 %v1631, %v2560
    %v2562 = vpop.f32.mrf.mxu0
    %v2563 = vadd.f32 %v1627, %v2562
    %v2564 = vpop.f32.mrf.mxu0
    %v2565 = vadd.f32 %v1631, %v2564
    %2566 = vmatprep.mubr.bf16.mxu0 %v1467
    %2567 = vmatmul.mubr.bf16.gmra.mxu0 %v1466
    %v2568 = vpop.f32.mrf.mxu0
    %v2569 = vadd.f32 %v1627, %v2568
    %v2570 = vpop.f32.mrf.mxu0
    %v2571 = vadd.f32 %v1631, %v2570
    %v2572 = vpop.f32.mrf.mxu0
    %v2573 = vadd.f32 %v1627, %v2572
    %v2574 = vpop.f32.mrf.mxu0
    %v2575 = vadd.f32 %v1631, %v2574
    %2576 = vmatprep.mubr.bf16.mxu0 %v1471
    %2577 = vmatmul.mubr.bf16.gmra.mxu0 %v1470
    %v2578 = vpop.f32.mrf.mxu0
    %v2579 = vadd.f32 %v1627, %v2578
    %v2580 = vpop.f32.mrf.mxu0
    %v2581 = vadd.f32 %v1631, %v2580
    %v2582 = vpop.f32.mrf.mxu0
    %v2583 = vadd.f32 %v1627, %v2582
    %v2584 = vpop.f32.mrf.mxu0
    %v2585 = vadd.f32 %v1631, %v2584
    %2586 = vmatprep.mubr.bf16.mxu0 %v1475
    %2587 = vmatmul.mubr.bf16.gmra.mxu0 %v1474
    %v2588 = vpop.f32.mrf.mxu0
    %v2589 = vadd.f32 %v1627, %v2588
    %v2590 = vpop.f32.mrf.mxu0
    %v2591 = vadd.f32 %v1631, %v2590
    %v2592 = vpop.f32.mrf.mxu0
    %v2593 = vadd.f32 %v1627, %v2592
    %v2594 = vpop.f32.mrf.mxu0
    %v2595 = vadd.f32 %v1631, %v2594
    %2596 = vmatprep.mubr.bf16.mxu0 %v1479
    %2597 = vmatmul.mubr.bf16.gmra.mxu0 %v1478
    %v2598 = vpop.f32.mrf.mxu0
    %v2599 = vadd.f32 %v1627, %v2598
    %v2600 = vpop.f32.mrf.mxu0
    %v2601 = vadd.f32 %v1631, %v2600
    %v2602 = vpop.f32.mrf.mxu0
    %v2603 = vadd.f32 %v1627, %v2602
    %v2604 = vpop.f32.mrf.mxu0
    %v2605 = vadd.f32 %v1631, %v2604
    %2606 = vmatprep.mubr.bf16.mxu0 %v1483
    %2607 = vmatmul.mubr.bf16.gmra.mxu0 %v1482
    %v2608 = vpop.f32.mrf.mxu0
    %v2609 = vadd.f32 %v1627, %v2608
    %v2610 = vpop.f32.mrf.mxu0
    %v2611 = vadd.f32 %v1631, %v2610
    %v2612 = vpop.f32.mrf.mxu0
    %v2613 = vadd.f32 %v1627, %v2612
    %v2614 = vpop.f32.mrf.mxu0
    %v2615 = vadd.f32 %v1631, %v2614
    %2616 = vmatprep.mubr.bf16.mxu0 %v1487
    %2617 = vmatmul.mubr.bf16.gmra.mxu0 %v1486
    %v2618 = vpop.f32.mrf.mxu0
    %v2619 = vadd.f32 %v1627, %v2618
    %v2620 = vpop.f32.mrf.mxu0
    %v2621 = vadd.f32 %v1631, %v2620
    %v2622 = vpop.f32.mrf.mxu0
    %v2623 = vadd.f32 %v1627, %v2622
    %v2624 = vpop.f32.mrf.mxu0
    %v2625 = vadd.f32 %v1631, %v2624
    %2626 = vmatprep.mubr.bf16.mxu0 %v1491
    %2627 = vmatmul.mubr.bf16.gmra.mxu0 %v1490
    %v2628 = vpop.f32.mrf.mxu0
    %v2629 = vadd.f32 %v1627, %v2628
    %v2630 = vpop.f32.mrf.mxu0
    %v2631 = vadd.f32 %v1631, %v2630
    %v2632 = vpop.f32.mrf.mxu0
    %v2633 = vadd.f32 %v1627, %v2632
    %v2634 = vpop.f32.mrf.mxu0
    %v2635 = vadd.f32 %v1631, %v2634
    %2636 = vdwg.mxu0
    %2637 = vmatprep.subr.bf16.mxu0 %v2121
    %2638 = vmatpush1.bf16.msra.mxu0 %v2120
    %2639 = vmatprep.subr.bf16.mxu0 %v2117
    %2640 = vmatpush1.bf16.msra.mxu0 %v2116
    %2641 = vmatprep.subr.bf16.mxu0 %v2113
    %2642 = vmatpush1.bf16.msra.mxu0 %v2112
    %2643 = vmatprep.subr.bf16.mxu0 %v2109
    %2644 = vmatpush1.bf16.msra.mxu0 %v2108
    %2645 = vmatprep.subr.bf16.mxu0 %v2105
    %2646 = vmatpush1.bf16.msra.mxu0 %v2104
    %2647 = vmatprep.subr.bf16.mxu0 %v2101
    %2648 = vmatpush1.bf16.msra.mxu0 %v2100
    %2649 = vmatprep.subr.bf16.mxu0 %v2097
    %2650 = vmatpush1.bf16.msra.mxu0 %v2096
    %2651 = vmatprep.subr.bf16.mxu0 %v2093
    %2652 = vmatpush1.bf16.msra.mxu0 %v2092
    %2653 = vmatprep.subr.bf16.mxu0 %v2153
    %2654 = vmatpush2.bf16.msra.mxu0 %v2152
    %2655 = vmatprep.subr.bf16.mxu0 %v2149
    %2656 = vmatpush2.bf16.msra.mxu0 %v2148
    %2657 = vmatprep.subr.bf16.mxu0 %v2145
    %2658 = vmatpush2.bf16.msra.mxu0 %v2144
    %2659 = vmatprep.subr.bf16.mxu0 %v2141
    %2660 = vmatpush2.bf16.msra.mxu0 %v2140
    %2661 = vmatprep.subr.bf16.mxu0 %v2137
    %2662 = vmatpush2.bf16.msra.mxu0 %v2136
    %2663 = vmatprep.subr.bf16.mxu0 %v2133
    %2664 = vmatpush2.bf16.msra.mxu0 %v2132
    %2665 = vmatprep.subr.bf16.mxu0 %v2129
    %2666 = vmatpush2.bf16.msra.mxu0 %v2128
    %2667 = vmatprep.subr.bf16.mxu0 %v2125
    %2668 = vmatpush2.bf16.msra.mxu0 %v2124
    %2669 = vmatprep.mubr.bf16.mxu0 %v1369
    %2670 = vmatmul.mubr.bf16.gmra.mxu0 %v1368
    %v2671 = vpop.f32.mrf.mxu0
    %v2672 = vadd.f32 %v2319, %v2671
    %v2673 = vpop.f32.mrf.mxu0
    %v2674 = vadd.f32 %v2321, %v2673
    %v2675 = vpop.f32.mrf.mxu0
    %v2676 = vadd.f32 %v2323, %v2675
    %v2677 = vpop.f32.mrf.mxu0
    %v2678 = vadd.f32 %v2325, %v2677
    %2679 = vmatprep.mubr.bf16.mxu0 %v1373
    %2680 = vmatmul.mubr.bf16.gmra.mxu0 %v1372
    %v2681 = vpop.f32.mrf.mxu0
    %v2682 = vadd.f32 %v2329, %v2681
    %v2683 = vpop.f32.mrf.mxu0
    %v2684 = vadd.f32 %v2331, %v2683
    %v2685 = vpop.f32.mrf.mxu0
    %v2686 = vadd.f32 %v2333, %v2685
    %v2687 = vpop.f32.mrf.mxu0
    %v2688 = vadd.f32 %v2335, %v2687
    %2689 = vmatprep.mubr.bf16.mxu0 %v1377
    %2690 = vmatmul.mubr.bf16.gmra.mxu0 %v1376
    %v2691 = vpop.f32.mrf.mxu0
    %v2692 = vadd.f32 %v2339, %v2691
    %v2693 = vpop.f32.mrf.mxu0
    %v2694 = vadd.f32 %v2341, %v2693
    %v2695 = vpop.f32.mrf.mxu0
    %v2696 = vadd.f32 %v2343, %v2695
    %v2697 = vpop.f32.mrf.mxu0
    %v2698 = vadd.f32 %v2345, %v2697
    %2699 = vmatprep.mubr.bf16.mxu0 %v1381
    %2700 = vmatmul.mubr.bf16.gmra.mxu0 %v1380
    %v2701 = vpop.f32.mrf.mxu0
    %v2702 = vadd.f32 %v2349, %v2701
    %v2703 = vpop.f32.mrf.mxu0
    %v2704 = vadd.f32 %v2351, %v2703
    %v2705 = vpop.f32.mrf.mxu0
    %v2706 = vadd.f32 %v2353, %v2705
    %v2707 = vpop.f32.mrf.mxu0
    %v2708 = vadd.f32 %v2355, %v2707
    %2709 = vmatprep.mubr.bf16.mxu0 %v1385
    %2710 = vmatmul.mubr.bf16.gmra.mxu0 %v1384
    %v2711 = vpop.f32.mrf.mxu0
    %v2712 = vadd.f32 %v2359, %v2711
    %v2713 = vpop.f32.mrf.mxu0
    %v2714 = vadd.f32 %v2361, %v2713
    %v2715 = vpop.f32.mrf.mxu0
    %v2716 = vadd.f32 %v2363, %v2715
    %v2717 = vpop.f32.mrf.mxu0
    %v2718 = vadd.f32 %v2365, %v2717
    %2719 = vmatprep.mubr.bf16.mxu0 %v1389
    %2720 = vmatmul.mubr.bf16.gmra.mxu0 %v1388
    %v2721 = vpop.f32.mrf.mxu0
    %v2722 = vadd.f32 %v2369, %v2721
    %v2723 = vpop.f32.mrf.mxu0
    %v2724 = vadd.f32 %v2371, %v2723
    %v2725 = vpop.f32.mrf.mxu0
    %v2726 = vadd.f32 %v2373, %v2725
    %v2727 = vpop.f32.mrf.mxu0
    %v2728 = vadd.f32 %v2375, %v2727
    %2729 = vmatprep.mubr.bf16.mxu0 %v1393
    %2730 = vmatmul.mubr.bf16.gmra.mxu0 %v1392
    %v2731 = vpop.f32.mrf.mxu0
    %v2732 = vadd.f32 %v2379, %v2731
    %v2733 = vpop.f32.mrf.mxu0
    %v2734 = vadd.f32 %v2381, %v2733
    %v2735 = vpop.f32.mrf.mxu0
    %v2736 = vadd.f32 %v2383, %v2735
    %v2737 = vpop.f32.mrf.mxu0
    %v2738 = vadd.f32 %v2385, %v2737
    %2739 = vmatprep.mubr.bf16.mxu0 %v1397
    %2740 = vmatmul.mubr.bf16.gmra.mxu0 %v1396
    %v2741 = vpop.f32.mrf.mxu0
    %v2742 = vadd.f32 %v2389, %v2741
    %v2743 = vpop.f32.mrf.mxu0
    %v2744 = vadd.f32 %v2391, %v2743
    %v2745 = vpop.f32.mrf.mxu0
    %v2746 = vadd.f32 %v2393, %v2745
    %v2747 = vpop.f32.mrf.mxu0
    %v2748 = vadd.f32 %v2395, %v2747
    %2749 = vmatprep.mubr.bf16.mxu0 %v1401
    %2750 = vmatmul.mubr.bf16.gmra.mxu0 %v1400
    %v2751 = vpop.f32.mrf.mxu0
    %v2752 = vadd.f32 %v2399, %v2751
    %v2753 = vpop.f32.mrf.mxu0
    %v2754 = vadd.f32 %v2401, %v2753
    %v2755 = vpop.f32.mrf.mxu0
    %v2756 = vadd.f32 %v2403, %v2755
    %v2757 = vpop.f32.mrf.mxu0
    %v2758 = vadd.f32 %v2405, %v2757
    %2759 = vmatprep.mubr.bf16.mxu0 %v1405
    %2760 = vmatmul.mubr.bf16.gmra.mxu0 %v1404
    %v2761 = vpop.f32.mrf.mxu0
    %v2762 = vadd.f32 %v2409, %v2761
    %v2763 = vpop.f32.mrf.mxu0
    %v2764 = vadd.f32 %v2411, %v2763
    %v2765 = vpop.f32.mrf.mxu0
    %v2766 = vadd.f32 %v2413, %v2765
    %v2767 = vpop.f32.mrf.mxu0
    %v2768 = vadd.f32 %v2415, %v2767
    %2769 = vmatprep.mubr.bf16.mxu0 %v1409
    %2770 = vmatmul.mubr.bf16.gmra.mxu0 %v1408
    %v2771 = vpop.f32.mrf.mxu0
    %v2772 = vadd.f32 %v2419, %v2771
    %v2773 = vpop.f32.mrf.mxu0
    %v2774 = vadd.f32 %v2421, %v2773
    %v2775 = vpop.f32.mrf.mxu0
    %v2776 = vadd.f32 %v2423, %v2775
    %v2777 = vpop.f32.mrf.mxu0
    %v2778 = vadd.f32 %v2425, %v2777
    %2779 = vmatprep.mubr.bf16.mxu0 %v1413
    %2780 = vmatmul.mubr.bf16.gmra.mxu0 %v1412
    %v2781 = vpop.f32.mrf.mxu0
    %v2782 = vadd.f32 %v2429, %v2781
    %v2783 = vpop.f32.mrf.mxu0
    %v2784 = vadd.f32 %v2431, %v2783
    %v2785 = vpop.f32.mrf.mxu0
    %v2786 = vadd.f32 %v2433, %v2785
    %v2787 = vpop.f32.mrf.mxu0
    %v2788 = vadd.f32 %v2435, %v2787
    %2789 = vmatprep.mubr.bf16.mxu0 %v1417
    %2790 = vmatmul.mubr.bf16.gmra.mxu0 %v1416
    %v2791 = vpop.f32.mrf.mxu0
    %v2792 = vadd.f32 %v2439, %v2791
    %v2793 = vpop.f32.mrf.mxu0
    %v2794 = vadd.f32 %v2441, %v2793
    %v2795 = vpop.f32.mrf.mxu0
    %v2796 = vadd.f32 %v2443, %v2795
    %v2797 = vpop.f32.mrf.mxu0
    %v2798 = vadd.f32 %v2445, %v2797
    %2799 = vmatprep.mubr.bf16.mxu0 %v1421
    %2800 = vmatmul.mubr.bf16.gmra.mxu0 %v1420
    %v2801 = vpop.f32.mrf.mxu0
    %v2802 = vadd.f32 %v2449, %v2801
    %v2803 = vpop.f32.mrf.mxu0
    %v2804 = vadd.f32 %v2451, %v2803
    %v2805 = vpop.f32.mrf.mxu0
    %v2806 = vadd.f32 %v2453, %v2805
    %v2807 = vpop.f32.mrf.mxu0
    %v2808 = vadd.f32 %v2455, %v2807
    %2809 = vmatprep.mubr.bf16.mxu0 %v1425
    %2810 = vmatmul.mubr.bf16.gmra.mxu0 %v1424
    %v2811 = vpop.f32.mrf.mxu0
    %v2812 = vadd.f32 %v2459, %v2811
    %v2813 = vpop.f32.mrf.mxu0
    %v2814 = vadd.f32 %v2461, %v2813
    %v2815 = vpop.f32.mrf.mxu0
    %v2816 = vadd.f32 %v2463, %v2815
    %v2817 = vpop.f32.mrf.mxu0
    %v2818 = vadd.f32 %v2465, %v2817
    %2819 = vmatprep.mubr.bf16.mxu0 %v1429
    %2820 = vmatmul.mubr.bf16.gmra.mxu0 %v1428
    %v2821 = vpop.f32.mrf.mxu0
    %v2822 = vadd.f32 %v2469, %v2821
    %v2823 = vpop.f32.mrf.mxu0
    %v2824 = vadd.f32 %v2471, %v2823
    %v2825 = vpop.f32.mrf.mxu0
    %v2826 = vadd.f32 %v2473, %v2825
    %v2827 = vpop.f32.mrf.mxu0
    %v2828 = vadd.f32 %v2475, %v2827
    %2829 = vmatprep.mubr.bf16.mxu0 %v1433
    %2830 = vmatmul.mubr.bf16.gmra.mxu0 %v1432
    %v2831 = vpop.f32.mrf.mxu0
    %v2832 = vadd.f32 %v2479, %v2831
    %v2833 = vpop.f32.mrf.mxu0
    %v2834 = vadd.f32 %v2481, %v2833
    %v2835 = vpop.f32.mrf.mxu0
    %v2836 = vadd.f32 %v2483, %v2835
    %v2837 = vpop.f32.mrf.mxu0
    %v2838 = vadd.f32 %v2485, %v2837
    %2839 = vmatprep.mubr.bf16.mxu0 %v1437
    %2840 = vmatmul.mubr.bf16.gmra.mxu0 %v1436
    %v2841 = vpop.f32.mrf.mxu0
    %v2842 = vadd.f32 %v2489, %v2841
    %v2843 = vpop.f32.mrf.mxu0
    %v2844 = vadd.f32 %v2491, %v2843
    %v2845 = vpop.f32.mrf.mxu0
    %v2846 = vadd.f32 %v2493, %v2845
    %v2847 = vpop.f32.mrf.mxu0
    %v2848 = vadd.f32 %v2495, %v2847
    %2849 = vmatprep.mubr.bf16.mxu0 %v1441
    %2850 = vmatmul.mubr.bf16.gmra.mxu0 %v1440
    %v2851 = vpop.f32.mrf.mxu0
    %v2852 = vadd.f32 %v2499, %v2851
    %v2853 = vpop.f32.mrf.mxu0
    %v2854 = vadd.f32 %v2501, %v2853
    %v2855 = vpop.f32.mrf.mxu0
    %v2856 = vadd.f32 %v2503, %v2855
    %v2857 = vpop.f32.mrf.mxu0
    %v2858 = vadd.f32 %v2505, %v2857
    %2859 = vmatprep.mubr.bf16.mxu0 %v1445
    %2860 = vmatmul.mubr.bf16.gmra.mxu0 %v1444
    %v2861 = vpop.f32.mrf.mxu0
    %v2862 = vadd.f32 %v2509, %v2861
    %v2863 = vpop.f32.mrf.mxu0
    %v2864 = vadd.f32 %v2511, %v2863
    %v2865 = vpop.f32.mrf.mxu0
    %v2866 = vadd.f32 %v2513, %v2865
    %v2867 = vpop.f32.mrf.mxu0
    %v2868 = vadd.f32 %v2515, %v2867
    %2869 = vmatprep.mubr.bf16.mxu0 %v1449
    %2870 = vmatmul.mubr.bf16.gmra.mxu0 %v1448
    %v2871 = vpop.f32.mrf.mxu0
    %v2872 = vadd.f32 %v2519, %v2871
    %v2873 = vpop.f32.mrf.mxu0
    %v2874 = vadd.f32 %v2521, %v2873
    %v2875 = vpop.f32.mrf.mxu0
    %v2876 = vadd.f32 %v2523, %v2875
    %v2877 = vpop.f32.mrf.mxu0
    %v2878 = vadd.f32 %v2525, %v2877
    %2879 = vmatprep.mubr.bf16.mxu0 %v1453
    %2880 = vmatmul.mubr.bf16.gmra.mxu0 %v1452
    %v2881 = vpop.f32.mrf.mxu0
    %v2882 = vadd.f32 %v2529, %v2881
    %v2883 = vpop.f32.mrf.mxu0
    %v2884 = vadd.f32 %v2531, %v2883
    %v2885 = vpop.f32.mrf.mxu0
    %v2886 = vadd.f32 %v2533, %v2885
    %v2887 = vpop.f32.mrf.mxu0
    %v2888 = vadd.f32 %v2535, %v2887
    %2889 = vmatprep.mubr.bf16.mxu0 %v1457
    %2890 = vmatmul.mubr.bf16.gmra.mxu0 %v1456
    %v2891 = vpop.f32.mrf.mxu0
    %v2892 = vadd.f32 %v2539, %v2891
    %v2893 = vpop.f32.mrf.mxu0
    %v2894 = vadd.f32 %v2541, %v2893
    %v2895 = vpop.f32.mrf.mxu0
    %v2896 = vadd.f32 %v2543, %v2895
    %v2897 = vpop.f32.mrf.mxu0
    %v2898 = vadd.f32 %v2545, %v2897
    %2899 = vmatprep.mubr.bf16.mxu0 %v1461
    %2900 = vmatmul.mubr.bf16.gmra.mxu0 %v1460
    %v2901 = vpop.f32.mrf.mxu0
    %v2902 = vadd.f32 %v2549, %v2901
    %v2903 = vpop.f32.mrf.mxu0
    %v2904 = vadd.f32 %v2551, %v2903
    %v2905 = vpop.f32.mrf.mxu0
    %v2906 = vadd.f32 %v2553, %v2905
    %v2907 = vpop.f32.mrf.mxu0
    %v2908 = vadd.f32 %v2555, %v2907
    %2909 = vmatprep.mubr.bf16.mxu0 %v1465
    %2910 = vmatmul.mubr.bf16.gmra.mxu0 %v1464
    %v2911 = vpop.f32.mrf.mxu0
    %v2912 = vadd.f32 %v2559, %v2911
    %v2913 = vpop.f32.mrf.mxu0
    %v2914 = vadd.f32 %v2561, %v2913
    %v2915 = vpop.f32.mrf.mxu0
    %v2916 = vadd.f32 %v2563, %v2915
    %v2917 = vpop.f32.mrf.mxu0
    %v2918 = vadd.f32 %v2565, %v2917
    %2919 = vmatprep.mubr.bf16.mxu0 %v1469
    %2920 = vmatmul.mubr.bf16.gmra.mxu0 %v1468
    %v2921 = vpop.f32.mrf.mxu0
    %v2922 = vadd.f32 %v2569, %v2921
    %v2923 = vpop.f32.mrf.mxu0
    %v2924 = vadd.f32 %v2571, %v2923
    %v2925 = vpop.f32.mrf.mxu0
    %v2926 = vadd.f32 %v2573, %v2925
    %v2927 = vpop.f32.mrf.mxu0
    %v2928 = vadd.f32 %v2575, %v2927
    %2929 = vmatprep.mubr.bf16.mxu0 %v1473
    %2930 = vmatmul.mubr.bf16.gmra.mxu0 %v1472
    %v2931 = vpop.f32.mrf.mxu0
    %v2932 = vadd.f32 %v2579, %v2931
    %v2933 = vpop.f32.mrf.mxu0
    %v2934 = vadd.f32 %v2581, %v2933
    %v2935 = vpop.f32.mrf.mxu0
    %v2936 = vadd.f32 %v2583, %v2935
    %v2937 = vpop.f32.mrf.mxu0
    %v2938 = vadd.f32 %v2585, %v2937
    %2939 = vmatprep.mubr.bf16.mxu0 %v1477
    %2940 = vmatmul.mubr.bf16.gmra.mxu0 %v1476
    %v2941 = vpop.f32.mrf.mxu0
    %v2942 = vadd.f32 %v2589, %v2941
    %v2943 = vpop.f32.mrf.mxu0
    %v2944 = vadd.f32 %v2591, %v2943
    %v2945 = vpop.f32.mrf.mxu0
    %v2946 = vadd.f32 %v2593, %v2945
    %v2947 = vpop.f32.mrf.mxu0
    %v2948 = vadd.f32 %v2595, %v2947
    %2949 = vmatprep.mubr.bf16.mxu0 %v1481
    %2950 = vmatmul.mubr.bf16.gmra.mxu0 %v1480
    %v2951 = vpop.f32.mrf.mxu0
    %v2952 = vadd.f32 %v2599, %v2951
    %v2953 = vpop.f32.mrf.mxu0
    %v2954 = vadd.f32 %v2601, %v2953
    %v2955 = vpop.f32.mrf.mxu0
    %v2956 = vadd.f32 %v2603, %v2955
    %v2957 = vpop.f32.mrf.mxu0
    %v2958 = vadd.f32 %v2605, %v2957
    %2959 = vmatprep.mubr.bf16.mxu0 %v1485
    %2960 = vmatmul.mubr.bf16.gmra.mxu0 %v1484
    %v2961 = vpop.f32.mrf.mxu0
    %v2962 = vadd.f32 %v2609, %v2961
    %v2963 = vpop.f32.mrf.mxu0
    %v2964 = vadd.f32 %v2611, %v2963
    %v2965 = vpop.f32.mrf.mxu0
    %v2966 = vadd.f32 %v2613, %v2965
    %v2967 = vpop.f32.mrf.mxu0
    %v2968 = vadd.f32 %v2615, %v2967
    %2969 = vmatprep.mubr.bf16.mxu0 %v1489
    %2970 = vmatmul.mubr.bf16.gmra.mxu0 %v1488
    %v2971 = vpop.f32.mrf.mxu0
    %v2972 = vadd.f32 %v2619, %v2971
    %v2973 = vpop.f32.mrf.mxu0
    %v2974 = vadd.f32 %v2621, %v2973
    %v2975 = vpop.f32.mrf.mxu0
    %v2976 = vadd.f32 %v2623, %v2975
    %v2977 = vpop.f32.mrf.mxu0
    %v2978 = vadd.f32 %v2625, %v2977
    %2979 = vmatprep.mubr.bf16.mxu0 %v1493
    %2980 = vmatmul.mubr.bf16.gmra.mxu0 %v1492
    %v2981 = vpop.f32.mrf.mxu0
    %v2982 = vadd.f32 %v2629, %v2981
    %v2983 = vpop.f32.mrf.mxu0
    %v2984 = vadd.f32 %v2631, %v2983
    %v2985 = vpop.f32.mrf.mxu0
    %v2986 = vadd.f32 %v2633, %v2985
    %v2987 = vpop.f32.mrf.mxu0
    %v2988 = vadd.f32 %v2635, %v2987
    %2989 = vdwg.mxu0
    %2990 = vmatprep.subr.bf16.mxu0 %v2059
    %2991 = vmatpush1.bf16.msra.mxu0 %v2058
    %2992 = vmatprep.subr.bf16.mxu0 %v2055
    %2993 = vmatpush1.bf16.msra.mxu0 %v2054
    %2994 = vmatprep.subr.bf16.mxu0 %v2051
    %2995 = vmatpush1.bf16.msra.mxu0 %v2050
    %2996 = vmatprep.subr.bf16.mxu0 %v2047
    %2997 = vmatpush1.bf16.msra.mxu0 %v2046
    %2998 = vmatprep.subr.bf16.mxu0 %v2043
    %2999 = vmatpush1.bf16.msra.mxu0 %v2042
    %3000 = vmatprep.subr.bf16.mxu0 %v2039
    %3001 = vmatpush1.bf16.msra.mxu0 %v2038
    %3002 = vmatprep.subr.bf16.mxu0 %v2035
    %3003 = vmatpush1.bf16.msra.mxu0 %v2034
    %3004 = vmatprep.subr.bf16.mxu0 %v2031
    %3005 = vmatpush1.bf16.msra.mxu0 %v2030
    %3006 = vmatprep.subr.bf16.mxu0 %v2091
    %3007 = vmatpush2.bf16.msra.mxu0 %v2090
    %3008 = vmatprep.subr.bf16.mxu0 %v2087
    %3009 = vmatpush2.bf16.msra.mxu0 %v2086
    %3010 = vmatprep.subr.bf16.mxu0 %v2083
    %3011 = vmatpush2.bf16.msra.mxu0 %v2082
    %3012 = vmatprep.subr.bf16.mxu0 %v2079
    %3013 = vmatpush2.bf16.msra.mxu0 %v2078
    %3014 = vmatprep.subr.bf16.mxu0 %v2075
    %3015 = vmatpush2.bf16.msra.mxu0 %v2074
    %3016 = vmatprep.subr.bf16.mxu0 %v2071
    %3017 = vmatpush2.bf16.msra.mxu0 %v2070
    %3018 = vmatprep.subr.bf16.mxu0 %v2067
    %3019 = vmatpush2.bf16.msra.mxu0 %v2066
    %3020 = vmatprep.subr.bf16.mxu0 %v2063
    %3021 = vmatpush2.bf16.msra.mxu0 %v2062
    %3022 = vmatprep.mubr.bf16.mxu0 %v1367
    %3023 = vmatmul.mubr.bf16.gmra.mxu0 %v1366
    %v3024 = vpop.f32.mrf.mxu0
    %v3025 = vadd.f32 %v1635, %v3024
    %v3026 = vpop.f32.mrf.mxu0
    %v3027 = vadd.f32 %v1639, %v3026
    %v3028 = vpop.f32.mrf.mxu0
    %v3029 = vadd.f32 %v1635, %v3028
    %v3030 = vpop.f32.mrf.mxu0
    %v3031 = vadd.f32 %v1639, %v3030
    %3032 = vmatprep.mubr.bf16.mxu0 %v1371
    %3033 = vmatmul.mubr.bf16.gmra.mxu0 %v1370
    %v3034 = vpop.f32.mrf.mxu0
    %v3035 = vadd.f32 %v1635, %v3034
    %v3036 = vpop.f32.mrf.mxu0
    %v3037 = vadd.f32 %v1639, %v3036
    %v3038 = vpop.f32.mrf.mxu0
    %v3039 = vadd.f32 %v1635, %v3038
    %v3040 = vpop.f32.mrf.mxu0
    %v3041 = vadd.f32 %v1639, %v3040
    %3042 = vmatprep.mubr.bf16.mxu0 %v1375
    %3043 = vmatmul.mubr.bf16.gmra.mxu0 %v1374
    %v3044 = vpop.f32.mrf.mxu0
    %v3045 = vadd.f32 %v1635, %v3044
    %v3046 = vpop.f32.mrf.mxu0
    %v3047 = vadd.f32 %v1639, %v3046
    %v3048 = vpop.f32.mrf.mxu0
    %v3049 = vadd.f32 %v1635, %v3048
    %v3050 = vpop.f32.mrf.mxu0
    %v3051 = vadd.f32 %v1639, %v3050
    %3052 = vmatprep.mubr.bf16.mxu0 %v1379
    %3053 = vmatmul.mubr.bf16.gmra.mxu0 %v1378
    %v3054 = vpop.f32.mrf.mxu0
    %v3055 = vadd.f32 %v1635, %v3054
    %v3056 = vpop.f32.mrf.mxu0
    %v3057 = vadd.f32 %v1639, %v3056
    %v3058 = vpop.f32.mrf.mxu0
    %v3059 = vadd.f32 %v1635, %v3058
    %v3060 = vpop.f32.mrf.mxu0
    %v3061 = vadd.f32 %v1639, %v3060
    %3062 = vmatprep.mubr.bf16.mxu0 %v1383
    %3063 = vmatmul.mubr.bf16.gmra.mxu0 %v1382
    %v3064 = vpop.f32.mrf.mxu0
    %v3065 = vadd.f32 %v1635, %v3064
    %v3066 = vpop.f32.mrf.mxu0
    %v3067 = vadd.f32 %v1639, %v3066
    %v3068 = vpop.f32.mrf.mxu0
    %v3069 = vadd.f32 %v1635, %v3068
    %v3070 = vpop.f32.mrf.mxu0
    %v3071 = vadd.f32 %v1639, %v3070
    %3072 = vmatprep.mubr.bf16.mxu0 %v1387
    %3073 = vmatmul.mubr.bf16.gmra.mxu0 %v1386
    %v3074 = vpop.f32.mrf.mxu0
    %v3075 = vadd.f32 %v1635, %v3074
    %v3076 = vpop.f32.mrf.mxu0
    %v3077 = vadd.f32 %v1639, %v3076
    %v3078 = vpop.f32.mrf.mxu0
    %v3079 = vadd.f32 %v1635, %v3078
    %v3080 = vpop.f32.mrf.mxu0
    %v3081 = vadd.f32 %v1639, %v3080
    %3082 = vmatprep.mubr.bf16.mxu0 %v1391
    %3083 = vmatmul.mubr.bf16.gmra.mxu0 %v1390
    %v3084 = vpop.f32.mrf.mxu0
    %v3085 = vadd.f32 %v1635, %v3084
    %v3086 = vpop.f32.mrf.mxu0
    %v3087 = vadd.f32 %v1639, %v3086
    %v3088 = vpop.f32.mrf.mxu0
    %v3089 = vadd.f32 %v1635, %v3088
    %v3090 = vpop.f32.mrf.mxu0
    %v3091 = vadd.f32 %v1639, %v3090
    %3092 = vmatprep.mubr.bf16.mxu0 %v1395
    %3093 = vmatmul.mubr.bf16.gmra.mxu0 %v1394
    %v3094 = vpop.f32.mrf.mxu0
    %v3095 = vadd.f32 %v1635, %v3094
    %v3096 = vpop.f32.mrf.mxu0
    %v3097 = vadd.f32 %v1639, %v3096
    %v3098 = vpop.f32.mrf.mxu0
    %v3099 = vadd.f32 %v1635, %v3098
    %v3100 = vpop.f32.mrf.mxu0
    %v3101 = vadd.f32 %v1639, %v3100
    %3102 = vmatprep.mubr.bf16.mxu0 %v1399
    %3103 = vmatmul.mubr.bf16.gmra.mxu0 %v1398
    %v3104 = vpop.f32.mrf.mxu0
    %v3105 = vadd.f32 %v1635, %v3104
    %v3106 = vpop.f32.mrf.mxu0
    %v3107 = vadd.f32 %v1639, %v3106
    %v3108 = vpop.f32.mrf.mxu0
    %v3109 = vadd.f32 %v1635, %v3108
    %v3110 = vpop.f32.mrf.mxu0
    %v3111 = vadd.f32 %v1639, %v3110
    %3112 = vmatprep.mubr.bf16.mxu0 %v1403
    %3113 = vmatmul.mubr.bf16.gmra.mxu0 %v1402
    %v3114 = vpop.f32.mrf.mxu0
    %v3115 = vadd.f32 %v1635, %v3114
    %v3116 = vpop.f32.mrf.mxu0
    %v3117 = vadd.f32 %v1639, %v3116
    %v3118 = vpop.f32.mrf.mxu0
    %v3119 = vadd.f32 %v1635, %v3118
    %v3120 = vpop.f32.mrf.mxu0
    %v3121 = vadd.f32 %v1639, %v3120
    %3122 = vmatprep.mubr.bf16.mxu0 %v1407
    %3123 = vmatmul.mubr.bf16.gmra.mxu0 %v1406
    %v3124 = vpop.f32.mrf.mxu0
    %v3125 = vadd.f32 %v1635, %v3124
    %v3126 = vpop.f32.mrf.mxu0
    %v3127 = vadd.f32 %v1639, %v3126
    %v3128 = vpop.f32.mrf.mxu0
    %v3129 = vadd.f32 %v1635, %v3128
    %v3130 = vpop.f32.mrf.mxu0
    %v3131 = vadd.f32 %v1639, %v3130
    %3132 = vmatprep.mubr.bf16.mxu0 %v1411
    %3133 = vmatmul.mubr.bf16.gmra.mxu0 %v1410
    %v3134 = vpop.f32.mrf.mxu0
    %v3135 = vadd.f32 %v1635, %v3134
    %v3136 = vpop.f32.mrf.mxu0
    %v3137 = vadd.f32 %v1639, %v3136
    %v3138 = vpop.f32.mrf.mxu0
    %v3139 = vadd.f32 %v1635, %v3138
    %v3140 = vpop.f32.mrf.mxu0
    %v3141 = vadd.f32 %v1639, %v3140
    %3142 = vmatprep.mubr.bf16.mxu0 %v1415
    %3143 = vmatmul.mubr.bf16.gmra.mxu0 %v1414
    %v3144 = vpop.f32.mrf.mxu0
    %v3145 = vadd.f32 %v1635, %v3144
    %v3146 = vpop.f32.mrf.mxu0
    %v3147 = vadd.f32 %v1639, %v3146
    %v3148 = vpop.f32.mrf.mxu0
    %v3149 = vadd.f32 %v1635, %v3148
    %v3150 = vpop.f32.mrf.mxu0
    %v3151 = vadd.f32 %v1639, %v3150
    %3152 = vmatprep.mubr.bf16.mxu0 %v1419
    %3153 = vmatmul.mubr.bf16.gmra.mxu0 %v1418
    %v3154 = vpop.f32.mrf.mxu0
    %v3155 = vadd.f32 %v1635, %v3154
    %v3156 = vpop.f32.mrf.mxu0
    %v3157 = vadd.f32 %v1639, %v3156
    %v3158 = vpop.f32.mrf.mxu0
    %v3159 = vadd.f32 %v1635, %v3158
    %v3160 = vpop.f32.mrf.mxu0
    %v3161 = vadd.f32 %v1639, %v3160
    %3162 = vmatprep.mubr.bf16.mxu0 %v1423
    %3163 = vmatmul.mubr.bf16.gmra.mxu0 %v1422
    %v3164 = vpop.f32.mrf.mxu0
    %v3165 = vadd.f32 %v1635, %v3164
    %v3166 = vpop.f32.mrf.mxu0
    %v3167 = vadd.f32 %v1639, %v3166
    %v3168 = vpop.f32.mrf.mxu0
    %v3169 = vadd.f32 %v1635, %v3168
    %v3170 = vpop.f32.mrf.mxu0
    %v3171 = vadd.f32 %v1639, %v3170
    %3172 = vmatprep.mubr.bf16.mxu0 %v1427
    %3173 = vmatmul.mubr.bf16.gmra.mxu0 %v1426
    %v3174 = vpop.f32.mrf.mxu0
    %v3175 = vadd.f32 %v1635, %v3174
    %v3176 = vpop.f32.mrf.mxu0
    %v3177 = vadd.f32 %v1639, %v3176
    %v3178 = vpop.f32.mrf.mxu0
    %v3179 = vadd.f32 %v1635, %v3178
    %v3180 = vpop.f32.mrf.mxu0
    %v3181 = vadd.f32 %v1639, %v3180
    %3182 = vmatprep.mubr.bf16.mxu0 %v1431
    %3183 = vmatmul.mubr.bf16.gmra.mxu0 %v1430
    %v3184 = vpop.f32.mrf.mxu0
    %v3185 = vadd.f32 %v1635, %v3184
    %v3186 = vpop.f32.mrf.mxu0
    %v3187 = vadd.f32 %v1639, %v3186
    %v3188 = vpop.f32.mrf.mxu0
    %v3189 = vadd.f32 %v1635, %v3188
    %v3190 = vpop.f32.mrf.mxu0
    %v3191 = vadd.f32 %v1639, %v3190
    %3192 = vmatprep.mubr.bf16.mxu0 %v1435
    %3193 = vmatmul.mubr.bf16.gmra.mxu0 %v1434
    %v3194 = vpop.f32.mrf.mxu0
    %v3195 = vadd.f32 %v1635, %v3194
    %v3196 = vpop.f32.mrf.mxu0
    %v3197 = vadd.f32 %v1639, %v3196
    %v3198 = vpop.f32.mrf.mxu0
    %v3199 = vadd.f32 %v1635, %v3198
    %v3200 = vpop.f32.mrf.mxu0
    %v3201 = vadd.f32 %v1639, %v3200
    %3202 = vmatprep.mubr.bf16.mxu0 %v1439
    %3203 = vmatmul.mubr.bf16.gmra.mxu0 %v1438
    %v3204 = vpop.f32.mrf.mxu0
    %v3205 = vadd.f32 %v1635, %v3204
    %v3206 = vpop.f32.mrf.mxu0
    %v3207 = vadd.f32 %v1639, %v3206
    %v3208 = vpop.f32.mrf.mxu0
    %v3209 = vadd.f32 %v1635, %v3208
    %v3210 = vpop.f32.mrf.mxu0
    %v3211 = vadd.f32 %v1639, %v3210
    %3212 = vmatprep.mubr.bf16.mxu0 %v1443
    %3213 = vmatmul.mubr.bf16.gmra.mxu0 %v1442
    %v3214 = vpop.f32.mrf.mxu0
    %v3215 = vadd.f32 %v1635, %v3214
    %v3216 = vpop.f32.mrf.mxu0
    %v3217 = vadd.f32 %v1639, %v3216
    %v3218 = vpop.f32.mrf.mxu0
    %v3219 = vadd.f32 %v1635, %v3218
    %v3220 = vpop.f32.mrf.mxu0
    %v3221 = vadd.f32 %v1639, %v3220
    %3222 = vmatprep.mubr.bf16.mxu0 %v1447
    %3223 = vmatmul.mubr.bf16.gmra.mxu0 %v1446
    %v3224 = vpop.f32.mrf.mxu0
    %v3225 = vadd.f32 %v1635, %v3224
    %v3226 = vpop.f32.mrf.mxu0
    %v3227 = vadd.f32 %v1639, %v3226
    %v3228 = vpop.f32.mrf.mxu0
    %v3229 = vadd.f32 %v1635, %v3228
    %v3230 = vpop.f32.mrf.mxu0
    %v3231 = vadd.f32 %v1639, %v3230
    %3232 = vmatprep.mubr.bf16.mxu0 %v1451
    %3233 = vmatmul.mubr.bf16.gmra.mxu0 %v1450
    %v3234 = vpop.f32.mrf.mxu0
    %v3235 = vadd.f32 %v1635, %v3234
    %v3236 = vpop.f32.mrf.mxu0
    %v3237 = vadd.f32 %v1639, %v3236
    %v3238 = vpop.f32.mrf.mxu0
    %v3239 = vadd.f32 %v1635, %v3238
    %v3240 = vpop.f32.mrf.mxu0
    %v3241 = vadd.f32 %v1639, %v3240
    %3242 = vmatprep.mubr.bf16.mxu0 %v1455
    %3243 = vmatmul.mubr.bf16.gmra.mxu0 %v1454
    %v3244 = vpop.f32.mrf.mxu0
    %v3245 = vadd.f32 %v1635, %v3244
    %v3246 = vpop.f32.mrf.mxu0
    %v3247 = vadd.f32 %v1639, %v3246
    %v3248 = vpop.f32.mrf.mxu0
    %v3249 = vadd.f32 %v1635, %v3248
    %v3250 = vpop.f32.mrf.mxu0
    %v3251 = vadd.f32 %v1639, %v3250
    %3252 = vmatprep.mubr.bf16.mxu0 %v1459
    %3253 = vmatmul.mubr.bf16.gmra.mxu0 %v1458
    %v3254 = vpop.f32.mrf.mxu0
    %v3255 = vadd.f32 %v1635, %v3254
    %v3256 = vpop.f32.mrf.mxu0
    %v3257 = vadd.f32 %v1639, %v3256
    %v3258 = vpop.f32.mrf.mxu0
    %v3259 = vadd.f32 %v1635, %v3258
    %v3260 = vpop.f32.mrf.mxu0
    %v3261 = vadd.f32 %v1639, %v3260
    %3262 = vmatprep.mubr.bf16.mxu0 %v1463
    %3263 = vmatmul.mubr.bf16.gmra.mxu0 %v1462
    %v3264 = vpop.f32.mrf.mxu0
    %v3265 = vadd.f32 %v1635, %v3264
    %v3266 = vpop.f32.mrf.mxu0
    %v3267 = vadd.f32 %v1639, %v3266
    %v3268 = vpop.f32.mrf.mxu0
    %v3269 = vadd.f32 %v1635, %v3268
    %v3270 = vpop.f32.mrf.mxu0
    %v3271 = vadd.f32 %v1639, %v3270
    %3272 = vmatprep.mubr.bf16.mxu0 %v1467
    %3273 = vmatmul.mubr.bf16.gmra.mxu0 %v1466
    %v3274 = vpop.f32.mrf.mxu0
    %v3275 = vadd.f32 %v1635, %v3274
    %v3276 = vpop.f32.mrf.mxu0
    %v3277 = vadd.f32 %v1639, %v3276
    %v3278 = vpop.f32.mrf.mxu0
    %v3279 = vadd.f32 %v1635, %v3278
    %v3280 = vpop.f32.mrf.mxu0
    %v3281 = vadd.f32 %v1639, %v3280
    %3282 = vmatprep.mubr.bf16.mxu0 %v1471
    %3283 = vmatmul.mubr.bf16.gmra.mxu0 %v1470
    %v3284 = vpop.f32.mrf.mxu0
    %v3285 = vadd.f32 %v1635, %v3284
    %v3286 = vpop.f32.mrf.mxu0
    %v3287 = vadd.f32 %v1639, %v3286
    %v3288 = vpop.f32.mrf.mxu0
    %v3289 = vadd.f32 %v1635, %v3288
    %v3290 = vpop.f32.mrf.mxu0
    %v3291 = vadd.f32 %v1639, %v3290
    %3292 = vmatprep.mubr.bf16.mxu0 %v1475
    %3293 = vmatmul.mubr.bf16.gmra.mxu0 %v1474
    %v3294 = vpop.f32.mrf.mxu0
    %v3295 = vadd.f32 %v1635, %v3294
    %v3296 = vpop.f32.mrf.mxu0
    %v3297 = vadd.f32 %v1639, %v3296
    %v3298 = vpop.f32.mrf.mxu0
    %v3299 = vadd.f32 %v1635, %v3298
    %v3300 = vpop.f32.mrf.mxu0
    %v3301 = vadd.f32 %v1639, %v3300
    %3302 = vmatprep.mubr.bf16.mxu0 %v1479
    %3303 = vmatmul.mubr.bf16.gmra.mxu0 %v1478
    %v3304 = vpop.f32.mrf.mxu0
    %v3305 = vadd.f32 %v1635, %v3304
    %v3306 = vpop.f32.mrf.mxu0
    %v3307 = vadd.f32 %v1639, %v3306
    %v3308 = vpop.f32.mrf.mxu0
    %v3309 = vadd.f32 %v1635, %v3308
    %v3310 = vpop.f32.mrf.mxu0
    %v3311 = vadd.f32 %v1639, %v3310
    %3312 = vmatprep.mubr.bf16.mxu0 %v1483
    %3313 = vmatmul.mubr.bf16.gmra.mxu0 %v1482
    %v3314 = vpop.f32.mrf.mxu0
    %v3315 = vadd.f32 %v1635, %v3314
    %v3316 = vpop.f32.mrf.mxu0
    %v3317 = vadd.f32 %v1639, %v3316
    %v3318 = vpop.f32.mrf.mxu0
    %v3319 = vadd.f32 %v1635, %v3318
    %v3320 = vpop.f32.mrf.mxu0
    %v3321 = vadd.f32 %v1639, %v3320
    %3322 = vmatprep.mubr.bf16.mxu0 %v1487
    %3323 = vmatmul.mubr.bf16.gmra.mxu0 %v1486
    %v3324 = vpop.f32.mrf.mxu0
    %v3325 = vadd.f32 %v1635, %v3324
    %v3326 = vpop.f32.mrf.mxu0
    %v3327 = vadd.f32 %v1639, %v3326
    %v3328 = vpop.f32.mrf.mxu0
    %v3329 = vadd.f32 %v1635, %v3328
    %v3330 = vpop.f32.mrf.mxu0
    %v3331 = vadd.f32 %v1639, %v3330
    %3332 = vmatprep.mubr.bf16.mxu0 %v1491
    %3333 = vmatmul.mubr.bf16.gmra.mxu0 %v1490
    %v3334 = vpop.f32.mrf.mxu0
    %v3335 = vadd.f32 %v1635, %v3334
    %v3336 = vpop.f32.mrf.mxu0
    %v3337 = vadd.f32 %v1639, %v3336
    %v3338 = vpop.f32.mrf.mxu0
    %v3339 = vadd.f32 %v1635, %v3338
    %v3340 = vpop.f32.mrf.mxu0
    %v3341 = vadd.f32 %v1639, %v3340
    %3342 = vdwg.mxu0
    %3343 = vmatprep.subr.bf16.mxu0 %v2123
    %3344 = vmatpush1.bf16.msra.mxu0 %v2122
    %3345 = vmatprep.subr.bf16.mxu0 %v2119
    %3346 = vmatpush1.bf16.msra.mxu0 %v2118
    %3347 = vmatprep.subr.bf16.mxu0 %v2115
    %3348 = vmatpush1.bf16.msra.mxu0 %v2114
    %3349 = vmatprep.subr.bf16.mxu0 %v2111
    %3350 = vmatpush1.bf16.msra.mxu0 %v2110
    %3351 = vmatprep.subr.bf16.mxu0 %v2107
    %3352 = vmatpush1.bf16.msra.mxu0 %v2106
    %3353 = vmatprep.subr.bf16.mxu0 %v2103
    %3354 = vmatpush1.bf16.msra.mxu0 %v2102
    %3355 = vmatprep.subr.bf16.mxu0 %v2099
    %3356 = vmatpush1.bf16.msra.mxu0 %v2098
    %3357 = vmatprep.subr.bf16.mxu0 %v2095
    %3358 = vmatpush1.bf16.msra.mxu0 %v2094
    %3359 = vmatprep.subr.bf16.mxu0 %v2155
    %3360 = vmatpush2.bf16.msra.mxu0 %v2154
    %3361 = vmatprep.subr.bf16.mxu0 %v2151
    %3362 = vmatpush2.bf16.msra.mxu0 %v2150
    %3363 = vmatprep.subr.bf16.mxu0 %v2147
    %3364 = vmatpush2.bf16.msra.mxu0 %v2146
    %3365 = vmatprep.subr.bf16.mxu0 %v2143
    %3366 = vmatpush2.bf16.msra.mxu0 %v2142
    %3367 = vmatprep.subr.bf16.mxu0 %v2139
    %3368 = vmatpush2.bf16.msra.mxu0 %v2138
    %3369 = vmatprep.subr.bf16.mxu0 %v2135
    %3370 = vmatpush2.bf16.msra.mxu0 %v2134
    %3371 = vmatprep.subr.bf16.mxu0 %v2131
    %3372 = vmatpush2.bf16.msra.mxu0 %v2130
    %3373 = vmatprep.subr.bf16.mxu0 %v2127
    %3374 = vmatpush2.bf16.msra.mxu0 %v2126
    %3375 = vmatprep.mubr.bf16.mxu0 %v1369
    %3376 = vmatmul.mubr.bf16.gmra.mxu0 %v1368
    %v3377 = vpop.f32.mrf.mxu0
    %v3378 = vadd.f32 %v3025, %v3377
    %v3379 = vpop.f32.mrf.mxu0
    %v3380 = vadd.f32 %v3027, %v3379
    %v3381 = vpop.f32.mrf.mxu0
    %v3382 = vadd.f32 %v3029, %v3381
    %v3383 = vpop.f32.mrf.mxu0
    %v3384 = vadd.f32 %v3031, %v3383
    %3385 = vmatprep.mubr.bf16.mxu0 %v1373
    %3386 = vmatmul.mubr.bf16.gmra.mxu0 %v1372
    %v3387 = vpop.f32.mrf.mxu0
    %v3388 = vadd.f32 %v3035, %v3387
    %v3389 = vpop.f32.mrf.mxu0
    %v3390 = vadd.f32 %v3037, %v3389
    %v3391 = vpop.f32.mrf.mxu0
    %v3392 = vadd.f32 %v3039, %v3391
    %v3393 = vpop.f32.mrf.mxu0
    %v3394 = vadd.f32 %v3041, %v3393
    %3395 = vmatprep.mubr.bf16.mxu0 %v1377
    %3396 = vmatmul.mubr.bf16.gmra.mxu0 %v1376
    %v3397 = vpop.f32.mrf.mxu0
    %v3398 = vadd.f32 %v3045, %v3397
    %v3399 = vpop.f32.mrf.mxu0
    %v3400 = vadd.f32 %v3047, %v3399
    %v3401 = vpop.f32.mrf.mxu0
    %v3402 = vadd.f32 %v3049, %v3401
    %v3403 = vpop.f32.mrf.mxu0
    %v3404 = vadd.f32 %v3051, %v3403
    %3405 = vmatprep.mubr.bf16.mxu0 %v1381
    %3406 = vmatmul.mubr.bf16.gmra.mxu0 %v1380
    %v3407 = vpop.f32.mrf.mxu0
    %v3408 = vadd.f32 %v3055, %v3407
    %v3409 = vpop.f32.mrf.mxu0
    %v3410 = vadd.f32 %v3057, %v3409
    %v3411 = vpop.f32.mrf.mxu0
    %v3412 = vadd.f32 %v3059, %v3411
    %v3413 = vpop.f32.mrf.mxu0
    %v3414 = vadd.f32 %v3061, %v3413
    %3415 = vmatprep.mubr.bf16.mxu0 %v1385
    %3416 = vmatmul.mubr.bf16.gmra.mxu0 %v1384
    %v3417 = vpop.f32.mrf.mxu0
    %v3418 = vadd.f32 %v3065, %v3417
    %v3419 = vpop.f32.mrf.mxu0
    %v3420 = vadd.f32 %v3067, %v3419
    %v3421 = vpop.f32.mrf.mxu0
    %v3422 = vadd.f32 %v3069, %v3421
    %v3423 = vpop.f32.mrf.mxu0
    %v3424 = vadd.f32 %v3071, %v3423
    %3425 = vmatprep.mubr.bf16.mxu0 %v1389
    %3426 = vmatmul.mubr.bf16.gmra.mxu0 %v1388
    %v3427 = vpop.f32.mrf.mxu0
    %v3428 = vadd.f32 %v3075, %v3427
    %v3429 = vpop.f32.mrf.mxu0
    %v3430 = vadd.f32 %v3077, %v3429
    %v3431 = vpop.f32.mrf.mxu0
    %v3432 = vadd.f32 %v3079, %v3431
    %v3433 = vpop.f32.mrf.mxu0
    %v3434 = vadd.f32 %v3081, %v3433
    %3435 = vmatprep.mubr.bf16.mxu0 %v1393
    %3436 = vmatmul.mubr.bf16.gmra.mxu0 %v1392
    %v3437 = vpop.f32.mrf.mxu0
    %v3438 = vadd.f32 %v3085, %v3437
    %v3439 = vpop.f32.mrf.mxu0
    %v3440 = vadd.f32 %v3087, %v3439
    %v3441 = vpop.f32.mrf.mxu0
    %v3442 = vadd.f32 %v3089, %v3441
    %v3443 = vpop.f32.mrf.mxu0
    %v3444 = vadd.f32 %v3091, %v3443
    %3445 = vmatprep.mubr.bf16.mxu0 %v1397
    %3446 = vmatmul.mubr.bf16.gmra.mxu0 %v1396
    %v3447 = vpop.f32.mrf.mxu0
    %v3448 = vadd.f32 %v3095, %v3447
    %v3449 = vpop.f32.mrf.mxu0
    %v3450 = vadd.f32 %v3097, %v3449
    %v3451 = vpop.f32.mrf.mxu0
    %v3452 = vadd.f32 %v3099, %v3451
    %v3453 = vpop.f32.mrf.mxu0
    %v3454 = vadd.f32 %v3101, %v3453
    %3455 = vmatprep.mubr.bf16.mxu0 %v1401
    %3456 = vmatmul.mubr.bf16.gmra.mxu0 %v1400
    %v3457 = vpop.f32.mrf.mxu0
    %v3458 = vadd.f32 %v3105, %v3457
    %v3459 = vpop.f32.mrf.mxu0
    %v3460 = vadd.f32 %v3107, %v3459
    %v3461 = vpop.f32.mrf.mxu0
    %v3462 = vadd.f32 %v3109, %v3461
    %v3463 = vpop.f32.mrf.mxu0
    %v3464 = vadd.f32 %v3111, %v3463
    %3465 = vmatprep.mubr.bf16.mxu0 %v1405
    %3466 = vmatmul.mubr.bf16.gmra.mxu0 %v1404
    %v3467 = vpop.f32.mrf.mxu0
    %v3468 = vadd.f32 %v3115, %v3467
    %v3469 = vpop.f32.mrf.mxu0
    %v3470 = vadd.f32 %v3117, %v3469
    %v3471 = vpop.f32.mrf.mxu0
    %v3472 = vadd.f32 %v3119, %v3471
    %v3473 = vpop.f32.mrf.mxu0
    %v3474 = vadd.f32 %v3121, %v3473
    %3475 = vmatprep.mubr.bf16.mxu0 %v1409
    %3476 = vmatmul.mubr.bf16.gmra.mxu0 %v1408
    %v3477 = vpop.f32.mrf.mxu0
    %v3478 = vadd.f32 %v3125, %v3477
    %v3479 = vpop.f32.mrf.mxu0
    %v3480 = vadd.f32 %v3127, %v3479
    %v3481 = vpop.f32.mrf.mxu0
    %v3482 = vadd.f32 %v3129, %v3481
    %v3483 = vpop.f32.mrf.mxu0
    %v3484 = vadd.f32 %v3131, %v3483
    %3485 = vmatprep.mubr.bf16.mxu0 %v1413
    %3486 = vmatmul.mubr.bf16.gmra.mxu0 %v1412
    %v3487 = vpop.f32.mrf.mxu0
    %v3488 = vadd.f32 %v3135, %v3487
    %v3489 = vpop.f32.mrf.mxu0
    %v3490 = vadd.f32 %v3137, %v3489
    %v3491 = vpop.f32.mrf.mxu0
    %v3492 = vadd.f32 %v3139, %v3491
    %v3493 = vpop.f32.mrf.mxu0
    %v3494 = vadd.f32 %v3141, %v3493
    %3495 = vmatprep.mubr.bf16.mxu0 %v1417
    %3496 = vmatmul.mubr.bf16.gmra.mxu0 %v1416
    %v3497 = vpop.f32.mrf.mxu0
    %v3498 = vadd.f32 %v3145, %v3497
    %v3499 = vpop.f32.mrf.mxu0
    %v3500 = vadd.f32 %v3147, %v3499
    %v3501 = vpop.f32.mrf.mxu0
    %v3502 = vadd.f32 %v3149, %v3501
    %v3503 = vpop.f32.mrf.mxu0
    %v3504 = vadd.f32 %v3151, %v3503
    %3505 = vmatprep.mubr.bf16.mxu0 %v1421
    %3506 = vmatmul.mubr.bf16.gmra.mxu0 %v1420
    %v3507 = vpop.f32.mrf.mxu0
    %v3508 = vadd.f32 %v3155, %v3507
    %v3509 = vpop.f32.mrf.mxu0
    %v3510 = vadd.f32 %v3157, %v3509
    %v3511 = vpop.f32.mrf.mxu0
    %v3512 = vadd.f32 %v3159, %v3511
    %v3513 = vpop.f32.mrf.mxu0
    %v3514 = vadd.f32 %v3161, %v3513
    %3515 = vmatprep.mubr.bf16.mxu0 %v1425
    %3516 = vmatmul.mubr.bf16.gmra.mxu0 %v1424
    %v3517 = vpop.f32.mrf.mxu0
    %v3518 = vadd.f32 %v3165, %v3517
    %v3519 = vpop.f32.mrf.mxu0
    %v3520 = vadd.f32 %v3167, %v3519
    %v3521 = vpop.f32.mrf.mxu0
    %v3522 = vadd.f32 %v3169, %v3521
    %v3523 = vpop.f32.mrf.mxu0
    %v3524 = vadd.f32 %v3171, %v3523
    %3525 = vmatprep.mubr.bf16.mxu0 %v1429
    %3526 = vmatmul.mubr.bf16.gmra.mxu0 %v1428
    %v3527 = vpop.f32.mrf.mxu0
    %v3528 = vadd.f32 %v3175, %v3527
    %v3529 = vpop.f32.mrf.mxu0
    %v3530 = vadd.f32 %v3177, %v3529
    %v3531 = vpop.f32.mrf.mxu0
    %v3532 = vadd.f32 %v3179, %v3531
    %v3533 = vpop.f32.mrf.mxu0
    %v3534 = vadd.f32 %v3181, %v3533
    %3535 = vmatprep.mubr.bf16.mxu0 %v1433
    %3536 = vmatmul.mubr.bf16.gmra.mxu0 %v1432
    %v3537 = vpop.f32.mrf.mxu0
    %v3538 = vadd.f32 %v3185, %v3537
    %v3539 = vpop.f32.mrf.mxu0
    %v3540 = vadd.f32 %v3187, %v3539
    %v3541 = vpop.f32.mrf.mxu0
    %v3542 = vadd.f32 %v3189, %v3541
    %v3543 = vpop.f32.mrf.mxu0
    %v3544 = vadd.f32 %v3191, %v3543
    %3545 = vmatprep.mubr.bf16.mxu0 %v1437
    %3546 = vmatmul.mubr.bf16.gmra.mxu0 %v1436
    %v3547 = vpop.f32.mrf.mxu0
    %v3548 = vadd.f32 %v3195, %v3547
    %v3549 = vpop.f32.mrf.mxu0
    %v3550 = vadd.f32 %v3197, %v3549
    %v3551 = vpop.f32.mrf.mxu0
    %v3552 = vadd.f32 %v3199, %v3551
    %v3553 = vpop.f32.mrf.mxu0
    %v3554 = vadd.f32 %v3201, %v3553
    %3555 = vmatprep.mubr.bf16.mxu0 %v1441
    %3556 = vmatmul.mubr.bf16.gmra.mxu0 %v1440
    %v3557 = vpop.f32.mrf.mxu0
    %v3558 = vadd.f32 %v3205, %v3557
    %v3559 = vpop.f32.mrf.mxu0
    %v3560 = vadd.f32 %v3207, %v3559
    %v3561 = vpop.f32.mrf.mxu0
    %v3562 = vadd.f32 %v3209, %v3561
    %v3563 = vpop.f32.mrf.mxu0
    %v3564 = vadd.f32 %v3211, %v3563
    %3565 = vmatprep.mubr.bf16.mxu0 %v1445
    %3566 = vmatmul.mubr.bf16.gmra.mxu0 %v1444
    %v3567 = vpop.f32.mrf.mxu0
    %v3568 = vadd.f32 %v3215, %v3567
    %v3569 = vpop.f32.mrf.mxu0
    %v3570 = vadd.f32 %v3217, %v3569
    %v3571 = vpop.f32.mrf.mxu0
    %v3572 = vadd.f32 %v3219, %v3571
    %v3573 = vpop.f32.mrf.mxu0
    %v3574 = vadd.f32 %v3221, %v3573
    %3575 = vmatprep.mubr.bf16.mxu0 %v1449
    %3576 = vmatmul.mubr.bf16.gmra.mxu0 %v1448
    %v3577 = vpop.f32.mrf.mxu0
    %v3578 = vadd.f32 %v3225, %v3577
    %v3579 = vpop.f32.mrf.mxu0
    %v3580 = vadd.f32 %v3227, %v3579
    %v3581 = vpop.f32.mrf.mxu0
    %v3582 = vadd.f32 %v3229, %v3581
    %v3583 = vpop.f32.mrf.mxu0
    %v3584 = vadd.f32 %v3231, %v3583
    %3585 = vmatprep.mubr.bf16.mxu0 %v1453
    %3586 = vmatmul.mubr.bf16.gmra.mxu0 %v1452
    %v3587 = vpop.f32.mrf.mxu0
    %v3588 = vadd.f32 %v3235, %v3587
    %v3589 = vpop.f32.mrf.mxu0
    %v3590 = vadd.f32 %v3237, %v3589
    %v3591 = vpop.f32.mrf.mxu0
    %v3592 = vadd.f32 %v3239, %v3591
    %v3593 = vpop.f32.mrf.mxu0
    %v3594 = vadd.f32 %v3241, %v3593
    %3595 = vmatprep.mubr.bf16.mxu0 %v1457
    %3596 = vmatmul.mubr.bf16.gmra.mxu0 %v1456
    %v3597 = vpop.f32.mrf.mxu0
    %v3598 = vadd.f32 %v3245, %v3597
    %v3599 = vpop.f32.mrf.mxu0
    %v3600 = vadd.f32 %v3247, %v3599
    %v3601 = vpop.f32.mrf.mxu0
    %v3602 = vadd.f32 %v3249, %v3601
    %v3603 = vpop.f32.mrf.mxu0
    %v3604 = vadd.f32 %v3251, %v3603
    %3605 = vmatprep.mubr.bf16.mxu0 %v1461
    %3606 = vmatmul.mubr.bf16.gmra.mxu0 %v1460
    %v3607 = vpop.f32.mrf.mxu0
    %v3608 = vadd.f32 %v3255, %v3607
    %v3609 = vpop.f32.mrf.mxu0
    %v3610 = vadd.f32 %v3257, %v3609
    %v3611 = vpop.f32.mrf.mxu0
    %v3612 = vadd.f32 %v3259, %v3611
    %v3613 = vpop.f32.mrf.mxu0
    %v3614 = vadd.f32 %v3261, %v3613
    %3615 = vmatprep.mubr.bf16.mxu0 %v1465
    %3616 = vmatmul.mubr.bf16.gmra.mxu0 %v1464
    %v3617 = vpop.f32.mrf.mxu0
    %v3618 = vadd.f32 %v3265, %v3617
    %v3619 = vpop.f32.mrf.mxu0
    %v3620 = vadd.f32 %v3267, %v3619
    %v3621 = vpop.f32.mrf.mxu0
    %v3622 = vadd.f32 %v3269, %v3621
    %v3623 = vpop.f32.mrf.mxu0
    %v3624 = vadd.f32 %v3271, %v3623
    %3625 = vmatprep.mubr.bf16.mxu0 %v1469
    %3626 = vmatmul.mubr.bf16.gmra.mxu0 %v1468
    %v3627 = vpop.f32.mrf.mxu0
    %v3628 = vadd.f32 %v3275, %v3627
    %v3629 = vpop.f32.mrf.mxu0
    %v3630 = vadd.f32 %v3277, %v3629
    %v3631 = vpop.f32.mrf.mxu0
    %v3632 = vadd.f32 %v3279, %v3631
    %v3633 = vpop.f32.mrf.mxu0
    %v3634 = vadd.f32 %v3281, %v3633
    %3635 = vmatprep.mubr.bf16.mxu0 %v1473
    %3636 = vmatmul.mubr.bf16.gmra.mxu0 %v1472
    %v3637 = vpop.f32.mrf.mxu0
    %v3638 = vadd.f32 %v3285, %v3637
    %v3639 = vpop.f32.mrf.mxu0
    %v3640 = vadd.f32 %v3287, %v3639
    %v3641 = vpop.f32.mrf.mxu0
    %v3642 = vadd.f32 %v3289, %v3641
    %v3643 = vpop.f32.mrf.mxu0
    %v3644 = vadd.f32 %v3291, %v3643
    %3645 = vmatprep.mubr.bf16.mxu0 %v1477
    %3646 = vmatmul.mubr.bf16.gmra.mxu0 %v1476
    %v3647 = vpop.f32.mrf.mxu0
    %v3648 = vadd.f32 %v3295, %v3647
    %v3649 = vpop.f32.mrf.mxu0
    %v3650 = vadd.f32 %v3297, %v3649
    %v3651 = vpop.f32.mrf.mxu0
    %v3652 = vadd.f32 %v3299, %v3651
    %v3653 = vpop.f32.mrf.mxu0
    %v3654 = vadd.f32 %v3301, %v3653
    %3655 = vmatprep.mubr.bf16.mxu0 %v1481
    %3656 = vmatmul.mubr.bf16.gmra.mxu0 %v1480
    %v3657 = vpop.f32.mrf.mxu0
    %v3658 = vadd.f32 %v3305, %v3657
    %v3659 = vpop.f32.mrf.mxu0
    %v3660 = vadd.f32 %v3307, %v3659
    %v3661 = vpop.f32.mrf.mxu0
    %v3662 = vadd.f32 %v3309, %v3661
    %v3663 = vpop.f32.mrf.mxu0
    %v3664 = vadd.f32 %v3311, %v3663
    %3665 = vmatprep.mubr.bf16.mxu0 %v1485
    %3666 = vmatmul.mubr.bf16.gmra.mxu0 %v1484
    %v3667 = vpop.f32.mrf.mxu0
    %v3668 = vadd.f32 %v3315, %v3667
    %v3669 = vpop.f32.mrf.mxu0
    %v3670 = vadd.f32 %v3317, %v3669
    %v3671 = vpop.f32.mrf.mxu0
    %v3672 = vadd.f32 %v3319, %v3671
    %v3673 = vpop.f32.mrf.mxu0
    %v3674 = vadd.f32 %v3321, %v3673
    %3675 = vmatprep.mubr.bf16.mxu0 %v1489
    %3676 = vmatmul.mubr.bf16.gmra.mxu0 %v1488
    %v3677 = vpop.f32.mrf.mxu0
    %v3678 = vadd.f32 %v3325, %v3677
    %v3679 = vpop.f32.mrf.mxu0
    %v3680 = vadd.f32 %v3327, %v3679
    %v3681 = vpop.f32.mrf.mxu0
    %v3682 = vadd.f32 %v3329, %v3681
    %v3683 = vpop.f32.mrf.mxu0
    %v3684 = vadd.f32 %v3331, %v3683
    %3685 = vmatprep.mubr.bf16.mxu0 %v1493
    %3686 = vmatmul.mubr.bf16.gmra.mxu0 %v1492
    %v3687 = vpop.f32.mrf.mxu0
    %v3688 = vadd.f32 %v3335, %v3687
    %v3689 = vpop.f32.mrf.mxu0
    %v3690 = vadd.f32 %v3337, %v3689
    %v3691 = vpop.f32.mrf.mxu0
    %v3692 = vadd.f32 %v3339, %v3691
    %v3693 = vpop.f32.mrf.mxu0
    %v3694 = vadd.f32 %v3341, %v3693
    %3695 = vdwg.mxu0
    %v3696 = vmax.f32 %v2672, 0.0
    %v3697 = vmax.f32 %v2674, 0.0
    %v3698 = vmax.f32 %v3378, 0.0
    %v3699 = vmax.f32 %v3380, 0.0
    %v3700 = vmax.f32 %v2676, 0.0
    %v3701 = vmax.f32 %v2678, 0.0
    %v3702 = vmax.f32 %v3382, 0.0
    %v3703 = vmax.f32 %v3384, 0.0
    %v3704 = vmax.f32 %v2682, 0.0
    %v3705 = vmax.f32 %v2684, 0.0
    %v3706 = vmax.f32 %v3388, 0.0
    %v3707 = vmax.f32 %v3390, 0.0
    %v3708 = vmax.f32 %v2686, 0.0
    %v3709 = vmax.f32 %v2688, 0.0
    %v3710 = vmax.f32 %v3392, 0.0
    %v3711 = vmax.f32 %v3394, 0.0
    %v3712 = vmax.f32 %v2692, 0.0
    %v3713 = vmax.f32 %v2694, 0.0
    %v3714 = vmax.f32 %v3398, 0.0
    %v3715 = vmax.f32 %v3400, 0.0
    %v3716 = vmax.f32 %v2696, 0.0
    %v3717 = vmax.f32 %v2698, 0.0
    %v3718 = vmax.f32 %v3402, 0.0
    %v3719 = vmax.f32 %v3404, 0.0
    %v3720 = vmax.f32 %v2702, 0.0
    %v3721 = vmax.f32 %v2704, 0.0
    %v3722 = vmax.f32 %v3408, 0.0
    %v3723 = vmax.f32 %v3410, 0.0
    %v3724 = vmax.f32 %v2706, 0.0
    %v3725 = vmax.f32 %v2708, 0.0
    %v3726 = vmax.f32 %v3412, 0.0
    %v3727 = vmax.f32 %v3414, 0.0
    %v3728 = vmax.f32 %v2712, 0.0
    %v3729 = vmax.f32 %v2714, 0.0
    %v3730 = vmax.f32 %v3418, 0.0
    %v3731 = vmax.f32 %v3420, 0.0
    %v3732 = vmax.f32 %v2716, 0.0
    %v3733 = vmax.f32 %v2718, 0.0
    %v3734 = vmax.f32 %v3422, 0.0
    %v3735 = vmax.f32 %v3424, 0.0
    %v3736 = vmax.f32 %v2722, 0.0
    %v3737 = vmax.f32 %v2724, 0.0
    %v3738 = vmax.f32 %v3428, 0.0
    %v3739 = vmax.f32 %v3430, 0.0
    %v3740 = vmax.f32 %v2726, 0.0
    %v3741 = vmax.f32 %v2728, 0.0
    %v3742 = vmax.f32 %v3432, 0.0
    %v3743 = vmax.f32 %v3434, 0.0
    %v3744 = vmax.f32 %v2732, 0.0
    %v3745 = vmax.f32 %v2734, 0.0
    %v3746 = vmax.f32 %v3438, 0.0
    %v3747 = vmax.f32 %v3440, 0.0
    %v3748 = vmax.f32 %v2736, 0.0
    %v3749 = vmax.f32 %v2738, 0.0
    %v3750 = vmax.f32 %v3442, 0.0
    %v3751 = vmax.f32 %v3444, 0.0
    %v3752 = vmax.f32 %v2742, 0.0
    %v3753 = vmax.f32 %v2744, 0.0
    %v3754 = vmax.f32 %v3448, 0.0
    %v3755 = vmax.f32 %v3450, 0.0
    %v3756 = vmax.f32 %v2746, 0.0
    %v3757 = vmax.f32 %v2748, 0.0
    %v3758 = vmax.f32 %v3452, 0.0
    %v3759 = vmax.f32 %v3454, 0.0
    %v3760 = vmax.f32 %v2752, 0.0
    %v3761 = vmax.f32 %v2754, 0.0
    %v3762 = vmax.f32 %v3458, 0.0
    %v3763 = vmax.f32 %v3460, 0.0
    %v3764 = vmax.f32 %v2756, 0.0
    %v3765 = vmax.f32 %v2758, 0.0
    %v3766 = vmax.f32 %v3462, 0.0
    %v3767 = vmax.f32 %v3464, 0.0
    %v3768 = vmax.f32 %v2762, 0.0
    %v3769 = vmax.f32 %v2764, 0.0
    %v3770 = vmax.f32 %v3468, 0.0
    %v3771 = vmax.f32 %v3470, 0.0
    %v3772 = vmax.f32 %v2766, 0.0
    %v3773 = vmax.f32 %v2768, 0.0
    %v3774 = vmax.f32 %v3472, 0.0
    %v3775 = vmax.f32 %v3474, 0.0
    %v3776 = vmax.f32 %v2772, 0.0
    %v3777 = vmax.f32 %v2774, 0.0
    %v3778 = vmax.f32 %v3478, 0.0
    %v3779 = vmax.f32 %v3480, 0.0
    %v3780 = vmax.f32 %v2776, 0.0
    %v3781 = vmax.f32 %v2778, 0.0
    %v3782 = vmax.f32 %v3482, 0.0
    %v3783 = vmax.f32 %v3484, 0.0
    %v3784 = vmax.f32 %v2782, 0.0
    %v3785 = vmax.f32 %v2784, 0.0
    %v3786 = vmax.f32 %v3488, 0.0
    %v3787 = vmax.f32 %v3490, 0.0
    %v3788 = vmax.f32 %v2786, 0.0
    %v3789 = vmax.f32 %v2788, 0.0
    %v3790 = vmax.f32 %v3492, 0.0
    %v3791 = vmax.f32 %v3494, 0.0
    %v3792 = vmax.f32 %v2792, 0.0
    %v3793 = vmax.f32 %v2794, 0.0
    %v3794 = vmax.f32 %v3498, 0.0
    %v3795 = vmax.f32 %v3500, 0.0
    %v3796 = vmax.f32 %v2796, 0.0
    %v3797 = vmax.f32 %v2798, 0.0
    %v3798 = vmax.f32 %v3502, 0.0
    %v3799 = vmax.f32 %v3504, 0.0
    %v3800 = vmax.f32 %v2802, 0.0
    %v3801 = vmax.f32 %v2804, 0.0
    %v3802 = vmax.f32 %v3508, 0.0
    %v3803 = vmax.f32 %v3510, 0.0
    %v3804 = vmax.f32 %v2806, 0.0
    %v3805 = vmax.f32 %v2808, 0.0
    %v3806 = vmax.f32 %v3512, 0.0
    %v3807 = vmax.f32 %v3514, 0.0
    %v3808 = vmax.f32 %v2812, 0.0
    %v3809 = vmax.f32 %v2814, 0.0
    %v3810 = vmax.f32 %v3518, 0.0
    %v3811 = vmax.f32 %v3520, 0.0
    %v3812 = vmax.f32 %v2816, 0.0
    %v3813 = vmax.f32 %v2818, 0.0
    %v3814 = vmax.f32 %v3522, 0.0
    %v3815 = vmax.f32 %v3524, 0.0
    %v3816 = vmax.f32 %v2822, 0.0
    %v3817 = vmax.f32 %v2824, 0.0
    %v3818 = vmax.f32 %v3528, 0.0
    %v3819 = vmax.f32 %v3530, 0.0
    %v3820 = vmax.f32 %v2826, 0.0
    %v3821 = vmax.f32 %v2828, 0.0
    %v3822 = vmax.f32 %v3532, 0.0
    %v3823 = vmax.f32 %v3534, 0.0
    %v3824 = vmax.f32 %v2832, 0.0
    %v3825 = vmax.f32 %v2834, 0.0
    %v3826 = vmax.f32 %v3538, 0.0
    %v3827 = vmax.f32 %v3540, 0.0
    %v3828 = vmax.f32 %v2836, 0.0
    %v3829 = vmax.f32 %v2838, 0.0
    %v3830 = vmax.f32 %v3542, 0.0
    %v3831 = vmax.f32 %v3544, 0.0
    %v3832 = vmax.f32 %v2842, 0.0
    %v3833 = vmax.f32 %v2844, 0.0
    %v3834 = vmax.f32 %v3548, 0.0
    %v3835 = vmax.f32 %v3550, 0.0
    %v3836 = vmax.f32 %v2846, 0.0
    %v3837 = vmax.f32 %v2848, 0.0
    %v3838 = vmax.f32 %v3552, 0.0
    %v3839 = vmax.f32 %v3554, 0.0
    %v3840 = vmax.f32 %v2852, 0.0
    %v3841 = vmax.f32 %v2854, 0.0
    %v3842 = vmax.f32 %v3558, 0.0
    %v3843 = vmax.f32 %v3560, 0.0
    %v3844 = vmax.f32 %v2856, 0.0
    %v3845 = vmax.f32 %v2858, 0.0
    %v3846 = vmax.f32 %v3562, 0.0
    %v3847 = vmax.f32 %v3564, 0.0
    %v3848 = vmax.f32 %v2862, 0.0
    %v3849 = vmax.f32 %v2864, 0.0
    %v3850 = vmax.f32 %v3568, 0.0
    %v3851 = vmax.f32 %v3570, 0.0
    %v3852 = vmax.f32 %v2866, 0.0
    %v3853 = vmax.f32 %v2868, 0.0
    %v3854 = vmax.f32 %v3572, 0.0
    %v3855 = vmax.f32 %v3574, 0.0
    %v3856 = vmax.f32 %v2872, 0.0
    %v3857 = vmax.f32 %v2874, 0.0
    %v3858 = vmax.f32 %v3578, 0.0
    %v3859 = vmax.f32 %v3580, 0.0
    %v3860 = vmax.f32 %v2876, 0.0
    %v3861 = vmax.f32 %v2878, 0.0
    %v3862 = vmax.f32 %v3582, 0.0
    %v3863 = vmax.f32 %v3584, 0.0
    %v3864 = vmax.f32 %v2882, 0.0
    %v3865 = vmax.f32 %v2884, 0.0
    %v3866 = vmax.f32 %v3588, 0.0
    %v3867 = vmax.f32 %v3590, 0.0
    %v3868 = vmax.f32 %v2886, 0.0
    %v3869 = vmax.f32 %v2888, 0.0
    %v3870 = vmax.f32 %v3592, 0.0
    %v3871 = vmax.f32 %v3594, 0.0
    %v3872 = vmax.f32 %v2892, 0.0
    %v3873 = vmax.f32 %v2894, 0.0
    %v3874 = vmax.f32 %v3598, 0.0
    %v3875 = vmax.f32 %v3600, 0.0
    %v3876 = vmax.f32 %v2896, 0.0
    %v3877 = vmax.f32 %v2898, 0.0
    %v3878 = vmax.f32 %v3602, 0.0
    %v3879 = vmax.f32 %v3604, 0.0
    %v3880 = vmax.f32 %v2902, 0.0
    %v3881 = vmax.f32 %v2904, 0.0
    %v3882 = vmax.f32 %v3608, 0.0
    %v3883 = vmax.f32 %v3610, 0.0
    %v3884 = vmax.f32 %v2906, 0.0
    %v3885 = vmax.f32 %v2908, 0.0
    %v3886 = vmax.f32 %v3612, 0.0
    %v3887 = vmax.f32 %v3614, 0.0
    %v3888 = vmax.f32 %v2912, 0.0
    %v3889 = vmax.f32 %v2914, 0.0
    %v3890 = vmax.f32 %v3618, 0.0
    %v3891 = vmax.f32 %v3620, 0.0
    %v3892 = vmax.f32 %v2916, 0.0
    %v3893 = vmax.f32 %v2918, 0.0
    %v3894 = vmax.f32 %v3622, 0.0
    %v3895 = vmax.f32 %v3624, 0.0
    %v3896 = vmax.f32 %v2922, 0.0
    %v3897 = vmax.f32 %v2924, 0.0
    %v3898 = vmax.f32 %v3628, 0.0
    %v3899 = vmax.f32 %v3630, 0.0
    %v3900 = vmax.f32 %v2926, 0.0
    %v3901 = vmax.f32 %v2928, 0.0
    %v3902 = vmax.f32 %v3632, 0.0
    %v3903 = vmax.f32 %v3634, 0.0
    %v3904 = vmax.f32 %v2932, 0.0
    %v3905 = vmax.f32 %v2934, 0.0
    %v3906 = vmax.f32 %v3638, 0.0
    %v3907 = vmax.f32 %v3640, 0.0
    %v3908 = vmax.f32 %v2936, 0.0
    %v3909 = vmax.f32 %v2938, 0.0
    %v3910 = vmax.f32 %v3642, 0.0
    %v3911 = vmax.f32 %v3644, 0.0
    %v3912 = vmax.f32 %v2942, 0.0
    %v3913 = vmax.f32 %v2944, 0.0
    %v3914 = vmax.f32 %v3648, 0.0
    %v3915 = vmax.f32 %v3650, 0.0
    %v3916 = vmax.f32 %v2946, 0.0
    %v3917 = vmax.f32 %v2948, 0.0
    %v3918 = vmax.f32 %v3652, 0.0
    %v3919 = vmax.f32 %v3654, 0.0
    %v3920 = vmax.f32 %v2952, 0.0
    %v3921 = vmax.f32 %v2954, 0.0
    %v3922 = vmax.f32 %v3658, 0.0
    %v3923 = vmax.f32 %v3660, 0.0
    %v3924 = vmax.f32 %v2956, 0.0
    %v3925 = vmax.f32 %v2958, 0.0
    %v3926 = vmax.f32 %v3662, 0.0
    %v3927 = vmax.f32 %v3664, 0.0
    %v3928 = vmax.f32 %v2962, 0.0
    %v3929 = vmax.f32 %v2964, 0.0
    %v3930 = vmax.f32 %v3668, 0.0
    %v3931 = vmax.f32 %v3670, 0.0
    %v3932 = vmax.f32 %v2966, 0.0
    %v3933 = vmax.f32 %v2968, 0.0
    %v3934 = vmax.f32 %v3672, 0.0
    %v3935 = vmax.f32 %v3674, 0.0
    %v3936 = vmax.f32 %v2972, 0.0
    %v3937 = vmax.f32 %v2974, 0.0
    %v3938 = vmax.f32 %v3678, 0.0
    %v3939 = vmax.f32 %v3680, 0.0
    %v3940 = vmax.f32 %v2976, 0.0
    %v3941 = vmax.f32 %v2978, 0.0
    %v3942 = vmax.f32 %v3682, 0.0
    %v3943 = vmax.f32 %v3684, 0.0
    %v3944 = vmax.f32 %v2982, 0.0
    %v3945 = vmax.f32 %v2984, 0.0
    %v3946 = vmax.f32 %v3688, 0.0
    %v3947 = vmax.f32 %v3690, 0.0
    %v3948 = vmax.f32 %v2986, 0.0
    %v3949 = vmax.f32 %v2988, 0.0
    %v3950 = vmax.f32 %v3692, 0.0
    %v3951 = vmax.f32 %v3694, 0.0
    %v3952 = vpack.c.bf16 %v3700, %v3696
    %v3953 = vpack.c.bf16 %v3701, %v3697
    %v3954 = vpack.c.bf16 %v3702, %v3698
    %v3955 = vpack.c.bf16 %v3703, %v3699
    %v3956 = vpack.c.bf16 %v3708, %v3704
    %v3957 = vpack.c.bf16 %v3709, %v3705
    %v3958 = vpack.c.bf16 %v3710, %v3706
    %v3959 = vpack.c.bf16 %v3711, %v3707
    %v3960 = vpack.c.bf16 %v3716, %v3712
    %v3961 = vpack.c.bf16 %v3717, %v3713
    %v3962 = vpack.c.bf16 %v3718, %v3714
    %v3963 = vpack.c.bf16 %v3719, %v3715
    %v3964 = vpack.c.bf16 %v3724, %v3720
    %v3965 = vpack.c.bf16 %v3725, %v3721
    %v3966 = vpack.c.bf16 %v3726, %v3722
    %v3967 = vpack.c.bf16 %v3727, %v3723
    %v3968 = vpack.c.bf16 %v3732, %v3728
    %v3969 = vpack.c.bf16 %v3733, %v3729
    %v3970 = vpack.c.bf16 %v3734, %v3730
    %v3971 = vpack.c.bf16 %v3735, %v3731
    %v3972 = vpack.c.bf16 %v3740, %v3736
    %v3973 = vpack.c.bf16 %v3741, %v3737
    %v3974 = vpack.c.bf16 %v3742, %v3738
    %v3975 = vpack.c.bf16 %v3743, %v3739
    %v3976 = vpack.c.bf16 %v3748, %v3744
    %v3977 = vpack.c.bf16 %v3749, %v3745
    %v3978 = vpack.c.bf16 %v3750, %v3746
    %v3979 = vpack.c.bf16 %v3751, %v3747
    %v3980 = vpack.c.bf16 %v3756, %v3752
    %v3981 = vpack.c.bf16 %v3757, %v3753
    %v3982 = vpack.c.bf16 %v3758, %v3754
    %v3983 = vpack.c.bf16 %v3759, %v3755
    %v3984 = vpack.c.bf16 %v3764, %v3760
    %v3985 = vpack.c.bf16 %v3765, %v3761
    %v3986 = vpack.c.bf16 %v3766, %v3762
    %v3987 = vpack.c.bf16 %v3767, %v3763
    %v3988 = vpack.c.bf16 %v3772, %v3768
    %v3989 = vpack.c.bf16 %v3773, %v3769
    %v3990 = vpack.c.bf16 %v3774, %v3770
    %v3991 = vpack.c.bf16 %v3775, %v3771
    %v3992 = vpack.c.bf16 %v3780, %v3776
    %v3993 = vpack.c.bf16 %v3781, %v3777
    %v3994 = vpack.c.bf16 %v3782, %v3778
    %v3995 = vpack.c.bf16 %v3783, %v3779
    %v3996 = vpack.c.bf16 %v3788, %v3784
    %v3997 = vpack.c.bf16 %v3789, %v3785
    %v3998 = vpack.c.bf16 %v3790, %v3786
    %v3999 = vpack.c.bf16 %v3791, %v3787
    %v4000 = vpack.c.bf16 %v3796, %v3792
    %v4001 = vpack.c.bf16 %v3797, %v3793
    %v4002 = vpack.c.bf16 %v3798, %v3794
    %v4003 = vpack.c.bf16 %v3799, %v3795
    %v4004 = vpack.c.bf16 %v3804, %v3800
    %v4005 = vpack.c.bf16 %v3805, %v3801
    %v4006 = vpack.c.bf16 %v3806, %v3802
    %v4007 = vpack.c.bf16 %v3807, %v3803
    %v4008 = vpack.c.bf16 %v3812, %v3808
    %v4009 = vpack.c.bf16 %v3813, %v3809
    %v4010 = vpack.c.bf16 %v3814, %v3810
    %v4011 = vpack.c.bf16 %v3815, %v3811
    %v4012 = vpack.c.bf16 %v3820, %v3816
    %v4013 = vpack.c.bf16 %v3821, %v3817
    %v4014 = vpack.c.bf16 %v3822, %v3818
    %v4015 = vpack.c.bf16 %v3823, %v3819
    %v4016 = vpack.c.bf16 %v3828, %v3824
    %v4017 = vpack.c.bf16 %v3829, %v3825
    %v4018 = vpack.c.bf16 %v3830, %v3826
    %v4019 = vpack.c.bf16 %v3831, %v3827
    %v4020 = vpack.c.bf16 %v3836, %v3832
    %v4021 = vpack.c.bf16 %v3837, %v3833
    %v4022 = vpack.c.bf16 %v3838, %v3834
    %v4023 = vpack.c.bf16 %v3839, %v3835
    %v4024 = vpack.c.bf16 %v3844, %v3840
    %v4025 = vpack.c.bf16 %v3845, %v3841
    %v4026 = vpack.c.bf16 %v3846, %v3842
    %v4027 = vpack.c.bf16 %v3847, %v3843
    %v4028 = vpack.c.bf16 %v3852, %v3848
    %v4029 = vpack.c.bf16 %v3853, %v3849
    %v4030 = vpack.c.bf16 %v3854, %v3850
    %v4031 = vpack.c.bf16 %v3855, %v3851
    %v4032 = vpack.c.bf16 %v3860, %v3856
    %v4033 = vpack.c.bf16 %v3861, %v3857
    %v4034 = vpack.c.bf16 %v3862, %v3858
    %v4035 = vpack.c.bf16 %v3863, %v3859
    %v4036 = vpack.c.bf16 %v3868, %v3864
    %v4037 = vpack.c.bf16 %v3869, %v3865
    %v4038 = vpack.c.bf16 %v3870, %v3866
    %v4039 = vpack.c.bf16 %v3871, %v3867
    %v4040 = vpack.c.bf16 %v3876, %v3872
    %v4041 = vpack.c.bf16 %v3877, %v3873
    %v4042 = vpack.c.bf16 %v3878, %v3874
    %v4043 = vpack.c.bf16 %v3879, %v3875
    %v4044 = vpack.c.bf16 %v3884, %v3880
    %v4045 = vpack.c.bf16 %v3885, %v3881
    %v4046 = vpack.c.bf16 %v3886, %v3882
    %v4047 = vpack.c.bf16 %v3887, %v3883
    %v4048 = vpack.c.bf16 %v3892, %v3888
    %v4049 = vpack.c.bf16 %v3893, %v3889
    %v4050 = vpack.c.bf16 %v3894, %v3890
    %v4051 = vpack.c.bf16 %v3895, %v3891
    %v4052 = vpack.c.bf16 %v3900, %v3896
    %v4053 = vpack.c.bf16 %v3901, %v3897
    %v4054 = vpack.c.bf16 %v3902, %v3898
    %v4055 = vpack.c.bf16 %v3903, %v3899
    %v4056 = vpack.c.bf16 %v3908, %v3904
    %v4057 = vpack.c.bf16 %v3909, %v3905
    %v4058 = vpack.c.bf16 %v3910, %v3906
    %v4059 = vpack.c.bf16 %v3911, %v3907
    %v4060 = vpack.c.bf16 %v3916, %v3912
    %v4061 = vpack.c.bf16 %v3917, %v3913
    %v4062 = vpack.c.bf16 %v3918, %v3914
    %v4063 = vpack.c.bf16 %v3919, %v3915
    %v4064 = vpack.c.bf16 %v3924, %v3920
    %v4065 = vpack.c.bf16 %v3925, %v3921
    %v4066 = vpack.c.bf16 %v3926, %v3922
    %v4067 = vpack.c.bf16 %v3927, %v3923
    %v4068 = vpack.c.bf16 %v3932, %v3928
    %v4069 = vpack.c.bf16 %v3933, %v3929
    %v4070 = vpack.c.bf16 %v3934, %v3930
    %v4071 = vpack.c.bf16 %v3935, %v3931
    %v4072 = vpack.c.bf16 %v3940, %v3936
    %v4073 = vpack.c.bf16 %v3941, %v3937
    %v4074 = vpack.c.bf16 %v3942, %v3938
    %v4075 = vpack.c.bf16 %v3943, %v3939
    %v4076 = vpack.c.bf16 %v3948, %v3944
    %v4077 = vpack.c.bf16 %v3949, %v3945
    %v4078 = vpack.c.bf16 %v3950, %v3946
    %v4079 = vpack.c.bf16 %v3951, %v3947
    %v4080 = vld [vmem:[%s5] sm:$0xf]
    %v4081 = vld [vmem:[%s5 + $0x4] sm:$0xf]
    %v4082 = vld [vmem:[%s5 + $0x8] sm:$0xf]
    %v4083 = vld [vmem:[%s5 + $0xc] sm:$0xf]
    %v4084 = vld [vmem:[%s5 + $0x10] sm:$0xf]
    %v4085 = vld [vmem:[%s5 + $0x14] sm:$0xf]
    %v4086 = vld [vmem:[%s5 + $0x18] sm:$0xf]
    %v4087 = vld [vmem:[%s5 + $0x1c] sm:$0xf]
    %v4088 = vld [vmem:[%s5 + $0x20] sm:$0xf]
    %v4089 = vld [vmem:[%s5 + $0x24] sm:$0xf]
    %v4090 = vld [vmem:[%s5 + $0x28] sm:$0xf]
    %v4091 = vld [vmem:[%s5 + $0x2c] sm:$0xf]
    %v4092 = vld [vmem:[%s5 + $0x30] sm:$0xf]
    %v4093 = vld [vmem:[%s5 + $0x34] sm:$0xf]
    %v4094 = vld [vmem:[%s5 + $0x38] sm:$0xf]
    %v4095 = vld [vmem:[%s5 + $0x3c] sm:$0xf]
    %v4096 = vld [vmem:[%s5 + $0x40] sm:$0xf]
    %v4097 = vld [vmem:[%s5 + $0x44] sm:$0xf]
    %v4098 = vld [vmem:[%s5 + $0x48] sm:$0xf]
    %v4099 = vld [vmem:[%s5 + $0x4c] sm:$0xf]
    %v4100 = vld [vmem:[%s5 + $0x50] sm:$0xf]
    %v4101 = vld [vmem:[%s5 + $0x54] sm:$0xf]
    %v4102 = vld [vmem:[%s5 + $0x58] sm:$0xf]
    %v4103 = vld [vmem:[%s5 + $0x5c] sm:$0xf]
    %v4104 = vld [vmem:[%s5 + $0x60] sm:$0xf]
    %v4105 = vld [vmem:[%s5 + $0x64] sm:$0xf]
    %v4106 = vld [vmem:[%s5 + $0x68] sm:$0xf]
    %v4107 = vld [vmem:[%s5 + $0x6c] sm:$0xf]
    %v4108 = vld [vmem:[%s5 + $0x70] sm:$0xf]
    %v4109 = vld [vmem:[%s5 + $0x74] sm:$0xf]
    %v4110 = vld [vmem:[%s5 + $0x78] sm:$0xf]
    %v4111 = vld [vmem:[%s5 + $0x7c] sm:$0xf]
    %v4112 = vld [vmem:[%s5 + $0x80] sm:$0xf]
    %v4113 = vld [vmem:[%s5 + $0x84] sm:$0xf]
    %v4114 = vld [vmem:[%s5 + $0x88] sm:$0xf]
    %v4115 = vld [vmem:[%s5 + $0x8c] sm:$0xf]
    %v4116 = vld [vmem:[%s5 + $0x90] sm:$0xf]
    %v4117 = vld [vmem:[%s5 + $0x94] sm:$0xf]
    %v4118 = vld [vmem:[%s5 + $0x98] sm:$0xf]
    %v4119 = vld [vmem:[%s5 + $0x9c] sm:$0xf]
    %v4120 = vld [vmem:[%s5 + $0xa0] sm:$0xf]
    %v4121 = vld [vmem:[%s5 + $0xa4] sm:$0xf]
    %v4122 = vld [vmem:[%s5 + $0xa8] sm:$0xf]
    %v4123 = vld [vmem:[%s5 + $0xac] sm:$0xf]
    %v4124 = vld [vmem:[%s5 + $0xb0] sm:$0xf]
    %v4125 = vld [vmem:[%s5 + $0xb4] sm:$0xf]
    %v4126 = vld [vmem:[%s5 + $0xb8] sm:$0xf]
    %v4127 = vld [vmem:[%s5 + $0xbc] sm:$0xf]
    %v4128 = vld [vmem:[%s5 + $0xc0] sm:$0xf]
    %v4129 = vld [vmem:[%s5 + $0xc4] sm:$0xf]
    %v4130 = vld [vmem:[%s5 + $0xc8] sm:$0xf]
    %v4131 = vld [vmem:[%s5 + $0xcc] sm:$0xf]
    %v4132 = vld [vmem:[%s5 + $0xd0] sm:$0xf]
    %v4133 = vld [vmem:[%s5 + $0xd4] sm:$0xf]
    %v4134 = vld [vmem:[%s5 + $0xd8] sm:$0xf]
    %v4135 = vld [vmem:[%s5 + $0xdc] sm:$0xf]
    %v4136 = vld [vmem:[%s5 + $0xe0] sm:$0xf]
    %v4137 = vld [vmem:[%s5 + $0xe4] sm:$0xf]
    %v4138 = vld [vmem:[%s5 + $0xe8] sm:$0xf]
    %v4139 = vld [vmem:[%s5 + $0xec] sm:$0xf]
    %v4140 = vld [vmem:[%s5 + $0xf0] sm:$0xf]
    %v4141 = vld [vmem:[%s5 + $0xf4] sm:$0xf]
    %v4142 = vld [vmem:[%s5 + $0xf8] sm:$0xf]
    %v4143 = vld [vmem:[%s5 + $0xfc] sm:$0xf]
    %v4208 = vunpack.c.l.b16 %v4080
    %v4209 = vunpack.c.l.b16 %v4081
    %v4210 = vunpack.c.l.b16 %v4082
    %v4211 = vunpack.c.l.b16 %v4083
    %v4212 = vunpack.c.l.b16 %v4084
    %v4213 = vunpack.c.l.b16 %v4085
    %v4214 = vunpack.c.l.b16 %v4086
    %v4215 = vunpack.c.l.b16 %v4087
    %v4216 = vunpack.c.l.b16 %v4088
    %v4217 = vunpack.c.l.b16 %v4089
    %v4218 = vunpack.c.l.b16 %v4090
    %v4219 = vunpack.c.l.b16 %v4091
    %v4220 = vunpack.c.l.b16 %v4092
    %v4221 = vunpack.c.l.b16 %v4093
    %v4222 = vunpack.c.l.b16 %v4094
    %v4223 = vunpack.c.l.b16 %v4095
    %v4224 = vunpack.c.l.b16 %v4096
    %v4225 = vunpack.c.l.b16 %v4097
    %v4226 = vunpack.c.l.b16 %v4098
    %v4227 = vunpack.c.l.b16 %v4099
    %v4228 = vunpack.c.l.b16 %v4100
    %v4229 = vunpack.c.l.b16 %v4101
    %v4230 = vunpack.c.l.b16 %v4102
    %v4231 = vunpack.c.l.b16 %v4103
    %v4232 = vunpack.c.l.b16 %v4104
    %v4233 = vunpack.c.l.b16 %v4105
    %v4234 = vunpack.c.l.b16 %v4106
    %v4235 = vunpack.c.l.b16 %v4107
    %v4236 = vunpack.c.l.b16 %v4108
    %v4237 = vunpack.c.l.b16 %v4109
    %v4238 = vunpack.c.l.b16 %v4110
    %v4239 = vunpack.c.l.b16 %v4111
    %v4240 = vunpack.c.l.b16 %v4112
    %v4241 = vunpack.c.l.b16 %v4113
    %v4242 = vunpack.c.l.b16 %v4114
    %v4243 = vunpack.c.l.b16 %v4115
    %v4244 = vunpack.c.l.b16 %v4116
    %v4245 = vunpack.c.l.b16 %v4117
    %v4246 = vunpack.c.l.b16 %v4118
    %v4247 = vunpack.c.l.b16 %v4119
    %v4248 = vunpack.c.l.b16 %v4120
    %v4249 = vunpack.c.l.b16 %v4121
    %v4250 = vunpack.c.l.b16 %v4122
    %v4251 = vunpack.c.l.b16 %v4123
    %v4252 = vunpack.c.l.b16 %v4124
    %v4253 = vunpack.c.l.b16 %v4125
    %v4254 = vunpack.c.l.b16 %v4126
    %v4255 = vunpack.c.l.b16 %v4127
    %v4256 = vunpack.c.l.b16 %v4128
    %v4257 = vunpack.c.l.b16 %v4129
    %v4258 = vunpack.c.l.b16 %v4130
    %v4259 = vunpack.c.l.b16 %v4131
    %v4260 = vunpack.c.l.b16 %v4132
    %v4261 = vunpack.c.l.b16 %v4133
    %v4262 = vunpack.c.l.b16 %v4134
    %v4263 = vunpack.c.l.b16 %v4135
    %v4264 = vunpack.c.l.b16 %v4136
    %v4265 = vunpack.c.l.b16 %v4137
    %v4266 = vunpack.c.l.b16 %v4138
    %v4267 = vunpack.c.l.b16 %v4139
    %v4268 = vunpack.c.l.b16 %v4140
    %v4269 = vunpack.c.l.b16 %v4141
    %v4270 = vunpack.c.l.b16 %v4142
    %v4271 = vunpack.c.l.b16 %v4143
    %v4272 = vpack.c.b16 %v4209, %v4208
    %v4273 = vpack.c.b16 %v4211, %v4210
    %v4274 = vpack.c.b16 %v4213, %v4212
    %v4275 = vpack.c.b16 %v4215, %v4214
    %v4276 = vpack.c.b16 %v4217, %v4216
    %v4277 = vpack.c.b16 %v4219, %v4218
    %v4278 = vpack.c.b16 %v4221, %v4220
    %v4279 = vpack.c.b16 %v4223, %v4222
    %v4280 = vpack.c.b16 %v4225, %v4224
    %v4281 = vpack.c.b16 %v4227, %v4226
    %v4282 = vpack.c.b16 %v4229, %v4228
    %v4283 = vpack.c.b16 %v4231, %v4230
    %v4284 = vpack.c.b16 %v4233, %v4232
    %v4285 = vpack.c.b16 %v4235, %v4234
    %v4286 = vpack.c.b16 %v4237, %v4236
    %v4287 = vpack.c.b16 %v4239, %v4238
    %v4288 = vpack.c.b16 %v4241, %v4240
    %v4289 = vpack.c.b16 %v4243, %v4242
    %v4290 = vpack.c.b16 %v4245, %v4244
    %v4291 = vpack.c.b16 %v4247, %v4246
    %v4292 = vpack.c.b16 %v4249, %v4248
    %v4293 = vpack.c.b16 %v4251, %v4250
    %v4294 = vpack.c.b16 %v4253, %v4252
    %v4295 = vpack.c.b16 %v4255, %v4254
    %v4296 = vpack.c.b16 %v4257, %v4256
    %v4297 = vpack.c.b16 %v4259, %v4258
    %v4298 = vpack.c.b16 %v4261, %v4260
    %v4299 = vpack.c.b16 %v4263, %v4262
    %v4300 = vpack.c.b16 %v4265, %v4264
    %v4301 = vpack.c.b16 %v4267, %v4266
    %v4302 = vpack.c.b16 %v4269, %v4268
    %v4303 = vpack.c.b16 %v4271, %v4270
    %4336 = vmatprep.subr.bf16.mxu0 0
    %4337 = vmatpush1.bf16.msra.mxu0 %v4279
    %4338 = vmatprep.subr.bf16.mxu0 0
    %4339 = vmatpush1.bf16.msra.mxu0 %v4278
    %4340 = vmatprep.subr.bf16.mxu0 0
    %4341 = vmatpush1.bf16.msra.mxu0 %v4277
    %4342 = vmatprep.subr.bf16.mxu0 0
    %4343 = vmatpush1.bf16.msra.mxu0 %v4276
    %4344 = vmatprep.subr.bf16.mxu0 0
    %4345 = vmatpush1.bf16.msra.mxu0 %v4275
    %4346 = vmatprep.subr.bf16.mxu0 0
    %4347 = vmatpush1.bf16.msra.mxu0 %v4274
    %4348 = vmatprep.subr.bf16.mxu0 0
    %4349 = vmatpush1.bf16.msra.mxu0 %v4273
    %4350 = vmatprep.subr.bf16.mxu0 0
    %4351 = vmatpush1.bf16.msra.mxu0 %v4272
    %4352 = vmatprep.subr.bf16.mxu0 0
    %4353 = vmatpush2.bf16.msra.mxu0 %v4287
    %4354 = vmatprep.subr.bf16.mxu0 0
    %4355 = vmatpush2.bf16.msra.mxu0 %v4286
    %4356 = vmatprep.subr.bf16.mxu0 0
    %4357 = vmatpush2.bf16.msra.mxu0 %v4285
    %4358 = vmatprep.subr.bf16.mxu0 0
    %4359 = vmatpush2.bf16.msra.mxu0 %v4284
    %4360 = vmatprep.subr.bf16.mxu0 0
    %4361 = vmatpush2.bf16.msra.mxu0 %v4283
    %4362 = vmatprep.subr.bf16.mxu0 0
    %4363 = vmatpush2.bf16.msra.mxu0 %v4282
    %4364 = vmatprep.subr.bf16.mxu0 0
    %4365 = vmatpush2.bf16.msra.mxu0 %v4281
    %4366 = vmatprep.subr.bf16.mxu0 0
    %4367 = vmatpush2.bf16.msra.mxu0 %v4280
    %4368 = vmatprep.mubr.bf16.mxu0 %v3953
    %4369 = vmatmul.mubr.bf16.gmra.mxu0 %v3952
    %v4370 = vpop.f32.mrf.mxu0
    %v4371 = vadd.f32 0.0, %v4370
    %v4372 = vpop.f32.mrf.mxu0
    %v4373 = vpop.f32.mrf.mxu0
    %v4374 = vadd.f32 0.0, %v4373
    %v4375 = vpop.f32.mrf.mxu0
    %4376 = vmatprep.mubr.bf16.mxu0 %v3957
    %4377 = vmatmul.mubr.bf16.gmra.mxu0 %v3956
    %v4378 = vpop.f32.mrf.mxu0
    %v4379 = vadd.f32 0.0, %v4378
    %v4380 = vpop.f32.mrf.mxu0
    %v4381 = vpop.f32.mrf.mxu0
    %v4382 = vadd.f32 0.0, %v4381
    %v4383 = vpop.f32.mrf.mxu0
    %4384 = vmatprep.mubr.bf16.mxu0 %v3961
    %4385 = vmatmul.mubr.bf16.gmra.mxu0 %v3960
    %v4386 = vpop.f32.mrf.mxu0
    %v4387 = vadd.f32 0.0, %v4386
    %v4388 = vpop.f32.mrf.mxu0
    %v4389 = vpop.f32.mrf.mxu0
    %v4390 = vadd.f32 0.0, %v4389
    %v4391 = vpop.f32.mrf.mxu0
    %4392 = vmatprep.mubr.bf16.mxu0 %v3965
    %4393 = vmatmul.mubr.bf16.gmra.mxu0 %v3964
    %v4394 = vpop.f32.mrf.mxu0
    %v4395 = vadd.f32 0.0, %v4394
    %v4396 = vpop.f32.mrf.mxu0
    %v4397 = vpop.f32.mrf.mxu0
    %v4398 = vadd.f32 0.0, %v4397
    %v4399 = vpop.f32.mrf.mxu0
    %4400 = vmatprep.mubr.bf16.mxu0 %v3969
    %4401 = vmatmul.mubr.bf16.gmra.mxu0 %v3968
    %v4402 = vpop.f32.mrf.mxu0
    %v4403 = vadd.f32 0.0, %v4402
    %v4404 = vpop.f32.mrf.mxu0
    %v4405 = vpop.f32.mrf.mxu0
    %v4406 = vadd.f32 0.0, %v4405
    %v4407 = vpop.f32.mrf.mxu0
    %4408 = vmatprep.mubr.bf16.mxu0 %v3973
    %4409 = vmatmul.mubr.bf16.gmra.mxu0 %v3972
    %v4410 = vpop.f32.mrf.mxu0
    %v4411 = vadd.f32 0.0, %v4410
    %v4412 = vpop.f32.mrf.mxu0
    %v4413 = vpop.f32.mrf.mxu0
    %v4414 = vadd.f32 0.0, %v4413
    %v4415 = vpop.f32.mrf.mxu0
    %4416 = vmatprep.mubr.bf16.mxu0 %v3977
    %4417 = vmatmul.mubr.bf16.gmra.mxu0 %v3976
    %v4418 = vpop.f32.mrf.mxu0
    %v4419 = vadd.f32 0.0, %v4418
    %v4420 = vpop.f32.mrf.mxu0
    %v4421 = vpop.f32.mrf.mxu0
    %v4422 = vadd.f32 0.0, %v4421
    %v4423 = vpop.f32.mrf.mxu0
    %4424 = vmatprep.mubr.bf16.mxu0 %v3981
    %4425 = vmatmul.mubr.bf16.gmra.mxu0 %v3980
    %v4426 = vpop.f32.mrf.mxu0
    %v4427 = vadd.f32 0.0, %v4426
    %v4428 = vpop.f32.mrf.mxu0
    %v4429 = vpop.f32.mrf.mxu0
    %v4430 = vadd.f32 0.0, %v4429
    %v4431 = vpop.f32.mrf.mxu0
    %4432 = vmatprep.mubr.bf16.mxu0 %v3985
    %4433 = vmatmul.mubr.bf16.gmra.mxu0 %v3984
    %v4434 = vpop.f32.mrf.mxu0
    %v4435 = vadd.f32 0.0, %v4434
    %v4436 = vpop.f32.mrf.mxu0
    %v4437 = vpop.f32.mrf.mxu0
    %v4438 = vadd.f32 0.0, %v4437
    %v4439 = vpop.f32.mrf.mxu0
    %4440 = vmatprep.mubr.bf16.mxu0 %v3989
    %4441 = vmatmul.mubr.bf16.gmra.mxu0 %v3988
    %v4442 = vpop.f32.mrf.mxu0
    %v4443 = vadd.f32 0.0, %v4442
    %v4444 = vpop.f32.mrf.mxu0
    %v4445 = vpop.f32.mrf.mxu0
    %v4446 = vadd.f32 0.0, %v4445
    %v4447 = vpop.f32.mrf.mxu0
    %4448 = vmatprep.mubr.bf16.mxu0 %v3993
    %4449 = vmatmul.mubr.bf16.gmra.mxu0 %v3992
    %v4450 = vpop.f32.mrf.mxu0
    %v4451 = vadd.f32 0.0, %v4450
    %v4452 = vpop.f32.mrf.mxu0
    %v4453 = vpop.f32.mrf.mxu0
    %v4454 = vadd.f32 0.0, %v4453
    %v4455 = vpop.f32.mrf.mxu0
    %4456 = vmatprep.mubr.bf16.mxu0 %v3997
    %4457 = vmatmul.mubr.bf16.gmra.mxu0 %v3996
    %v4458 = vpop.f32.mrf.mxu0
    %v4459 = vadd.f32 0.0, %v4458
    %v4460 = vpop.f32.mrf.mxu0
    %v4461 = vpop.f32.mrf.mxu0
    %v4462 = vadd.f32 0.0, %v4461
    %v4463 = vpop.f32.mrf.mxu0
    %4464 = vmatprep.mubr.bf16.mxu0 %v4001
    %4465 = vmatmul.mubr.bf16.gmra.mxu0 %v4000
    %v4466 = vpop.f32.mrf.mxu0
    %v4467 = vadd.f32 0.0, %v4466
    %v4468 = vpop.f32.mrf.mxu0
    %v4469 = vpop.f32.mrf.mxu0
    %v4470 = vadd.f32 0.0, %v4469
    %v4471 = vpop.f32.mrf.mxu0
    %4472 = vmatprep.mubr.bf16.mxu0 %v4005
    %4473 = vmatmul.mubr.bf16.gmra.mxu0 %v4004
    %v4474 = vpop.f32.mrf.mxu0
    %v4475 = vadd.f32 0.0, %v4474
    %v4476 = vpop.f32.mrf.mxu0
    %v4477 = vpop.f32.mrf.mxu0
    %v4478 = vadd.f32 0.0, %v4477
    %v4479 = vpop.f32.mrf.mxu0
    %4480 = vmatprep.mubr.bf16.mxu0 %v4009
    %4481 = vmatmul.mubr.bf16.gmra.mxu0 %v4008
    %v4482 = vpop.f32.mrf.mxu0
    %v4483 = vadd.f32 0.0, %v4482
    %v4484 = vpop.f32.mrf.mxu0
    %v4485 = vpop.f32.mrf.mxu0
    %v4486 = vadd.f32 0.0, %v4485
    %v4487 = vpop.f32.mrf.mxu0
    %4488 = vmatprep.mubr.bf16.mxu0 %v4013
    %4489 = vmatmul.mubr.bf16.gmra.mxu0 %v4012
    %v4490 = vpop.f32.mrf.mxu0
    %v4491 = vadd.f32 0.0, %v4490
    %v4492 = vpop.f32.mrf.mxu0
    %v4493 = vpop.f32.mrf.mxu0
    %v4494 = vadd.f32 0.0, %v4493
    %v4495 = vpop.f32.mrf.mxu0
    %4496 = vmatprep.mubr.bf16.mxu0 %v4017
    %4497 = vmatmul.mubr.bf16.gmra.mxu0 %v4016
    %v4498 = vpop.f32.mrf.mxu0
    %v4499 = vadd.f32 0.0, %v4498
    %v4500 = vpop.f32.mrf.mxu0
    %v4501 = vpop.f32.mrf.mxu0
    %v4502 = vadd.f32 0.0, %v4501
    %v4503 = vpop.f32.mrf.mxu0
    %4504 = vmatprep.mubr.bf16.mxu0 %v4021
    %4505 = vmatmul.mubr.bf16.gmra.mxu0 %v4020
    %v4506 = vpop.f32.mrf.mxu0
    %v4507 = vadd.f32 0.0, %v4506
    %v4508 = vpop.f32.mrf.mxu0
    %v4509 = vpop.f32.mrf.mxu0
    %v4510 = vadd.f32 0.0, %v4509
    %v4511 = vpop.f32.mrf.mxu0
    %4512 = vmatprep.mubr.bf16.mxu0 %v4025
    %4513 = vmatmul.mubr.bf16.gmra.mxu0 %v4024
    %v4514 = vpop.f32.mrf.mxu0
    %v4515 = vadd.f32 0.0, %v4514
    %v4516 = vpop.f32.mrf.mxu0
    %v4517 = vpop.f32.mrf.mxu0
    %v4518 = vadd.f32 0.0, %v4517
    %v4519 = vpop.f32.mrf.mxu0
    %4520 = vmatprep.mubr.bf16.mxu0 %v4029
    %4521 = vmatmul.mubr.bf16.gmra.mxu0 %v4028
    %v4522 = vpop.f32.mrf.mxu0
    %v4523 = vadd.f32 0.0, %v4522
    %v4524 = vpop.f32.mrf.mxu0
    %v4525 = vpop.f32.mrf.mxu0
    %v4526 = vadd.f32 0.0, %v4525
    %v4527 = vpop.f32.mrf.mxu0
    %4528 = vmatprep.mubr.bf16.mxu0 %v4033
    %4529 = vmatmul.mubr.bf16.gmra.mxu0 %v4032
    %v4530 = vpop.f32.mrf.mxu0
    %v4531 = vadd.f32 0.0, %v4530
    %v4532 = vpop.f32.mrf.mxu0
    %v4533 = vpop.f32.mrf.mxu0
    %v4534 = vadd.f32 0.0, %v4533
    %v4535 = vpop.f32.mrf.mxu0
    %4536 = vmatprep.mubr.bf16.mxu0 %v4037
    %4537 = vmatmul.mubr.bf16.gmra.mxu0 %v4036
    %v4538 = vpop.f32.mrf.mxu0
    %v4539 = vadd.f32 0.0, %v4538
    %v4540 = vpop.f32.mrf.mxu0
    %v4541 = vpop.f32.mrf.mxu0
    %v4542 = vadd.f32 0.0, %v4541
    %v4543 = vpop.f32.mrf.mxu0
    %4544 = vmatprep.mubr.bf16.mxu0 %v4041
    %4545 = vmatmul.mubr.bf16.gmra.mxu0 %v4040
    %v4546 = vpop.f32.mrf.mxu0
    %v4547 = vadd.f32 0.0, %v4546
    %v4548 = vpop.f32.mrf.mxu0
    %v4549 = vpop.f32.mrf.mxu0
    %v4550 = vadd.f32 0.0, %v4549
    %v4551 = vpop.f32.mrf.mxu0
    %4552 = vmatprep.mubr.bf16.mxu0 %v4045
    %4553 = vmatmul.mubr.bf16.gmra.mxu0 %v4044
    %v4554 = vpop.f32.mrf.mxu0
    %v4555 = vadd.f32 0.0, %v4554
    %v4556 = vpop.f32.mrf.mxu0
    %v4557 = vpop.f32.mrf.mxu0
    %v4558 = vadd.f32 0.0, %v4557
    %v4559 = vpop.f32.mrf.mxu0
    %4560 = vmatprep.mubr.bf16.mxu0 %v4049
    %4561 = vmatmul.mubr.bf16.gmra.mxu0 %v4048
    %v4562 = vpop.f32.mrf.mxu0
    %v4563 = vadd.f32 0.0, %v4562
    %v4564 = vpop.f32.mrf.mxu0
    %v4565 = vpop.f32.mrf.mxu0
    %v4566 = vadd.f32 0.0, %v4565
    %v4567 = vpop.f32.mrf.mxu0
    %4568 = vmatprep.mubr.bf16.mxu0 %v4053
    %4569 = vmatmul.mubr.bf16.gmra.mxu0 %v4052
    %v4570 = vpop.f32.mrf.mxu0
    %v4571 = vadd.f32 0.0, %v4570
    %v4572 = vpop.f32.mrf.mxu0
    %v4573 = vpop.f32.mrf.mxu0
    %v4574 = vadd.f32 0.0, %v4573
    %v4575 = vpop.f32.mrf.mxu0
    %4576 = vmatprep.mubr.bf16.mxu0 %v4057
    %4577 = vmatmul.mubr.bf16.gmra.mxu0 %v4056
    %v4578 = vpop.f32.mrf.mxu0
    %v4579 = vadd.f32 0.0, %v4578
    %v4580 = vpop.f32.mrf.mxu0
    %v4581 = vpop.f32.mrf.mxu0
    %v4582 = vadd.f32 0.0, %v4581
    %v4583 = vpop.f32.mrf.mxu0
    %4584 = vmatprep.mubr.bf16.mxu0 %v4061
    %4585 = vmatmul.mubr.bf16.gmra.mxu0 %v4060
    %v4586 = vpop.f32.mrf.mxu0
    %v4587 = vadd.f32 0.0, %v4586
    %v4588 = vpop.f32.mrf.mxu0
    %v4589 = vpop.f32.mrf.mxu0
    %v4590 = vadd.f32 0.0, %v4589
    %v4591 = vpop.f32.mrf.mxu0
    %4592 = vmatprep.mubr.bf16.mxu0 %v4065
    %4593 = vmatmul.mubr.bf16.gmra.mxu0 %v4064
    %v4594 = vpop.f32.mrf.mxu0
    %v4595 = vadd.f32 0.0, %v4594
    %v4596 = vpop.f32.mrf.mxu0
    %v4597 = vpop.f32.mrf.mxu0
    %v4598 = vadd.f32 0.0, %v4597
    %v4599 = vpop.f32.mrf.mxu0
    %4600 = vmatprep.mubr.bf16.mxu0 %v4069
    %4601 = vmatmul.mubr.bf16.gmra.mxu0 %v4068
    %v4602 = vpop.f32.mrf.mxu0
    %v4603 = vadd.f32 0.0, %v4602
    %v4604 = vpop.f32.mrf.mxu0
    %v4605 = vpop.f32.mrf.mxu0
    %v4606 = vadd.f32 0.0, %v4605
    %v4607 = vpop.f32.mrf.mxu0
    %4608 = vmatprep.mubr.bf16.mxu0 %v4073
    %4609 = vmatmul.mubr.bf16.gmra.mxu0 %v4072
    %v4610 = vpop.f32.mrf.mxu0
    %v4611 = vadd.f32 0.0, %v4610
    %v4612 = vpop.f32.mrf.mxu0
    %v4613 = vpop.f32.mrf.mxu0
    %v4614 = vadd.f32 0.0, %v4613
    %v4615 = vpop.f32.mrf.mxu0
    %4616 = vmatprep.mubr.bf16.mxu0 %v4077
    %4617 = vmatmul.mubr.bf16.gmra.mxu0 %v4076
    %v4618 = vpop.f32.mrf.mxu0
    %v4619 = vadd.f32 0.0, %v4618
    %v4620 = vpop.f32.mrf.mxu0
    %v4621 = vpop.f32.mrf.mxu0
    %v4622 = vadd.f32 0.0, %v4621
    %v4623 = vpop.f32.mrf.mxu0
    %4624 = vdwg.mxu0
    %4625 = vmatprep.subr.bf16.mxu0 0
    %4626 = vmatpush1.bf16.msra.mxu0 %v4295
    %4627 = vmatprep.subr.bf16.mxu0 0
    %4628 = vmatpush1.bf16.msra.mxu0 %v4294
    %4629 = vmatprep.subr.bf16.mxu0 0
    %4630 = vmatpush1.bf16.msra.mxu0 %v4293
    %4631 = vmatprep.subr.bf16.mxu0 0
    %4632 = vmatpush1.bf16.msra.mxu0 %v4292
    %4633 = vmatprep.subr.bf16.mxu0 0
    %4634 = vmatpush1.bf16.msra.mxu0 %v4291
    %4635 = vmatprep.subr.bf16.mxu0 0
    %4636 = vmatpush1.bf16.msra.mxu0 %v4290
    %4637 = vmatprep.subr.bf16.mxu0 0
    %4638 = vmatpush1.bf16.msra.mxu0 %v4289
    %4639 = vmatprep.subr.bf16.mxu0 0
    %4640 = vmatpush1.bf16.msra.mxu0 %v4288
    %4641 = vmatprep.subr.bf16.mxu0 0
    %4642 = vmatpush2.bf16.msra.mxu0 %v4303
    %4643 = vmatprep.subr.bf16.mxu0 0
    %4644 = vmatpush2.bf16.msra.mxu0 %v4302
    %4645 = vmatprep.subr.bf16.mxu0 0
    %4646 = vmatpush2.bf16.msra.mxu0 %v4301
    %4647 = vmatprep.subr.bf16.mxu0 0
    %4648 = vmatpush2.bf16.msra.mxu0 %v4300
    %4649 = vmatprep.subr.bf16.mxu0 0
    %4650 = vmatpush2.bf16.msra.mxu0 %v4299
    %4651 = vmatprep.subr.bf16.mxu0 0
    %4652 = vmatpush2.bf16.msra.mxu0 %v4298
    %4653 = vmatprep.subr.bf16.mxu0 0
    %4654 = vmatpush2.bf16.msra.mxu0 %v4297
    %4655 = vmatprep.subr.bf16.mxu0 0
    %4656 = vmatpush2.bf16.msra.mxu0 %v4296
    %4657 = vmatprep.mubr.bf16.mxu0 %v3955
    %4658 = vmatmul.mubr.bf16.gmra.mxu0 %v3954
    %v4659 = vpop.f32.mrf.mxu0
    %v4660 = vadd.f32 %v4371, %v4659
    %v4661 = vpop.f32.mrf.mxu0
    %v4662 = vpop.f32.mrf.mxu0
    %v4663 = vadd.f32 %v4374, %v4662
    %v4664 = vpop.f32.mrf.mxu0
    %4665 = vmatprep.mubr.bf16.mxu0 %v3959
    %4666 = vmatmul.mubr.bf16.gmra.mxu0 %v3958
    %v4667 = vpop.f32.mrf.mxu0
    %v4668 = vadd.f32 %v4379, %v4667
    %v4669 = vpop.f32.mrf.mxu0
    %v4670 = vpop.f32.mrf.mxu0
    %v4671 = vadd.f32 %v4382, %v4670
    %v4672 = vpop.f32.mrf.mxu0
    %4673 = vmatprep.mubr.bf16.mxu0 %v3963
    %4674 = vmatmul.mubr.bf16.gmra.mxu0 %v3962
    %v4675 = vpop.f32.mrf.mxu0
    %v4676 = vadd.f32 %v4387, %v4675
    %v4677 = vpop.f32.mrf.mxu0
    %v4678 = vpop.f32.mrf.mxu0
    %v4679 = vadd.f32 %v4390, %v4678
    %v4680 = vpop.f32.mrf.mxu0
    %4681 = vmatprep.mubr.bf16.mxu0 %v3967
    %4682 = vmatmul.mubr.bf16.gmra.mxu0 %v3966
    %v4683 = vpop.f32.mrf.mxu0
    %v4684 = vadd.f32 %v4395, %v4683
    %v4685 = vpop.f32.mrf.mxu0
    %v4686 = vpop.f32.mrf.mxu0
    %v4687 = vadd.f32 %v4398, %v4686
    %v4688 = vpop.f32.mrf.mxu0
    %4689 = vmatprep.mubr.bf16.mxu0 %v3971
    %4690 = vmatmul.mubr.bf16.gmra.mxu0 %v3970
    %v4691 = vpop.f32.mrf.mxu0
    %v4692 = vadd.f32 %v4403, %v4691
    %v4693 = vpop.f32.mrf.mxu0
    %v4694 = vpop.f32.mrf.mxu0
    %v4695 = vadd.f32 %v4406, %v4694
    %v4696 = vpop.f32.mrf.mxu0
    %4697 = vmatprep.mubr.bf16.mxu0 %v3975
    %4698 = vmatmul.mubr.bf16.gmra.mxu0 %v3974
    %v4699 = vpop.f32.mrf.mxu0
    %v4700 = vadd.f32 %v4411, %v4699
    %v4701 = vpop.f32.mrf.mxu0
    %v4702 = vpop.f32.mrf.mxu0
    %v4703 = vadd.f32 %v4414, %v4702
    %v4704 = vpop.f32.mrf.mxu0
    %4705 = vmatprep.mubr.bf16.mxu0 %v3979
    %4706 = vmatmul.mubr.bf16.gmra.mxu0 %v3978
    %v4707 = vpop.f32.mrf.mxu0
    %v4708 = vadd.f32 %v4419, %v4707
    %v4709 = vpop.f32.mrf.mxu0
    %v4710 = vpop.f32.mrf.mxu0
    %v4711 = vadd.f32 %v4422, %v4710
    %v4712 = vpop.f32.mrf.mxu0
    %4713 = vmatprep.mubr.bf16.mxu0 %v3983
    %4714 = vmatmul.mubr.bf16.gmra.mxu0 %v3982
    %v4715 = vpop.f32.mrf.mxu0
    %v4716 = vadd.f32 %v4427, %v4715
    %v4717 = vpop.f32.mrf.mxu0
    %v4718 = vpop.f32.mrf.mxu0
    %v4719 = vadd.f32 %v4430, %v4718
    %v4720 = vpop.f32.mrf.mxu0
    %4721 = vmatprep.mubr.bf16.mxu0 %v3987
    %4722 = vmatmul.mubr.bf16.gmra.mxu0 %v3986
    %v4723 = vpop.f32.mrf.mxu0
    %v4724 = vadd.f32 %v4435, %v4723
    %v4725 = vpop.f32.mrf.mxu0
    %v4726 = vpop.f32.mrf.mxu0
    %v4727 = vadd.f32 %v4438, %v4726
    %v4728 = vpop.f32.mrf.mxu0
    %4729 = vmatprep.mubr.bf16.mxu0 %v3991
    %4730 = vmatmul.mubr.bf16.gmra.mxu0 %v3990
    %v4731 = vpop.f32.mrf.mxu0
    %v4732 = vadd.f32 %v4443, %v4731
    %v4733 = vpop.f32.mrf.mxu0
    %v4734 = vpop.f32.mrf.mxu0
    %v4735 = vadd.f32 %v4446, %v4734
    %v4736 = vpop.f32.mrf.mxu0
    %4737 = vmatprep.mubr.bf16.mxu0 %v3995
    %4738 = vmatmul.mubr.bf16.gmra.mxu0 %v3994
    %v4739 = vpop.f32.mrf.mxu0
    %v4740 = vadd.f32 %v4451, %v4739
    %v4741 = vpop.f32.mrf.mxu0
    %v4742 = vpop.f32.mrf.mxu0
    %v4743 = vadd.f32 %v4454, %v4742
    %v4744 = vpop.f32.mrf.mxu0
    %4745 = vmatprep.mubr.bf16.mxu0 %v3999
    %4746 = vmatmul.mubr.bf16.gmra.mxu0 %v3998
    %v4747 = vpop.f32.mrf.mxu0
    %v4748 = vadd.f32 %v4459, %v4747
    %v4749 = vpop.f32.mrf.mxu0
    %v4750 = vpop.f32.mrf.mxu0
    %v4751 = vadd.f32 %v4462, %v4750
    %v4752 = vpop.f32.mrf.mxu0
    %4753 = vmatprep.mubr.bf16.mxu0 %v4003
    %4754 = vmatmul.mubr.bf16.gmra.mxu0 %v4002
    %v4755 = vpop.f32.mrf.mxu0
    %v4756 = vadd.f32 %v4467, %v4755
    %v4757 = vpop.f32.mrf.mxu0
    %v4758 = vpop.f32.mrf.mxu0
    %v4759 = vadd.f32 %v4470, %v4758
    %v4760 = vpop.f32.mrf.mxu0
    %4761 = vmatprep.mubr.bf16.mxu0 %v4007
    %4762 = vmatmul.mubr.bf16.gmra.mxu0 %v4006
    %v4763 = vpop.f32.mrf.mxu0
    %v4764 = vadd.f32 %v4475, %v4763
    %v4765 = vpop.f32.mrf.mxu0
    %v4766 = vpop.f32.mrf.mxu0
    %v4767 = vadd.f32 %v4478, %v4766
    %v4768 = vpop.f32.mrf.mxu0
    %4769 = vmatprep.mubr.bf16.mxu0 %v4011
    %4770 = vmatmul.mubr.bf16.gmra.mxu0 %v4010
    %v4771 = vpop.f32.mrf.mxu0
    %v4772 = vadd.f32 %v4483, %v4771
    %v4773 = vpop.f32.mrf.mxu0
    %v4774 = vpop.f32.mrf.mxu0
    %v4775 = vadd.f32 %v4486, %v4774
    %v4776 = vpop.f32.mrf.mxu0
    %4777 = vmatprep.mubr.bf16.mxu0 %v4015
    %4778 = vmatmul.mubr.bf16.gmra.mxu0 %v4014
    %v4779 = vpop.f32.mrf.mxu0
    %v4780 = vadd.f32 %v4491, %v4779
    %v4781 = vpop.f32.mrf.mxu0
    %v4782 = vpop.f32.mrf.mxu0
    %v4783 = vadd.f32 %v4494, %v4782
    %v4784 = vpop.f32.mrf.mxu0
    %4785 = vmatprep.mubr.bf16.mxu0 %v4019
    %4786 = vmatmul.mubr.bf16.gmra.mxu0 %v4018
    %v4787 = vpop.f32.mrf.mxu0
    %v4788 = vadd.f32 %v4499, %v4787
    %v4789 = vpop.f32.mrf.mxu0
    %v4790 = vpop.f32.mrf.mxu0
    %v4791 = vadd.f32 %v4502, %v4790
    %v4792 = vpop.f32.mrf.mxu0
    %4793 = vmatprep.mubr.bf16.mxu0 %v4023
    %4794 = vmatmul.mubr.bf16.gmra.mxu0 %v4022
    %v4795 = vpop.f32.mrf.mxu0
    %v4796 = vadd.f32 %v4507, %v4795
    %v4797 = vpop.f32.mrf.mxu0
    %v4798 = vpop.f32.mrf.mxu0
    %v4799 = vadd.f32 %v4510, %v4798
    %v4800 = vpop.f32.mrf.mxu0
    %4801 = vmatprep.mubr.bf16.mxu0 %v4027
    %4802 = vmatmul.mubr.bf16.gmra.mxu0 %v4026
    %v4803 = vpop.f32.mrf.mxu0
    %v4804 = vadd.f32 %v4515, %v4803
    %v4805 = vpop.f32.mrf.mxu0
    %v4806 = vpop.f32.mrf.mxu0
    %v4807 = vadd.f32 %v4518, %v4806
    %v4808 = vpop.f32.mrf.mxu0
    %4809 = vmatprep.mubr.bf16.mxu0 %v4031
    %4810 = vmatmul.mubr.bf16.gmra.mxu0 %v4030
    %v4811 = vpop.f32.mrf.mxu0
    %v4812 = vadd.f32 %v4523, %v4811
    %v4813 = vpop.f32.mrf.mxu0
    %v4814 = vpop.f32.mrf.mxu0
    %v4815 = vadd.f32 %v4526, %v4814
    %v4816 = vpop.f32.mrf.mxu0
    %4817 = vmatprep.mubr.bf16.mxu0 %v4035
    %4818 = vmatmul.mubr.bf16.gmra.mxu0 %v4034
    %v4819 = vpop.f32.mrf.mxu0
    %v4820 = vadd.f32 %v4531, %v4819
    %v4821 = vpop.f32.mrf.mxu0
    %v4822 = vpop.f32.mrf.mxu0
    %v4823 = vadd.f32 %v4534, %v4822
    %v4824 = vpop.f32.mrf.mxu0
    %4825 = vmatprep.mubr.bf16.mxu0 %v4039
    %4826 = vmatmul.mubr.bf16.gmra.mxu0 %v4038
    %v4827 = vpop.f32.mrf.mxu0
    %v4828 = vadd.f32 %v4539, %v4827
    %v4829 = vpop.f32.mrf.mxu0
    %v4830 = vpop.f32.mrf.mxu0
    %v4831 = vadd.f32 %v4542, %v4830
    %v4832 = vpop.f32.mrf.mxu0
    %4833 = vmatprep.mubr.bf16.mxu0 %v4043
    %4834 = vmatmul.mubr.bf16.gmra.mxu0 %v4042
    %v4835 = vpop.f32.mrf.mxu0
    %v4836 = vadd.f32 %v4547, %v4835
    %v4837 = vpop.f32.mrf.mxu0
    %v4838 = vpop.f32.mrf.mxu0
    %v4839 = vadd.f32 %v4550, %v4838
    %v4840 = vpop.f32.mrf.mxu0
    %4841 = vmatprep.mubr.bf16.mxu0 %v4047
    %4842 = vmatmul.mubr.bf16.gmra.mxu0 %v4046
    %v4843 = vpop.f32.mrf.mxu0
    %v4844 = vadd.f32 %v4555, %v4843
    %v4845 = vpop.f32.mrf.mxu0
    %v4846 = vpop.f32.mrf.mxu0
    %v4847 = vadd.f32 %v4558, %v4846
    %v4848 = vpop.f32.mrf.mxu0
    %4849 = vmatprep.mubr.bf16.mxu0 %v4051
    %4850 = vmatmul.mubr.bf16.gmra.mxu0 %v4050
    %v4851 = vpop.f32.mrf.mxu0
    %v4852 = vadd.f32 %v4563, %v4851
    %v4853 = vpop.f32.mrf.mxu0
    %v4854 = vpop.f32.mrf.mxu0
    %v4855 = vadd.f32 %v4566, %v4854
    %v4856 = vpop.f32.mrf.mxu0
    %4857 = vmatprep.mubr.bf16.mxu0 %v4055
    %4858 = vmatmul.mubr.bf16.gmra.mxu0 %v4054
    %v4859 = vpop.f32.mrf.mxu0
    %v4860 = vadd.f32 %v4571, %v4859
    %v4861 = vpop.f32.mrf.mxu0
    %v4862 = vpop.f32.mrf.mxu0
    %v4863 = vadd.f32 %v4574, %v4862
    %v4864 = vpop.f32.mrf.mxu0
    %4865 = vmatprep.mubr.bf16.mxu0 %v4059
    %4866 = vmatmul.mubr.bf16.gmra.mxu0 %v4058
    %v4867 = vpop.f32.mrf.mxu0
    %v4868 = vadd.f32 %v4579, %v4867
    %v4869 = vpop.f32.mrf.mxu0
    %v4870 = vpop.f32.mrf.mxu0
    %v4871 = vadd.f32 %v4582, %v4870
    %v4872 = vpop.f32.mrf.mxu0
    %4873 = vmatprep.mubr.bf16.mxu0 %v4063
    %4874 = vmatmul.mubr.bf16.gmra.mxu0 %v4062
    %v4875 = vpop.f32.mrf.mxu0
    %v4876 = vadd.f32 %v4587, %v4875
    %v4877 = vpop.f32.mrf.mxu0
    %v4878 = vpop.f32.mrf.mxu0
    %v4879 = vadd.f32 %v4590, %v4878
    %v4880 = vpop.f32.mrf.mxu0
    %4881 = vmatprep.mubr.bf16.mxu0 %v4067
    %4882 = vmatmul.mubr.bf16.gmra.mxu0 %v4066
    %v4883 = vpop.f32.mrf.mxu0
    %v4884 = vadd.f32 %v4595, %v4883
    %v4885 = vpop.f32.mrf.mxu0
    %v4886 = vpop.f32.mrf.mxu0
    %v4887 = vadd.f32 %v4598, %v4886
    %v4888 = vpop.f32.mrf.mxu0
    %4889 = vmatprep.mubr.bf16.mxu0 %v4071
    %4890 = vmatmul.mubr.bf16.gmra.mxu0 %v4070
    %v4891 = vpop.f32.mrf.mxu0
    %v4892 = vadd.f32 %v4603, %v4891
    %v4893 = vpop.f32.mrf.mxu0
    %v4894 = vpop.f32.mrf.mxu0
    %v4895 = vadd.f32 %v4606, %v4894
    %v4896 = vpop.f32.mrf.mxu0
    %4897 = vmatprep.mubr.bf16.mxu0 %v4075
    %4898 = vmatmul.mubr.bf16.gmra.mxu0 %v4074
    %v4899 = vpop.f32.mrf.mxu0
    %v4900 = vadd.f32 %v4611, %v4899
    %v4901 = vpop.f32.mrf.mxu0
    %v4902 = vpop.f32.mrf.mxu0
    %v4903 = vadd.f32 %v4614, %v4902
    %v4904 = vpop.f32.mrf.mxu0
    %4905 = vmatprep.mubr.bf16.mxu0 %v4079
    %4906 = vmatmul.mubr.bf16.gmra.mxu0 %v4078
    %v4907 = vpop.f32.mrf.mxu0
    %v4908 = vadd.f32 %v4619, %v4907
    %v4909 = vpop.f32.mrf.mxu0
    %v4910 = vpop.f32.mrf.mxu0
    %v4911 = vadd.f32 %v4622, %v4910
    %v4912 = vpop.f32.mrf.mxu0
    %4913 = vdwg.mxu0
    %4914 = vxpose.xlu0.b32.start [1/16] %v4660, 128
    %4915 = vxpose.xlu0.b32.cont [2/16] %v4663, 128
    %4916 = vxpose.xlu0.b32.cont [3/16] %v4668, 128
    %4917 = vxpose.xlu0.b32.cont [4/16] %v4671, 128
    %4918 = vxpose.xlu0.b32.cont [5/16] %v4676, 128
    %4919 = vxpose.xlu0.b32.cont [6/16] %v4679, 128
    %4920 = vxpose.xlu0.b32.cont [7/16] %v4684, 128
    %4921 = vxpose.xlu0.b32.cont [8/16] %v4687, 128
    %4922 = vxpose.xlu0.b32.cont [9/16] %v4692, 128
    %4923 = vxpose.xlu0.b32.cont [10/16] %v4695, 128
    %4924 = vxpose.xlu0.b32.cont [11/16] %v4700, 128
    %4925 = vxpose.xlu0.b32.cont [12/16] %v4703, 128
    %4926 = vxpose.xlu0.b32.cont [13/16] %v4708, 128
    %4927 = vxpose.xlu0.b32.cont [14/16] %v4711, 128
    %4928 = vxpose.xlu0.b32.cont [15/16] %v4716, 128
    %4929 = vxpose.xlu0.b32.end [16/16] %v4719, 128
    %v4930 = vpop.trf.xlu0
    %v4931 = vpop.trf.xlu0
    %v4932 = vpop.trf.xlu0
    %v4933 = vpop.trf.xlu0
    %v4934 = vpop.trf.xlu0
    %v4935 = vpop.trf.xlu0
    %v4936 = vpop.trf.xlu0
    %v4937 = vpop.trf.xlu0
    %v4938 = vpop.trf.xlu0
    %v4939 = vpop.trf.xlu0
    %v4940 = vpop.trf.xlu0
    %v4941 = vpop.trf.xlu0
    %v4942 = vpop.trf.xlu0
    %v4943 = vpop.trf.xlu0
    %v4944 = vpop.trf.xlu0
    %v4945 = vpop.trf.xlu0
    %4946 = vxpose.xlu0.b32.start [1/16] %v4724, 128
    %4947 = vxpose.xlu0.b32.cont [2/16] %v4727, 128
    %4948 = vxpose.xlu0.b32.cont [3/16] %v4732, 128
    %4949 = vxpose.xlu0.b32.cont [4/16] %v4735, 128
    %4950 = vxpose.xlu0.b32.cont [5/16] %v4740, 128
    %4951 = vxpose.xlu0.b32.cont [6/16] %v4743, 128
    %4952 = vxpose.xlu0.b32.cont [7/16] %v4748, 128
    %4953 = vxpose.xlu0.b32.cont [8/16] %v4751, 128
    %4954 = vxpose.xlu0.b32.cont [9/16] %v4756, 128
    %4955 = vxpose.xlu0.b32.cont [10/16] %v4759, 128
    %4956 = vxpose.xlu0.b32.cont [11/16] %v4764, 128
    %4957 = vxpose.xlu0.b32.cont [12/16] %v4767, 128
    %4958 = vxpose.xlu0.b32.cont [13/16] %v4772, 128
    %4959 = vxpose.xlu0.b32.cont [14/16] %v4775, 128
    %4960 = vxpose.xlu0.b32.cont [15/16] %v4780, 128
    %4961 = vxpose.xlu0.b32.end [16/16] %v4783, 128
    %v4962 = vpop.trf.xlu0
    %v4963 = vpop.trf.xlu0
    %v4964 = vpop.trf.xlu0
    %v4965 = vpop.trf.xlu0
    %v4966 = vpop.trf.xlu0
    %v4967 = vpop.trf.xlu0
    %v4968 = vpop.trf.xlu0
    %v4969 = vpop.trf.xlu0
    %v4970 = vpop.trf.xlu0
    %v4971 = vpop.trf.xlu0
    %v4972 = vpop.trf.xlu0
    %v4973 = vpop.trf.xlu0
    %v4974 = vpop.trf.xlu0
    %v4975 = vpop.trf.xlu0
    %v4976 = vpop.trf.xlu0
    %v4977 = vpop.trf.xlu0
    %4978 = vxpose.xlu0.b32.start [1/16] %v4788, 128
    %4979 = vxpose.xlu0.b32.cont [2/16] %v4791, 128
    %4980 = vxpose.xlu0.b32.cont [3/16] %v4796, 128
    %4981 = vxpose.xlu0.b32.cont [4/16] %v4799, 128
    %4982 = vxpose.xlu0.b32.cont [5/16] %v4804, 128
    %4983 = vxpose.xlu0.b32.cont [6/16] %v4807, 128
    %4984 = vxpose.xlu0.b32.cont [7/16] %v4812, 128
    %4985 = vxpose.xlu0.b32.cont [8/16] %v4815, 128
    %4986 = vxpose.xlu0.b32.cont [9/16] %v4820, 128
    %4987 = vxpose.xlu0.b32.cont [10/16] %v4823, 128
    %4988 = vxpose.xlu0.b32.cont [11/16] %v4828, 128
    %4989 = vxpose.xlu0.b32.cont [12/16] %v4831, 128
    %4990 = vxpose.xlu0.b32.cont [13/16] %v4836, 128
    %4991 = vxpose.xlu0.b32.cont [14/16] %v4839, 128
    %4992 = vxpose.xlu0.b32.cont [15/16] %v4844, 128
    %4993 = vxpose.xlu0.b32.end [16/16] %v4847, 128
    %v4994 = vpop.trf.xlu0
    %v4995 = vpop.trf.xlu0
    %v4996 = vpop.trf.xlu0
    %v4997 = vpop.trf.xlu0
    %v4998 = vpop.trf.xlu0
    %v4999 = vpop.trf.xlu0
    %v5000 = vpop.trf.xlu0
    %v5001 = vpop.trf.xlu0
    %v5002 = vpop.trf.xlu0
    %v5003 = vpop.trf.xlu0
    %v5004 = vpop.trf.xlu0
    %v5005 = vpop.trf.xlu0
    %v5006 = vpop.trf.xlu0
    %v5007 = vpop.trf.xlu0
    %v5008 = vpop.trf.xlu0
    %v5009 = vpop.trf.xlu0
    %5010 = vxpose.xlu0.b32.start [1/16] %v4852, 128
    %5011 = vxpose.xlu0.b32.cont [2/16] %v4855, 128
    %5012 = vxpose.xlu0.b32.cont [3/16] %v4860, 128
    %5013 = vxpose.xlu0.b32.cont [4/16] %v4863, 128
    %5014 = vxpose.xlu0.b32.cont [5/16] %v4868, 128
    %5015 = vxpose.xlu0.b32.cont [6/16] %v4871, 128
    %5016 = vxpose.xlu0.b32.cont [7/16] %v4876, 128
    %5017 = vxpose.xlu0.b32.cont [8/16] %v4879, 128
    %5018 = vxpose.xlu0.b32.cont [9/16] %v4884, 128
    %5019 = vxpose.xlu0.b32.cont [10/16] %v4887, 128
    %5020 = vxpose.xlu0.b32.cont [11/16] %v4892, 128
    %5021 = vxpose.xlu0.b32.cont [12/16] %v4895, 128
    %5022 = vxpose.xlu0.b32.cont [13/16] %v4900, 128
    %5023 = vxpose.xlu0.b32.cont [14/16] %v4903, 128
    %5024 = vxpose.xlu0.b32.cont [15/16] %v4908, 128
    %5025 = vxpose.xlu0.b32.end [16/16] %v4911, 128
    %v5026 = vpop.trf.xlu0
    %v5027 = vpop.trf.xlu0
    %v5028 = vpop.trf.xlu0
    %v5029 = vpop.trf.xlu0
    %v5030 = vpop.trf.xlu0
    %v5031 = vpop.trf.xlu0
    %v5032 = vpop.trf.xlu0
    %v5033 = vpop.trf.xlu0
    %v5034 = vpop.trf.xlu0
    %v5035 = vpop.trf.xlu0
    %v5036 = vpop.trf.xlu0
    %v5037 = vpop.trf.xlu0
    %v5038 = vpop.trf.xlu0
    %v5039 = vpop.trf.xlu0
    %v5040 = vpop.trf.xlu0
    %v5041 = vpop.trf.xlu0
    %v5042 = vld [vmem:[%s6] sm:$0x1]
    %v5044 = vlaneseq
    %v5045 = vshrl.u32 %v5044, 7
    %v5046 = vsub.s32 0, %v5045
    %v5047 = vrot.slane %v5042, %v5046
    %v5049 = vadd.f32 %v4930, %v5047
    %v5050 = vadd.f32 %v4962, %v5047
    %v5051 = vadd.f32 %v4994, %v5047
    %v5052 = vadd.f32 %v5026, %v5047
    %v5057 = vrot.slane %v5050, 7
    %vm5058 = vcmask 1041409
    %v5059 = vsel %vm5058, %v5057, %v5049
    %v5060 = vrot.slane %v5051, 6
    %vm5061 = vcmask 1042434
    %v5062 = vsel %vm5061, %v5060, %v5059
    %v5063 = vrot.slane %v5052, 5
    %vm5064 = vcmask 1043459
    %v5065 = vsel %vm5064, %v5063, %v5062
    %5067 = vst [vmem:[#allocation2] sm:$0xf] %v5065
    // Predicated region
    $region30: #{discriminator_forward.1} parent=1 // pred_check
      _
    $region31: #{discriminator_forward.1} parent=1 // pred_check_branch
      %5069 = sbr.rel (0) target = $region33
    $region32: #{discriminator_forward.1} parent=1 // pred_region
      %s5071 = ssub.s32 64, 64
      %5072 = vsyncadd [#allocation3], %s5071
      %s5074 = sshll.u32 [#allocation2], 4
      %s5075 = int_to_ptr.vmem [resolvable:$true] %s5074
      %5077 = dma.vmem_to_hbm [thread:$0]  %s5075, 64, %s7, [#allocation3]
    $region33: #{discriminator_forward.1} parent=1 // pred_fallthru
      _
    // Predicated region
    $region34: #{discriminator_forward.1} parent=1 // pred_check
      _
    $region35: #{discriminator_forward.1} parent=1 // pred_check_branch
      %5079 = sbr.rel (0) target = $region37
    $region36: #{discriminator_forward.1} parent=1 // pred_region
      %5080 = dma.done [#allocation3], 64
    $region37: #{discriminator_forward.1} parent=1 // pred_fallthru
      _
    %5081 = vsyncpa [#allocation3], 1

</llo_original>
